<compile_context>
chip_gen: v7x
topology: tpu7x:2x2x1
jax: 0.10.0
libtpu: 0.0.40
codegen_flags: <defaults>
</compile_context>

<pallas_src>
import jax
import jax.numpy as jnp
from jax.experimental import pallas as pl
from jax.experimental.pallas import tpu as pltpu


# ----------------------------------------------------------------------------
# Tiling helpers
# ----------------------------------------------------------------------------
def _largest_divisor_at_most(n, cap):
    cap = max(1, min(n, cap))
    for d in range(cap, 0, -1):
        if n % d == 0:
            return d
    return 1


def _conv_tile_rows(H, W, Cin, Cout, budget_bytes=2 << 20):
    # rough per-row f32 working set: im2col (9*Cin) + acc/shuffle/out (~16*Cout)
    per_row = max(1, W * (9 * Cin + 16 * Cout) * 4)
    cap = budget_bytes // per_row
    cap = min(cap, max(1, H // 2))        # keep >=2 row tiles when possible (v7x 2 TCs)
    return _largest_divisor_at_most(H, cap)


def _upsample_tile_rows(H):
    return _largest_divisor_at_most(H, min(32, max(1, H // 2)))


# ----------------------------------------------------------------------------
# Kernel 1: nearest-neighbor 2x upsample (with_conv=False path)
#   grid = (N, H/TH). Block of TH input rows -> 2*TH output rows per step.
#   Duplication uses lane-preserving broadcast+reshape (C stays on lanes).
# ----------------------------------------------------------------------------
def _upsample2x_kernel(x_ref, o_ref):
    TH, W, C = x_ref.shape[1], x_ref.shape[2], x_ref.shape[3]
    x = x_ref[0]                                                   # (TH, W, C)
    xc = jnp.broadcast_to(x[:, :, None, :], (TH, W, 2, C)).reshape(TH, 2 * W, C)
    y = jnp.broadcast_to(xc[:, None, :, :], (TH, 2, 2 * W, C)).reshape(2 * TH, 2 * W, C)
    o_ref[0] = y


def upsample_nearest2x(x_nhwc):
    N, H, W, C = x_nhwc.shape
    TH = _upsample_tile_rows(H)
    return pl.pallas_call(
        _upsample2x_kernel,
        out_shape=jax.ShapeDtypeStruct((N, 2 * H, 2 * W, C), x_nhwc.dtype),
        grid=(N, H // TH),
        in_specs=[pl.BlockSpec((1, TH, W, C), lambda n, t: (n, t, 0, 0))],
        out_specs=pl.BlockSpec((1, 2 * TH, 2 * W, C), lambda n, t: (n, t, 0, 0)),
        compiler_params=pltpu.CompilerParams(
            dimension_semantics=("parallel", "parallel")),
    )(x_nhwc)


# ----------------------------------------------------------------------------
# Fused kernel 2: nearest-2x upsample + 3x3 same-pad conv  (with_conv=True path)
#
#   Weights are phase-collapsed on the host:  W_all[dy,dx,ci, p*Cout+co]
#   (p = 2a+b = output row/col parity), so the fused op is a 3x3 conv on the
#   small (H,W) input producing 4*Cout channels, then a pixel shuffle to
#   (2H, 2W, Cout) done in VMEM.
#
#   grid = (N, H/TH).  The (small) zero-padded input stays resident per batch
#   element (block index depends only on n); each step slices its TH+2 halo
#   rows, builds an im2col patch (TH*W, 9*Cin) and does ONE MXU matmul.
# ----------------------------------------------------------------------------
def _upconv_kernel(xp_ref, w_ref, b_ref, o_ref):
    # xp_ref: (1, H+2, W+2, Cin)  zero-padded original input (resident per n)
    # w_ref : (9*Cin, 4*Cout)     phase-collapsed / tap-folded weights
    # b_ref : (1, 4*Cout)
    # o_ref : (1, 2*TH, 2*W, Cout)
    TH = o_ref.shape[1] // 2
    W = o_ref.shape[2] // 2
    Cin = xp_ref.shape[3]
    Cout = o_ref.shape[3]

    t = pl.program_id(1)
    xt = xp_ref[0, pl.ds(t * TH, TH + 2), :, :]                    # (TH+2, W+2, Cin)

    # im2col: 9 shifted windows folded into the K dimension (one matmul).
    cols = [xt[dy:dy + TH, dx:dx + W, :].reshape(TH * W, Cin)
            for dy in range(3) for dx in range(3)]
    patches = jnp.concatenate(cols, axis=-1)                       # (TH*W, 9*Cin)

    acc = jnp.dot(patches, w_ref[...],
                  preferred_element_type=jnp.float32)              # (TH*W, 4*Cout)
    acc = acc + b_ref[...]                                         # bias (broadcast)

    # pixel shuffle: phase p = 2a+b -> output (2i+a, 2j+b). Lane dim (Cout) is
    # never reshaped; interleaves happen on the sublane-side dims only.
    p = [acc[:, k * Cout:(k + 1) * Cout].reshape(TH, W, Cout) for k in range(4)]

    def interleave_cols(e, o):                                     # -> (TH, 2W, Cout)
        return jnp.concatenate([e[:, :, None, :], o[:, :, None, :]],
                               axis=2).reshape(TH, 2 * W, Cout)

    row_even = interleave_cols(p[0], p[1])                         # output rows 2i
    row_odd = interleave_cols(p[2], p[3])                          # output rows 2i+1
    y = jnp.concatenate([row_even[:, None, :, :], row_odd[:, None, :, :]],
                        axis=1).reshape(2 * TH, 2 * W, Cout)
    o_ref[0] = y.astype(o_ref.dtype)


def _fold_upsample_conv_weights(w_hwio):
    """(3,3,Cin,Cout) HWIO -> (9*Cin, 4*Cout) phase-collapsed, tap-folded."""
    Cin, Cout = w_hwio.shape[2], w_hwio.shape[3]
    dt = w_hwio.dtype
    # Row/col transfer matrices: [input-offset dr in {-1,0,+1}, original tap r].
    # phase a=0: taps (r-1) land on offsets {-1,0,0}; a=1: {0,0,+1}.
    R0 = jnp.array([[1., 0., 0.], [0., 1., 1.], [0., 0., 0.]], dt)
    R1 = jnp.array([[0., 0., 0.], [1., 1., 0.], [0., 0., 1.]], dt)
    phases = []
    for Ra in (R0, R1):            # a = output row parity
        for Cb in (R0, R1):        # b = output col parity
            phases.append(jnp.einsum('ar,bs,rsio->abio', Ra, Cb, w_hwio))
    w_all = jnp.stack(phases, axis=3)          # (3, 3, Cin, 4, Cout), p = 2a+b
    return w_all.reshape(9 * Cin, 4 * Cout)


def upsample2x_conv3x3(x_nhwc, w_hwio, b):
    N, H, W, Cin = x_nhwc.shape
    Cout = w_hwio.shape[-1]
    TH = _conv_tile_rows(H, W, Cin, Cout)

    # Zero-pad the *original* (pre-upsample) input only: 4x less HBM traffic
    # than padding the upsampled tensor, and the upsampled tensor itself is
    # never materialized in HBM.
    xp = jnp.pad(x_nhwc, ((0, 0), (1, 1), (1, 1), (0, 0)))
    w_fold = _fold_upsample_conv_weights(w_hwio)                   # (9*Cin, 4*Cout)
    b_all = jnp.tile(b, 4).reshape(1, 4 * Cout)

    return pl.pallas_call(
        _upconv_kernel,
        out_shape=jax.ShapeDtypeStruct((N, 2 * H, 2 * W, Cout), x_nhwc.dtype),
        grid=(N, H // TH),
        in_specs=[
            # padded input: block index depends only on n -> fetched once per n
            pl.BlockSpec((1, H + 2, W + 2, Cin), lambda n, t: (n, 0, 0, 0)),
            pl.BlockSpec((9 * Cin, 4 * Cout), lambda n, t: (0, 0)),
            pl.BlockSpec((1, 4 * Cout), lambda n, t: (0, 0)),
        ],
        out_specs=pl.BlockSpec((1, 2 * TH, 2 * W, Cout), lambda n, t: (n, t, 0, 0)),
        compiler_params=pltpu.CompilerParams(
            dimension_semantics=("parallel", "parallel")),
    )(xp, w_fold, b_all)


# ----------------------------------------------------------------------------
# Module wrapper (matches the PyTorch Upsample2d forward, NCHW in / NCHW out).
# ----------------------------------------------------------------------------
@jax.jit
def _forward_with_conv(x_nchw, w_hwio, b):
    x = jnp.transpose(x_nchw, (0, 2, 3, 1))                        # NCHW -> NHWC (small tensor)
    y = upsample2x_conv3x3(x, w_hwio, b)                           # fused Pallas kernel
    return jnp.transpose(y, (0, 3, 1, 2))                          # NHWC -> NCHW


@jax.jit
def _forward_no_conv(x_nchw):
    x = jnp.transpose(x_nchw, (0, 2, 3, 1))
    y = upsample_nearest2x(x)                                      # Pallas kernel
    return jnp.transpose(y, (0, 3, 1, 2))


class Upsample2d:
    def __init__(self, in_channels, with_conv, key=None):
        self.with_conv = with_conv
        if with_conv:
            key = jax.random.PRNGKey(0) if key is None else key
            kw, kb = jax.random.split(key)
            fan_in = in_channels * 3 * 3
            bound = float(1.0 / jnp.sqrt(fan_in))
            # HWIO weight layout (== torch weight.transpose(2,3,1,0))
            self.w = jax.random.uniform(
                kw, (3, 3, in_channels, in_channels), jnp.float32, -bound, bound)
            self.b = jax.random.uniform(
                kb, (in_channels,), jnp.float32, -bound, bound)

    def __call__(self, x_nchw):
        if self.with_conv:
            return _forward_with_conv(x_nchw, self.w, self.b)
        return _forward_no_conv(x_nchw)


# ----------------------------------------------------------------------------
# Pure-JAX reference (naive upsample -> pad -> 3x3 conv) for verification.
# ----------------------------------------------------------------------------
def _reference(x_nchw, w_hwio, b, with_conv):
    x = jnp.repeat(jnp.repeat(x_nchw, 2, axis=2), 2, axis=3)       # nearest 2x
    if not with_conv:
        return x
    xh = jnp.transpose(x, (0, 2, 3, 1))
    N, H, W, C = xh.shape
    xp = jnp.pad(xh, ((0, 0), (1, 1), (1, 1), (0, 0)))
    out = jnp.zeros_like(xh)
    for dy in range(3):
        for dx in range(3):
            out = out + jnp.einsum('nhwc,cd->nhwd',
                                   xp[:, dy:dy + H, dx:dx + W, :],
                                   w_hwio[dy, dx], precision='highest')
    out = out + b
    return jnp.transpose(out, (0, 3, 1, 2))


if __name__ == "__main__":
    key = jax.random.PRNGKey(0)
    kx, kp = jax.random.split(key)
    x = jax.random.normal(kx, (2, 4, 16, 16), jnp.float32)         # NCHW input

    # with_conv=True path (fused upsample + conv)
    mod = Upsample2d(in_channels=4, with_conv=True, key=kp)
    y = jax.block_until_ready(mod(x))
    assert y.shape == (2, 4, 32, 32)
    ref = _reference(x, mod.w, mod.b, True)
    assert jnp.allclose(y, ref, atol=1e-2, rtol=1e-2), "conv path mismatch"

    # with_conv=False path (upsample only)
    mod2 = Upsample2d(in_channels=4, with_conv=False)
    y2 = jax.block_until_ready(mod2(x))
    assert y2.shape == (2, 4, 32, 32)
    assert jnp.allclose(y2, _reference(x, None, None, False)), "upsample mismatch"

    print("KERNEL_OK")
</pallas_src>

<mosaic_0001>
module attributes {stable_mosaic.version = 11 : i64} {
  func.func @_upconv_kernel(%arg0: i32, %arg1: i32, %arg2: memref<1x18x18x4xf32, #tpu.memory_space<vmem>>, %arg3: memref<36x16xf32, #tpu.memory_space<vmem>>, %arg4: memref<1x16xf32, #tpu.memory_space<vmem>>, %arg5: memref<1x16x32x4xf32, #tpu.memory_space<vmem>>) attributes {dimension_semantics = [#tpu.dimension_semantics<parallel>, #tpu.dimension_semantics<parallel>], iteration_bounds = array<i64: 2, 2>, scalar_prefetch = 0 : i64, scratch_operands = 0 : i64, tpu.core_type = #tpu.core_type<tc>, window_params = [{transform_indices = @transform_0, window_bounds = array<i64: 1, 18, 18, 4>}, {pipeline_mode = #tpu.pipeline_mode<synchronous>, transform_indices = @transform_1, window_bounds = array<i64: 36, 16>}, {pipeline_mode = #tpu.pipeline_mode<synchronous>, transform_indices = @transform_2, window_bounds = array<i64: 1, 16>}, {transform_indices = @transform_3, window_bounds = array<i64: 1, 16, 32, 4>}]} {
    %c8_i32 = arith.constant 8 : i32
    %0 = arith.muli %arg1, %c8_i32 : i32
    %c0 = arith.constant 0 : index
    %1 = arith.index_cast %0 : i32 to index
    %c0_0 = arith.constant 0 : index
    %c0_1 = arith.constant 0 : index
    %2 = vector.load %arg2[%c0, %1, %c0_0, %c0_1] : memref<1x18x18x4xf32, #tpu.memory_space<vmem>>, vector<1x10x18x4xf32>
    %3 = vector.shape_cast %2 : vector<1x10x18x4xf32> to vector<10x18x4xf32>
    %4 = vector.extract_strided_slice %3 {offsets = [0, 0, 0], sizes = [8, 16, 4], strides = [1, 1, 1]} : vector<10x18x4xf32> to vector<8x16x4xf32>
    %5 = vector.shape_cast %4 : vector<8x16x4xf32> to vector<128x4xf32>
    %6 = vector.extract_strided_slice %3 {offsets = [0, 1, 0], sizes = [8, 16, 4], strides = [1, 1, 1]} : vector<10x18x4xf32> to vector<8x16x4xf32>
    %7 = vector.shape_cast %6 : vector<8x16x4xf32> to vector<128x4xf32>
    %8 = vector.extract_strided_slice %3 {offsets = [0, 2, 0], sizes = [8, 16, 4], strides = [1, 1, 1]} : vector<10x18x4xf32> to vector<8x16x4xf32>
    %9 = vector.shape_cast %8 : vector<8x16x4xf32> to vector<128x4xf32>
    %10 = vector.extract_strided_slice %3 {offsets = [1, 0, 0], sizes = [8, 16, 4], strides = [1, 1, 1]} : vector<10x18x4xf32> to vector<8x16x4xf32>
    %11 = vector.shape_cast %10 : vector<8x16x4xf32> to vector<128x4xf32>
    %12 = vector.extract_strided_slice %3 {offsets = [1, 1, 0], sizes = [8, 16, 4], strides = [1, 1, 1]} : vector<10x18x4xf32> to vector<8x16x4xf32>
    %13 = vector.shape_cast %12 : vector<8x16x4xf32> to vector<128x4xf32>
    %14 = vector.extract_strided_slice %3 {offsets = [1, 2, 0], sizes = [8, 16, 4], strides = [1, 1, 1]} : vector<10x18x4xf32> to vector<8x16x4xf32>
    %15 = vector.shape_cast %14 : vector<8x16x4xf32> to vector<128x4xf32>
    %16 = vector.extract_strided_slice %3 {offsets = [2, 0, 0], sizes = [8, 16, 4], strides = [1, 1, 1]} : vector<10x18x4xf32> to vector<8x16x4xf32>
    %17 = vector.shape_cast %16 : vector<8x16x4xf32> to vector<128x4xf32>
    %18 = vector.extract_strided_slice %3 {offsets = [2, 1, 0], sizes = [8, 16, 4], strides = [1, 1, 1]} : vector<10x18x4xf32> to vector<8x16x4xf32>
    %19 = vector.shape_cast %18 : vector<8x16x4xf32> to vector<128x4xf32>
    %20 = vector.extract_strided_slice %3 {offsets = [2, 2, 0], sizes = [8, 16, 4], strides = [1, 1, 1]} : vector<10x18x4xf32> to vector<8x16x4xf32>
    %21 = vector.shape_cast %20 : vector<8x16x4xf32> to vector<128x4xf32>
    %22 = tpu.concatenate %5, %7, %9, %11, %13, %15, %17, %19, %21 in 1 : vector<128x4xf32>, vector<128x4xf32>, vector<128x4xf32>, vector<128x4xf32>, vector<128x4xf32>, vector<128x4xf32>, vector<128x4xf32>, vector<128x4xf32>, vector<128x4xf32> -> vector<128x36xf32>
    %c0_2 = arith.constant 0 : index
    %c0_3 = arith.constant 0 : index
    %23 = vector.load %arg3[%c0_2, %c0_3] : memref<36x16xf32, #tpu.memory_space<vmem>>, vector<36x16xf32>
    %cst = arith.constant dense<0.000000e+00> : vector<128x16xf32>
    %24 = tpu.matmul %22, %23, %cst {dimension_numbers = #tpu.dot_dimension_numbers<[1], [0], [0], [1], [0, 0, 1, 1], [], []>} : vector<128x36xf32>, vector<36x16xf32>, vector<128x16xf32> -> vector<128x16xf32>
    %c0_4 = arith.constant 0 : index
    %c0_5 = arith.constant 0 : index
    %25 = vector.load %arg4[%c0_4, %c0_5] : memref<1x16xf32, #tpu.memory_space<vmem>>, vector<1x16xf32>
    %26 = vector.broadcast %25 : vector<1x16xf32> to vector<128x16xf32>
    %27 = arith.addf %24, %26 : vector<128x16xf32>
    %28 = vector.extract_strided_slice %27 {offsets = [0, 0], sizes = [128, 4], strides = [1, 1]} : vector<128x16xf32> to vector<128x4xf32>
    %29 = vector.shape_cast %28 : vector<128x4xf32> to vector<8x16x4xf32>
    %30 = vector.extract_strided_slice %27 {offsets = [0, 4], sizes = [128, 4], strides = [1, 1]} : vector<128x16xf32> to vector<128x4xf32>
    %31 = vector.shape_cast %30 : vector<128x4xf32> to vector<8x16x4xf32>
    %32 = vector.extract_strided_slice %27 {offsets = [0, 8], sizes = [128, 4], strides = [1, 1]} : vector<128x16xf32> to vector<128x4xf32>
    %33 = vector.shape_cast %32 : vector<128x4xf32> to vector<8x16x4xf32>
    %34 = vector.extract_strided_slice %27 {offsets = [0, 12], sizes = [128, 4], strides = [1, 1]} : vector<128x16xf32> to vector<128x4xf32>
    %35 = vector.shape_cast %34 : vector<128x4xf32> to vector<8x16x4xf32>
    %36 = vector.shape_cast %29 : vector<8x16x4xf32> to vector<8x16x1x4xf32>
    %37 = vector.shape_cast %31 : vector<8x16x4xf32> to vector<8x16x1x4xf32>
    %38 = tpu.concatenate %36, %37 in 2 : vector<8x16x1x4xf32>, vector<8x16x1x4xf32> -> vector<8x16x2x4xf32>
    %39 = vector.shape_cast %38 : vector<8x16x2x4xf32> to vector<8x32x4xf32>
    %40 = vector.shape_cast %33 : vector<8x16x4xf32> to vector<8x16x1x4xf32>
    %41 = vector.shape_cast %35 : vector<8x16x4xf32> to vector<8x16x1x4xf32>
    %42 = tpu.concatenate %40, %41 in 2 : vector<8x16x1x4xf32>, vector<8x16x1x4xf32> -> vector<8x16x2x4xf32>
    %43 = vector.shape_cast %42 : vector<8x16x2x4xf32> to vector<8x32x4xf32>
    %44 = vector.shape_cast %39 : vector<8x32x4xf32> to vector<8x1x32x4xf32>
    %45 = vector.shape_cast %43 : vector<8x32x4xf32> to vector<8x1x32x4xf32>
    %46 = tpu.concatenate %44, %45 in 1 : vector<8x1x32x4xf32>, vector<8x1x32x4xf32> -> vector<8x2x32x4xf32>
    %47 = vector.shape_cast %46 : vector<8x2x32x4xf32> to vector<16x32x4xf32>
    %c0_6 = arith.constant 0 : index
    %c0_7 = arith.constant 0 : index
    %c0_8 = arith.constant 0 : index
    %c0_9 = arith.constant 0 : index
    %48 = vector.load %arg5[%c0_6, %c0_7, %c0_8, %c0_9] : memref<1x16x32x4xf32, #tpu.memory_space<vmem>>, vector<1x16x32x4xf32>
    %49 = vector.shape_cast %48 : vector<1x16x32x4xf32> to vector<16x32x4xf32>
    %50 = vector.shape_cast %47 : vector<16x32x4xf32> to vector<1x16x32x4xf32>
    tpu.vector_store %arg5[%c0_6, %c0_7, %c0_8, %c0_9], %50 {strides = array<i32>} : memref<1x16x32x4xf32, #tpu.memory_space<vmem>>, vector<1x16x32x4xf32>,
    return
  }
  func.func @transform_0(%arg0: i32, %arg1: i32) -> (i32, i32, i32, i32) {
    %c0_i32 = arith.constant 0 : i32
    %c0_i32_0 = arith.constant 0 : i32
    %c0_i32_1 = arith.constant 0 : i32
    %c0_i32_2 = arith.constant 0 : i32
    return %arg0, %c0_i32, %c0_i32_0, %c0_i32_1 : i32, i32, i32, i32
  }
  func.func @transform_1(%arg0: i32, %arg1: i32) -> (i32, i32) {
    %c0_i32 = arith.constant 0 : i32
    %c0_i32_0 = arith.constant 0 : i32
    %c0_i32_1 = arith.constant 0 : i32
    return %c0_i32, %c0_i32_0 : i32, i32
  }
  func.func @transform_2(%arg0: i32, %arg1: i32) -> (i32, i32) {
    %c0_i32 = arith.constant 0 : i32
    %c0_i32_0 = arith.constant 0 : i32
    %c0_i32_1 = arith.constant 0 : i32
    return %c0_i32, %c0_i32_0 : i32, i32
  }
  func.func @transform_3(%arg0: i32, %arg1: i32) -> (i32, i32, i32, i32) {
    %c0_i32 = arith.constant 0 : i32
    %c0_i32_0 = arith.constant 0 : i32
    %c0_i32_1 = arith.constant 0 : i32
    return %arg0, %arg1, %c0_i32, %c0_i32_0 : i32, i32, i32, i32
  }
}

</mosaic_0001>

<llo_original>
// kernel: tile.8
$region0: #{tile.8}
  #allocation0 [shape = 's32[1]{0}', space=sflag, size = 0x4, scoped, tag = 'scoped memory for tile.8']
  %s0 = inlined_call_operand.vmem [shape: f32[4], index: 0, kind: input, shape index: {}]
  %s1 = inlined_call_operand.vmem [shape: f32[4,4], index: 1, kind: output, shape index: {}]
  // Predicated region
  $region2: #{tile.8} parent=0 // pred_check
    _
  $region3: #{tile.8} parent=0 // pred_check_branch
    %3 = sbr.rel (0) target = $region5
  $region4: #{tile.8} parent=0 // pred_region
    _
  $region5: #{tile.8} parent=0 // pred_fallthru
    _
  %v4 = vld [vmem:[%s0] ss:$0 sm:$0xff]
  %5 = vst [vmem:[%s1] sm:$0xf] %v4

// kernel: tile.9
$region0: #{tile.9}
  %s0 = inlined_call_operand.vmem [shape: f32[4,4], index: 0, kind: input, shape index: {}]
  %s1 = inlined_call_operand.vmem [shape: f32[1,16], index: 1, kind: output, shape index: {}]
  $region1: #{tile.9} parent=0
    #allocation0 [shape = 'u8[4096]{0}', space=vmem, size = 0x1000, scoped, tag = 'scoped mem for output reshape']
    #allocation1 [shape = 'u8[4096]{0}', space=vmem, size = 0x1000, scoped, tag = 'scoped mem for input reshape']
    %s3 = sshllo.u32 0, 4
    %v4 = vld [vmem:[%s0] sm:%s3]
    %5 = vst [vmem:[#allocation1] sm:%s3] %v4
    %v6 = vld [vmem:[#allocation1] sm:$0x1]
    %vm7 = vcmask 31744
    %8 = vst.msk [vmem:[#allocation0] sm:$0x1] %vm7, %v6
    %s9 = scalar_lea.vmem [#allocation1], 3
    %v10 = vld [vmem:[%s9] sm:$0x1]
    %11 = vrot.lane.b32.xlu0 %v10, 12
    %v12 = vpop.permute.xlu0 %11
    %vm13 = vcmask 130144
    %14 = vst.msk [vmem:[#allocation0] sm:$0x1] %vm13, %v12
    %s15 = scalar_lea.vmem [#allocation1], 2
    %v16 = vld [vmem:[%s15] sm:$0x1]
    %17 = vrot.lane.b32.xlu0 %v16, 8
    %v18 = vpop.permute.xlu0 %17
    %vm19 = vcmask 97344
    %20 = vst.msk [vmem:[#allocation0] sm:$0x1] %vm19, %v18
    %s21 = scalar_lea.vmem [#allocation1], 1
    %v22 = vld [vmem:[%s21] sm:$0x1]
    %23 = vrot.lane.b32.xlu0 %v22, 4
    %v24 = vpop.permute.xlu0 %23
    %vm25 = vcmask 64544
    %26 = vst.msk [vmem:[#allocation0] sm:$0x1] %vm25, %v24
    %s28 = sshllo.u32 0, 1
    %v30 = vld [vmem:[#allocation0] sm:%s28]
    %s31 = sshllo.u32 0, 1
    %32 = vst [vmem:[%s1] sm:%s31] %v30

// kernel: _forward_with_conv.1
$region0: #{_forward_with_conv.1}
  #allocation0 [shape = 'u32[]', space=smem, size = 0x4, offset = 0x4, fixed_abs, tag = 'smem constant byte address 0x4 - core index']
  #allocation1 [shape = 'u32[144,128]{1,0:T(1,128)}', space=vmem, size = 0x12000, scoped, tag = 'internal scratch']
  %s0 = inlined_call_operand.vmem [shape: f32[2,18,18,4], index: 0, kind: input, shape index: {}]
  %s1 = inlined_call_operand.vmem [shape: f32[36,16], index: 1, kind: input, shape index: {}]
  %s2 = inlined_call_operand.vmem [shape: f32[1,16], index: 2, kind: input, shape index: {}]
  %s3 = inlined_call_operand.vmem [shape: f32[2,32,32,4], index: 3, kind: output, shape index: {}]
  %s4 = sld [smem:[#allocation0]]
  $region45: #{_forward_with_conv.1} parent=0
    _
  %s6 = ssub.s32 1, %s4
  %s7 = scalar_select 0, %s6, %s4
  loop: start=0, step=1, limit=6
  $region2: #{_forward_with_conv.1} parent=0 // loop_pre_header
    _
  $region3: #{_forward_with_conv.1} parent=0 // loop_header
    %s9 = sphi 0, %s13
    %p10 = scmp.ge.s32.totalorder %s9, 6
    %s16 = sphi 0, %s28
    %s17 = sphi 0, %s24
    %s18 = sphi 0, %s16
    %s19 = sphi 0, %s17
    %s20 = sphi 0, %s18
    %s21 = sphi 0, %s19
    %s31 = sphi 0, %s33
    %s34 = sphi 0, %s31
    %s35 = sphi 0, %s34
    %s51 = sphi 0, %s35
    %s55 = sphi 0, %s55
    %s57 = sphi 0, %s55
    %s58 = sphi 0, %s57
    %s72 = sphi 0, %s58
    %s76 = sphi 0, %s76
    %s78 = sphi 0, %s76
    %s79 = sphi 0, %s78
    %s93 = sphi 0, %s79
    %s101 = sphi 0, %s103
    %s104 = sphi 0, %s101
    %s105 = sphi 0, %s104
    %s121 = sphi 0, %s105
  $region4: #{_forward_with_conv.1} parent=0 // loop_header_branch
    %12 = sbr.rel (%p10) target = $region8
  $region5: #{_forward_with_conv.1} parent=0 // loop_body
    %s14 = ssub.s32 %s9, 1
    %s15 = ssub.s32 %s9, 2
    %s22 = sadd.s32 1, %s17
    %p23 = scmp.ge.s32.totalorder %s22, 2
    %s24 = scalar_select %p23, 0, %s22
    %s25 = sadd.s32 1, %s16
    %s26 = scalar_select %p23, %s25, %s16
    %p27 = scmp.ge.s32.totalorder %s26, 2
    %s28 = scalar_select %p27, 0, %s26
    %s29 = ssub.s32 %s16, %s28
    %p30 = scmp.eq.s32.totalorder %s29, 0
    %s32 = sadd.s32 %s31, 1
    %s33 = scalar_select %p30, %s31, %s32
    %p36 = pneg %p30
    %p37 = scmp.eq.s32.totalorder %s9, 3
    %p38 = por %p36, %p37
    %p39 = scmp.ne.s32.totalorder %s31, %s34
    %p40 = scmp.eq.s32.totalorder %s9, 0
    %p41 = por %p39, %p40
    %p42 = scmp.ne.s32.totalorder %s31, %s34
    %p43 = scmp.eq.s32.totalorder %s14, 3
    %p44 = por %p42, %p43
    %p45 = scmp.ne.s32.totalorder %s34, %s35
    %p46 = scmp.eq.s32.totalorder %s14, 0
    %p47 = por %p45, %p46
    %p48 = scmp.ne.s32.totalorder %s34, %s35
    %p49 = scmp.eq.s32.totalorder %s15, 3
    %p50 = por %p48, %p49
    %p52 = scmp.ne.s32.totalorder %s35, %s51
    %p53 = scmp.eq.s32.totalorder %s15, 0
    %p54 = por %p52, %p53
    %s56 = sadd.s32 %s55, 1
    %p59 = scmp.eq.s32.totalorder %s9, 3
    %p60 = scmp.ne.s32.totalorder %s55, %s57
    %p61 = scmp.eq.s32.totalorder %s9, 0
    %p62 = por %p60, %p61
    %p63 = scmp.ne.s32.totalorder %s55, %s57
    %p64 = scmp.eq.s32.totalorder %s14, 3
    %p65 = por %p63, %p64
    %p66 = scmp.ne.s32.totalorder %s57, %s58
    %p67 = scmp.eq.s32.totalorder %s14, 0
    %p68 = por %p66, %p67
    %p69 = scmp.ne.s32.totalorder %s57, %s58
    %p70 = scmp.eq.s32.totalorder %s15, 3
    %p71 = por %p69, %p70
    %p73 = scmp.ne.s32.totalorder %s58, %s72
    %p74 = scmp.eq.s32.totalorder %s15, 0
    %p75 = por %p73, %p74
    %s77 = sadd.s32 %s76, 1
    %p80 = scmp.eq.s32.totalorder %s9, 3
    %p81 = scmp.ne.s32.totalorder %s76, %s78
    %p82 = scmp.eq.s32.totalorder %s9, 0
    %p83 = por %p81, %p82
    %p84 = scmp.ne.s32.totalorder %s76, %s78
    %p85 = scmp.eq.s32.totalorder %s14, 3
    %p86 = por %p84, %p85
    %p87 = scmp.ne.s32.totalorder %s78, %s79
    %p88 = scmp.eq.s32.totalorder %s14, 0
    %p89 = por %p87, %p88
    %p90 = scmp.ne.s32.totalorder %s78, %s79
    %p91 = scmp.eq.s32.totalorder %s15, 3
    %p92 = por %p90, %p91
    %p94 = scmp.ne.s32.totalorder %s79, %s93
    %p95 = scmp.eq.s32.totalorder %s15, 0
    %p96 = por %p94, %p95
    %s97 = ssub.s32 %s16, %s28
    %s98 = ssub.s32 %s17, %s24
    %s99 = sor.u32 %s97, %s98
    %p100 = scmp.eq.s32.totalorder %s99, 0
    %s102 = sadd.s32 %s101, 1
    %s103 = scalar_select %p100, %s101, %s102
    %p106 = pneg %p100
    %p107 = scmp.eq.s32.totalorder %s9, 3
    %p108 = por %p106, %p107
    %p109 = scmp.ne.s32.totalorder %s101, %s104
    %p110 = scmp.eq.s32.totalorder %s9, 0
    %p111 = por %p109, %p110
    %p112 = scmp.ne.s32.totalorder %s101, %s104
    %p113 = scmp.eq.s32.totalorder %s14, 3
    %p114 = por %p112, %p113
    %p115 = scmp.ne.s32.totalorder %s104, %s105
    %p116 = scmp.eq.s32.totalorder %s14, 0
    %p117 = por %p115, %p116
    %p118 = scmp.ne.s32.totalorder %s104, %s105
    %p119 = scmp.eq.s32.totalorder %s15, 3
    %p120 = por %p118, %p119
    %p122 = scmp.ne.s32.totalorder %s105, %s121
    %p123 = scmp.eq.s32.totalorder %s15, 0
    %p124 = por %p122, %p123
    %p125 = scmp.le.s32.totalorder 1, %s9
    %p126 = scmp.lt.s32.totalorder %s9, 5
    %p127 = pnand %p125, %p126
    %p128 = pneg %p127
    // Predicated region
    $region9: #{_forward_with_conv.1} parent=5 // pred_check
      _
    $region10: #{_forward_with_conv.1} parent=5 // pred_check_branch
      %130 = sbr.rel (%p127) target = $region12
    $region11: #{_forward_with_conv.1} parent=5 // pred_region
      %s131 = ssub.s32 %s9, 1
      // Predicated region
      $region13: #{_forward_with_conv.1} parent=11 // pred_check
        %p132 = pneg %p68
      $region14: #{_forward_with_conv.1} parent=11 // pred_check_branch
        %134 = sbr.rel (%p132) target = $region16
      $region15: #{_forward_with_conv.1} parent=11 // pred_region
        _
      $region16: #{_forward_with_conv.1} parent=11 // pred_fallthru
        _
      // Predicated region
      $region17: #{_forward_with_conv.1} parent=11 // pred_check
        %p135 = pneg %p89
      $region18: #{_forward_with_conv.1} parent=11 // pred_check_branch
        %137 = sbr.rel (%p135) target = $region20
      $region19: #{_forward_with_conv.1} parent=11 // pred_region
        _
      $region20: #{_forward_with_conv.1} parent=11 // pred_fallthru
        _
    $region12: #{_forward_with_conv.1} parent=5 // pred_fallthru
      _
    %p138 = scmp.lt.s32.totalorder %s9, 4
    // Predicated region
    $region21: #{_forward_with_conv.1} parent=5 // pred_check
      %p139 = pneg %p138
    $region22: #{_forward_with_conv.1} parent=5 // pred_check_branch
      %141 = sbr.rel (%p139) target = $region24
    $region23: #{_forward_with_conv.1} parent=5 // pred_region
      // Predicated region
      $region25: #{_forward_with_conv.1} parent=23 // pred_check
        %p142 = pneg %p41
      $region26: #{_forward_with_conv.1} parent=23 // pred_check_branch
        %144 = sbr.rel (%p142) target = $region28
      $region27: #{_forward_with_conv.1} parent=23 // pred_region
        %p145 = scmp.lt.s32.totalorder %s16, 1
        %s146 = scalar_select %p145, %s16, 1
        %s147 = smul.addr %s146, 54
        %s148 = smul.addr %s147, 8
        %s149 = scalar_lea.vmem %s0, %s148
      $region28: #{_forward_with_conv.1} parent=23 // pred_fallthru
        _
    $region24: #{_forward_with_conv.1} parent=5 // pred_fallthru
      _
    %p150 = scmp.le.s32.totalorder 1, %s9
    %p151 = scmp.lt.s32.totalorder %s9, 5
    %p152 = pnand %p150, %p151
    %p153 = pneg %p152
    // Predicated region
    $region29: #{_forward_with_conv.1} parent=5 // pred_check
      _
    $region30: #{_forward_with_conv.1} parent=5 // pred_check_branch
      %155 = sbr.rel (%p152) target = $region32
    $region31: #{_forward_with_conv.1} parent=5 // pred_region
      %s156 = ssub.s32 %s9, 1
      %p157 = scmp.lt.s32.totalorder %s18, 1
      %s158 = scalar_select %p157, %s18, 1
      %s159 = smul.addr %s158, 54
      %s160 = smul.addr %s159, 8
      %s161 = scalar_lea.vmem %s0, %s160
      %p162 = pneg %p47
      %p163 = pneg %p44
      %p164 = pneg %p68
      %p165 = pneg %p65
      %p166 = pneg %p89
      %p167 = pneg %p86
      %p168 = pneg %p117
      %p169 = pneg %p114
      %s170 = smul.u32 16, %s19
      %p171 = scmp.lt.s32.totalorder %s18, 1
      %s172 = scalar_select %p171, %s18, 1
      %p173 = scmp.lt.s32.totalorder %s170, 31
      %s174 = scalar_select %p173, %s170, 31
      %s175 = smul.addr %s174, 4
      %s176 = smul.addr %s172, 128
      %s177 = sadd.s32 %s175, %s176
      %s178 = smul.addr %s177, 8
      %s179 = scalar_lea.vmem %s3, %s178
      %p180 = scmp.lt.s32.totalorder %s18, 1
      %s181 = scalar_select %p180, %s18, 1
      %s182 = smul.addr %s181, 54
      %s183 = smul.addr %s182, 8
      %s184 = scalar_lea.vmem %s0, %s183
      %s185 = smul.u32 16, %s19
      %p186 = scmp.lt.s32.totalorder %s18, 1
      %s187 = scalar_select %p186, %s18, 1
      %p188 = scmp.lt.s32.totalorder %s185, 31
      %s189 = scalar_select %p188, %s185, 31
      %s190 = smul.addr %s189, 4
      %s191 = smul.addr %s187, 128
      %s192 = sadd.s32 %s190, %s191
      %s193 = smul.addr %s192, 8
      %s194 = scalar_lea.vmem %s3, %s193
      %s195 = smul.u32 16, %s19
      %s196 = smul.u32 %s19, 8
      %s197 = smul.u32 %s196, 24
      %s198 = scalar_lea.vmem %s184, %s197
      %v199 = vld [vmem:[%s198] sm:$0xff]
      %v200 = vld [vmem:[%s198 + $0x8] sm:$0xff]
      %v201 = vld [vmem:[%s198 + $0x10] sm:$0x3]
      %v202 = vld [vmem:[%s198 + $0x18] sm:$0xff]
      %v203 = vld [vmem:[%s198 + $0x20] sm:$0xff]
      %v204 = vld [vmem:[%s198 + $0x28] sm:$0x3]
      %v205 = vld [vmem:[%s198 + $0x30] sm:$0xff]
      %v206 = vld [vmem:[%s198 + $0x38] sm:$0xff]
      %v207 = vld [vmem:[%s198 + $0x40] sm:$0x3]
      %v208 = vld [vmem:[%s198 + $0x48] sm:$0xff]
      %v209 = vld [vmem:[%s198 + $0x50] sm:$0xff]
      %v210 = vld [vmem:[%s198 + $0x58] sm:$0x3]
      %v211 = vld [vmem:[%s198 + $0x60] sm:$0xff]
      %v212 = vld [vmem:[%s198 + $0x68] sm:$0xff]
      %v213 = vld [vmem:[%s198 + $0x70] sm:$0x3]
      %v214 = vld [vmem:[%s198 + $0x78] sm:$0xff]
      %v215 = vld [vmem:[%s198 + $0x80] sm:$0xff]
      %v216 = vld [vmem:[%s198 + $0x88] sm:$0x3]
      %v217 = vld [vmem:[%s198 + $0x90] sm:$0xff]
      %v218 = vld [vmem:[%s198 + $0x98] sm:$0xff]
      %v219 = vld [vmem:[%s198 + $0xa0] sm:$0x3]
      %v220 = vld [vmem:[%s198 + $0xa8] sm:$0xff]
      %v221 = vld [vmem:[%s198 + $0xb0] sm:$0xff]
      %v222 = vld [vmem:[%s198 + $0xb8] sm:$0x3]
      %v223 = vld [vmem:[%s198 + $0xc0] sm:$0xff]
      %v224 = vld [vmem:[%s198 + $0xc8] sm:$0xff]
      %v225 = vld [vmem:[%s198 + $0xd0] sm:$0x3]
      %v226 = vld [vmem:[%s198 + $0xd8] sm:$0xff]
      %v227 = vld [vmem:[%s198 + $0xe0] sm:$0xff]
      %v228 = vld [vmem:[%s198 + $0xe8] sm:$0x3]
      %vm253 = vcmask 1046528
      %v254 = vrot.slane %v199, 1
      %v255 = vrot.slane %v200, 1
      %v256 = vsel %vm253, %v254, %v255
      %v257 = vrot.slane %v201, 1
      %v258 = vsel %vm253, %v255, %v257
      %v259 = vrot.slane %v202, 1
      %v260 = vrot.slane %v203, 1
      %v261 = vsel %vm253, %v259, %v260
      %v262 = vrot.slane %v204, 1
      %v263 = vsel %vm253, %v260, %v262
      %v264 = vrot.slane %v205, 1
      %v265 = vrot.slane %v206, 1
      %v266 = vsel %vm253, %v264, %v265
      %v267 = vrot.slane %v207, 1
      %v268 = vsel %vm253, %v265, %v267
      %v269 = vrot.slane %v208, 1
      %v270 = vrot.slane %v209, 1
      %v271 = vsel %vm253, %v269, %v270
      %v272 = vrot.slane %v210, 1
      %v273 = vsel %vm253, %v270, %v272
      %v274 = vrot.slane %v211, 1
      %v275 = vrot.slane %v212, 1
      %v276 = vsel %vm253, %v274, %v275
      %v277 = vrot.slane %v213, 1
      %v278 = vsel %vm253, %v275, %v277
      %v279 = vrot.slane %v214, 1
      %v280 = vrot.slane %v215, 1
      %v281 = vsel %vm253, %v279, %v280
      %v282 = vrot.slane %v216, 1
      %v283 = vsel %vm253, %v280, %v282
      %v284 = vrot.slane %v217, 1
      %v285 = vrot.slane %v218, 1
      %v286 = vsel %vm253, %v284, %v285
      %v287 = vrot.slane %v219, 1
      %v288 = vsel %vm253, %v285, %v287
      %v289 = vrot.slane %v220, 1
      %v290 = vrot.slane %v221, 1
      %v291 = vsel %vm253, %v289, %v290
      %v292 = vrot.slane %v222, 1
      %v293 = vsel %vm253, %v290, %v292
      %vm294 = vcmask 1045504
      %v295 = vrot.slane %v199, 2
      %v296 = vrot.slane %v200, 2
      %v297 = vsel %vm294, %v295, %v296
      %v298 = vrot.slane %v201, 2
      %v299 = vsel %vm294, %v296, %v298
      %v300 = vrot.slane %v202, 2
      %v301 = vrot.slane %v203, 2
      %v302 = vsel %vm294, %v300, %v301
      %v303 = vrot.slane %v204, 2
      %v304 = vsel %vm294, %v301, %v303
      %v305 = vrot.slane %v205, 2
      %v306 = vrot.slane %v206, 2
      %v307 = vsel %vm294, %v305, %v306
      %v308 = vrot.slane %v207, 2
      %v309 = vsel %vm294, %v306, %v308
      %v310 = vrot.slane %v208, 2
      %v311 = vrot.slane %v209, 2
      %v312 = vsel %vm294, %v310, %v311
      %v313 = vrot.slane %v210, 2
      %v314 = vsel %vm294, %v311, %v313
      %v315 = vrot.slane %v211, 2
      %v316 = vrot.slane %v212, 2
      %v317 = vsel %vm294, %v315, %v316
      %v318 = vrot.slane %v213, 2
      %v319 = vsel %vm294, %v316, %v318
      %v320 = vrot.slane %v214, 2
      %v321 = vrot.slane %v215, 2
      %v322 = vsel %vm294, %v320, %v321
      %v323 = vrot.slane %v216, 2
      %v324 = vsel %vm294, %v321, %v323
      %v325 = vrot.slane %v217, 2
      %v326 = vrot.slane %v218, 2
      %v327 = vsel %vm294, %v325, %v326
      %v328 = vrot.slane %v219, 2
      %v329 = vsel %vm294, %v326, %v328
      %v330 = vrot.slane %v220, 2
      %v331 = vrot.slane %v221, 2
      %v332 = vsel %vm294, %v330, %v331
      %v333 = vrot.slane %v222, 2
      %v334 = vsel %vm294, %v331, %v333
      %v338 = vrot.slane %v223, 1
      %v339 = vrot.slane %v224, 1
      %v340 = vsel %vm253, %v338, %v339
      %v341 = vrot.slane %v225, 1
      %v342 = vsel %vm253, %v339, %v341
      %v343 = vrot.slane %v223, 2
      %v344 = vrot.slane %v224, 2
      %v345 = vsel %vm294, %v343, %v344
      %v346 = vrot.slane %v225, 2
      %v347 = vsel %vm294, %v344, %v346
      %v351 = vrot.slane %v226, 1
      %v352 = vrot.slane %v227, 1
      %v353 = vsel %vm253, %v351, %v352
      %v354 = vrot.slane %v228, 1
      %v355 = vsel %vm253, %v352, %v354
      %v356 = vrot.slane %v226, 2
      %v357 = vrot.slane %v227, 2
      %v358 = vsel %vm294, %v356, %v357
      %v359 = vrot.slane %v228, 2
      %v360 = vsel %vm294, %v357, %v359
      %361 = vrot.lane.b32.xlu0 %v256, 4
      %v362 = vpop.permute.xlu0 %361
      %363 = vrot.lane.b32.xlu0 %v258, 4
      %v364 = vpop.permute.xlu0 %363
      %365 = vrot.lane.b32.xlu0 %v261, 4
      %v366 = vpop.permute.xlu0 %365
      %367 = vrot.lane.b32.xlu0 %v263, 4
      %v368 = vpop.permute.xlu0 %367
      %369 = vrot.lane.b32.xlu0 %v266, 4
      %v370 = vpop.permute.xlu0 %369
      %371 = vrot.lane.b32.xlu0 %v268, 4
      %v372 = vpop.permute.xlu0 %371
      %373 = vrot.lane.b32.xlu0 %v271, 4
      %v374 = vpop.permute.xlu0 %373
      %375 = vrot.lane.b32.xlu0 %v273, 4
      %v376 = vpop.permute.xlu0 %375
      %377 = vrot.lane.b32.xlu0 %v276, 4
      %v378 = vpop.permute.xlu0 %377
      %379 = vrot.lane.b32.xlu0 %v278, 4
      %v380 = vpop.permute.xlu0 %379
      %381 = vrot.lane.b32.xlu0 %v281, 4
      %v382 = vpop.permute.xlu0 %381
      %383 = vrot.lane.b32.xlu0 %v283, 4
      %v384 = vpop.permute.xlu0 %383
      %385 = vrot.lane.b32.xlu0 %v286, 4
      %v386 = vpop.permute.xlu0 %385
      %387 = vrot.lane.b32.xlu0 %v288, 4
      %v388 = vpop.permute.xlu0 %387
      %389 = vrot.lane.b32.xlu0 %v291, 4
      %v390 = vpop.permute.xlu0 %389
      %391 = vrot.lane.b32.xlu0 %v293, 4
      %v392 = vpop.permute.xlu0 %391
      %409 = vrot.lane.b32.xlu0 %v297, 8
      %v410 = vpop.permute.xlu0 %409
      %411 = vrot.lane.b32.xlu0 %v299, 8
      %v412 = vpop.permute.xlu0 %411
      %413 = vrot.lane.b32.xlu0 %v302, 8
      %v414 = vpop.permute.xlu0 %413
      %415 = vrot.lane.b32.xlu0 %v304, 8
      %v416 = vpop.permute.xlu0 %415
      %417 = vrot.lane.b32.xlu0 %v307, 8
      %v418 = vpop.permute.xlu0 %417
      %419 = vrot.lane.b32.xlu0 %v309, 8
      %v420 = vpop.permute.xlu0 %419
      %421 = vrot.lane.b32.xlu0 %v312, 8
      %v422 = vpop.permute.xlu0 %421
      %423 = vrot.lane.b32.xlu0 %v314, 8
      %v424 = vpop.permute.xlu0 %423
      %425 = vrot.lane.b32.xlu0 %v317, 8
      %v426 = vpop.permute.xlu0 %425
      %427 = vrot.lane.b32.xlu0 %v319, 8
      %v428 = vpop.permute.xlu0 %427
      %429 = vrot.lane.b32.xlu0 %v322, 8
      %v430 = vpop.permute.xlu0 %429
      %431 = vrot.lane.b32.xlu0 %v324, 8
      %v432 = vpop.permute.xlu0 %431
      %433 = vrot.lane.b32.xlu0 %v327, 8
      %v434 = vpop.permute.xlu0 %433
      %435 = vrot.lane.b32.xlu0 %v329, 8
      %v436 = vpop.permute.xlu0 %435
      %437 = vrot.lane.b32.xlu0 %v332, 8
      %v438 = vpop.permute.xlu0 %437
      %439 = vrot.lane.b32.xlu0 %v334, 8
      %v440 = vpop.permute.xlu0 %439
      %457 = vrot.lane.b32.xlu0 %v202, 12
      %v458 = vpop.permute.xlu0 %457
      %459 = vrot.lane.b32.xlu0 %v203, 12
      %v460 = vpop.permute.xlu0 %459
      %461 = vrot.lane.b32.xlu0 %v205, 12
      %v462 = vpop.permute.xlu0 %461
      %463 = vrot.lane.b32.xlu0 %v206, 12
      %v464 = vpop.permute.xlu0 %463
      %465 = vrot.lane.b32.xlu0 %v208, 12
      %v466 = vpop.permute.xlu0 %465
      %467 = vrot.lane.b32.xlu0 %v209, 12
      %v468 = vpop.permute.xlu0 %467
      %469 = vrot.lane.b32.xlu0 %v211, 12
      %v470 = vpop.permute.xlu0 %469
      %471 = vrot.lane.b32.xlu0 %v212, 12
      %v472 = vpop.permute.xlu0 %471
      %473 = vrot.lane.b32.xlu0 %v214, 12
      %v474 = vpop.permute.xlu0 %473
      %475 = vrot.lane.b32.xlu0 %v215, 12
      %v476 = vpop.permute.xlu0 %475
      %477 = vrot.lane.b32.xlu0 %v217, 12
      %v478 = vpop.permute.xlu0 %477
      %479 = vrot.lane.b32.xlu0 %v218, 12
      %v480 = vpop.permute.xlu0 %479
      %481 = vrot.lane.b32.xlu0 %v220, 12
      %v482 = vpop.permute.xlu0 %481
      %483 = vrot.lane.b32.xlu0 %v221, 12
      %v484 = vpop.permute.xlu0 %483
      %485 = vrot.lane.b32.xlu0 %v223, 12
      %v486 = vpop.permute.xlu0 %485
      %487 = vrot.lane.b32.xlu0 %v224, 12
      %v488 = vpop.permute.xlu0 %487
      %505 = vrot.lane.b32.xlu0 %v261, 16
      %v506 = vpop.permute.xlu0 %505
      %507 = vrot.lane.b32.xlu0 %v263, 16
      %v508 = vpop.permute.xlu0 %507
      %509 = vrot.lane.b32.xlu0 %v266, 16
      %v510 = vpop.permute.xlu0 %509
      %511 = vrot.lane.b32.xlu0 %v268, 16
      %v512 = vpop.permute.xlu0 %511
      %513 = vrot.lane.b32.xlu0 %v271, 16
      %v514 = vpop.permute.xlu0 %513
      %515 = vrot.lane.b32.xlu0 %v273, 16
      %v516 = vpop.permute.xlu0 %515
      %517 = vrot.lane.b32.xlu0 %v276, 16
      %v518 = vpop.permute.xlu0 %517
      %519 = vrot.lane.b32.xlu0 %v278, 16
      %v520 = vpop.permute.xlu0 %519
      %521 = vrot.lane.b32.xlu0 %v281, 16
      %v522 = vpop.permute.xlu0 %521
      %523 = vrot.lane.b32.xlu0 %v283, 16
      %v524 = vpop.permute.xlu0 %523
      %525 = vrot.lane.b32.xlu0 %v286, 16
      %v526 = vpop.permute.xlu0 %525
      %527 = vrot.lane.b32.xlu0 %v288, 16
      %v528 = vpop.permute.xlu0 %527
      %529 = vrot.lane.b32.xlu0 %v291, 16
      %v530 = vpop.permute.xlu0 %529
      %531 = vrot.lane.b32.xlu0 %v293, 16
      %v532 = vpop.permute.xlu0 %531
      %533 = vrot.lane.b32.xlu0 %v340, 16
      %v534 = vpop.permute.xlu0 %533
      %535 = vrot.lane.b32.xlu0 %v342, 16
      %v536 = vpop.permute.xlu0 %535
      %553 = vrot.lane.b32.xlu0 %v302, 20
      %v554 = vpop.permute.xlu0 %553
      %555 = vrot.lane.b32.xlu0 %v304, 20
      %v556 = vpop.permute.xlu0 %555
      %557 = vrot.lane.b32.xlu0 %v307, 20
      %v558 = vpop.permute.xlu0 %557
      %559 = vrot.lane.b32.xlu0 %v309, 20
      %v560 = vpop.permute.xlu0 %559
      %561 = vrot.lane.b32.xlu0 %v312, 20
      %v562 = vpop.permute.xlu0 %561
      %563 = vrot.lane.b32.xlu0 %v314, 20
      %v564 = vpop.permute.xlu0 %563
      %565 = vrot.lane.b32.xlu0 %v317, 20
      %v566 = vpop.permute.xlu0 %565
      %567 = vrot.lane.b32.xlu0 %v319, 20
      %v568 = vpop.permute.xlu0 %567
      %569 = vrot.lane.b32.xlu0 %v322, 20
      %v570 = vpop.permute.xlu0 %569
      %571 = vrot.lane.b32.xlu0 %v324, 20
      %v572 = vpop.permute.xlu0 %571
      %573 = vrot.lane.b32.xlu0 %v327, 20
      %v574 = vpop.permute.xlu0 %573
      %575 = vrot.lane.b32.xlu0 %v329, 20
      %v576 = vpop.permute.xlu0 %575
      %577 = vrot.lane.b32.xlu0 %v332, 20
      %v578 = vpop.permute.xlu0 %577
      %579 = vrot.lane.b32.xlu0 %v334, 20
      %v580 = vpop.permute.xlu0 %579
      %581 = vrot.lane.b32.xlu0 %v345, 20
      %v582 = vpop.permute.xlu0 %581
      %583 = vrot.lane.b32.xlu0 %v347, 20
      %v584 = vpop.permute.xlu0 %583
      %601 = vrot.lane.b32.xlu0 %v205, 24
      %v602 = vpop.permute.xlu0 %601
      %603 = vrot.lane.b32.xlu0 %v206, 24
      %v604 = vpop.permute.xlu0 %603
      %605 = vrot.lane.b32.xlu0 %v208, 24
      %v606 = vpop.permute.xlu0 %605
      %607 = vrot.lane.b32.xlu0 %v209, 24
      %v608 = vpop.permute.xlu0 %607
      %609 = vrot.lane.b32.xlu0 %v211, 24
      %v610 = vpop.permute.xlu0 %609
      %611 = vrot.lane.b32.xlu0 %v212, 24
      %v612 = vpop.permute.xlu0 %611
      %613 = vrot.lane.b32.xlu0 %v214, 24
      %v614 = vpop.permute.xlu0 %613
      %615 = vrot.lane.b32.xlu0 %v215, 24
      %v616 = vpop.permute.xlu0 %615
      %617 = vrot.lane.b32.xlu0 %v217, 24
      %v618 = vpop.permute.xlu0 %617
      %619 = vrot.lane.b32.xlu0 %v218, 24
      %v620 = vpop.permute.xlu0 %619
      %621 = vrot.lane.b32.xlu0 %v220, 24
      %v622 = vpop.permute.xlu0 %621
      %623 = vrot.lane.b32.xlu0 %v221, 24
      %v624 = vpop.permute.xlu0 %623
      %625 = vrot.lane.b32.xlu0 %v223, 24
      %v626 = vpop.permute.xlu0 %625
      %627 = vrot.lane.b32.xlu0 %v224, 24
      %v628 = vpop.permute.xlu0 %627
      %629 = vrot.lane.b32.xlu0 %v226, 24
      %v630 = vpop.permute.xlu0 %629
      %631 = vrot.lane.b32.xlu0 %v227, 24
      %v632 = vpop.permute.xlu0 %631
      %649 = vrot.lane.b32.xlu0 %v266, 28
      %v650 = vpop.permute.xlu0 %649
      %651 = vrot.lane.b32.xlu0 %v268, 28
      %v652 = vpop.permute.xlu0 %651
      %653 = vrot.lane.b32.xlu0 %v271, 28
      %v654 = vpop.permute.xlu0 %653
      %655 = vrot.lane.b32.xlu0 %v273, 28
      %v656 = vpop.permute.xlu0 %655
      %657 = vrot.lane.b32.xlu0 %v276, 28
      %v658 = vpop.permute.xlu0 %657
      %659 = vrot.lane.b32.xlu0 %v278, 28
      %v660 = vpop.permute.xlu0 %659
      %661 = vrot.lane.b32.xlu0 %v281, 28
      %v662 = vpop.permute.xlu0 %661
      %663 = vrot.lane.b32.xlu0 %v283, 28
      %v664 = vpop.permute.xlu0 %663
      %665 = vrot.lane.b32.xlu0 %v286, 28
      %v666 = vpop.permute.xlu0 %665
      %667 = vrot.lane.b32.xlu0 %v288, 28
      %v668 = vpop.permute.xlu0 %667
      %669 = vrot.lane.b32.xlu0 %v291, 28
      %v670 = vpop.permute.xlu0 %669
      %671 = vrot.lane.b32.xlu0 %v293, 28
      %v672 = vpop.permute.xlu0 %671
      %673 = vrot.lane.b32.xlu0 %v340, 28
      %v674 = vpop.permute.xlu0 %673
      %675 = vrot.lane.b32.xlu0 %v342, 28
      %v676 = vpop.permute.xlu0 %675
      %677 = vrot.lane.b32.xlu0 %v353, 28
      %v678 = vpop.permute.xlu0 %677
      %679 = vrot.lane.b32.xlu0 %v355, 28
      %v680 = vpop.permute.xlu0 %679
      %697 = vrot.lane.b32.xlu0 %v307, 32
      %v698 = vpop.permute.xlu0 %697
      %699 = vrot.lane.b32.xlu0 %v309, 32
      %v700 = vpop.permute.xlu0 %699
      %701 = vrot.lane.b32.xlu0 %v312, 32
      %v702 = vpop.permute.xlu0 %701
      %703 = vrot.lane.b32.xlu0 %v314, 32
      %v704 = vpop.permute.xlu0 %703
      %705 = vrot.lane.b32.xlu0 %v317, 32
      %v706 = vpop.permute.xlu0 %705
      %707 = vrot.lane.b32.xlu0 %v319, 32
      %v708 = vpop.permute.xlu0 %707
      %709 = vrot.lane.b32.xlu0 %v322, 32
      %v710 = vpop.permute.xlu0 %709
      %711 = vrot.lane.b32.xlu0 %v324, 32
      %v712 = vpop.permute.xlu0 %711
      %713 = vrot.lane.b32.xlu0 %v327, 32
      %v714 = vpop.permute.xlu0 %713
      %715 = vrot.lane.b32.xlu0 %v329, 32
      %v716 = vpop.permute.xlu0 %715
      %717 = vrot.lane.b32.xlu0 %v332, 32
      %v718 = vpop.permute.xlu0 %717
      %719 = vrot.lane.b32.xlu0 %v334, 32
      %v720 = vpop.permute.xlu0 %719
      %721 = vrot.lane.b32.xlu0 %v345, 32
      %v722 = vpop.permute.xlu0 %721
      %723 = vrot.lane.b32.xlu0 %v347, 32
      %v724 = vpop.permute.xlu0 %723
      %725 = vrot.lane.b32.xlu0 %v358, 32
      %v726 = vpop.permute.xlu0 %725
      %727 = vrot.lane.b32.xlu0 %v360, 32
      %v728 = vpop.permute.xlu0 %727
      %vm745 = vcmask 31744
      %v746 = vsel %vm745, %v199, %v362
      %v747 = vsel %vm745, %v200, %v364
      %v748 = vsel %vm745, %v202, %v366
      %v749 = vsel %vm745, %v203, %v368
      %v750 = vsel %vm745, %v205, %v370
      %v751 = vsel %vm745, %v206, %v372
      %v752 = vsel %vm745, %v208, %v374
      %v753 = vsel %vm745, %v209, %v376
      %v754 = vsel %vm745, %v211, %v378
      %v755 = vsel %vm745, %v212, %v380
      %v756 = vsel %vm745, %v214, %v382
      %v757 = vsel %vm745, %v215, %v384
      %v758 = vsel %vm745, %v217, %v386
      %v759 = vsel %vm745, %v218, %v388
      %v760 = vsel %vm745, %v220, %v390
      %v761 = vsel %vm745, %v221, %v392
      %vm762 = vcmask 64512
      %v763 = vsel %vm762, %v746, %v410
      %v764 = vsel %vm762, %v747, %v412
      %v765 = vsel %vm762, %v748, %v414
      %v766 = vsel %vm762, %v749, %v416
      %v767 = vsel %vm762, %v750, %v418
      %v768 = vsel %vm762, %v751, %v420
      %v769 = vsel %vm762, %v752, %v422
      %v770 = vsel %vm762, %v753, %v424
      %v771 = vsel %vm762, %v754, %v426
      %v772 = vsel %vm762, %v755, %v428
      %v773 = vsel %vm762, %v756, %v430
      %v774 = vsel %vm762, %v757, %v432
      %v775 = vsel %vm762, %v758, %v434
      %v776 = vsel %vm762, %v759, %v436
      %v777 = vsel %vm762, %v760, %v438
      %v778 = vsel %vm762, %v761, %v440
      %vm779 = vcmask 97280
      %v780 = vsel %vm779, %v763, %v458
      %v781 = vsel %vm779, %v764, %v460
      %v782 = vsel %vm779, %v765, %v462
      %v783 = vsel %vm779, %v766, %v464
      %v784 = vsel %vm779, %v767, %v466
      %v785 = vsel %vm779, %v768, %v468
      %v786 = vsel %vm779, %v769, %v470
      %v787 = vsel %vm779, %v770, %v472
      %v788 = vsel %vm779, %v771, %v474
      %v789 = vsel %vm779, %v772, %v476
      %v790 = vsel %vm779, %v773, %v478
      %v791 = vsel %vm779, %v774, %v480
      %v792 = vsel %vm779, %v775, %v482
      %v793 = vsel %vm779, %v776, %v484
      %v794 = vsel %vm779, %v777, %v486
      %v795 = vsel %vm779, %v778, %v488
      %vm796 = vcmask 130048
      %v797 = vsel %vm796, %v780, %v506
      %v798 = vsel %vm796, %v781, %v508
      %v799 = vsel %vm796, %v782, %v510
      %v800 = vsel %vm796, %v783, %v512
      %v801 = vsel %vm796, %v784, %v514
      %v802 = vsel %vm796, %v785, %v516
      %v803 = vsel %vm796, %v786, %v518
      %v804 = vsel %vm796, %v787, %v520
      %v805 = vsel %vm796, %v788, %v522
      %v806 = vsel %vm796, %v789, %v524
      %v807 = vsel %vm796, %v790, %v526
      %v808 = vsel %vm796, %v791, %v528
      %v809 = vsel %vm796, %v792, %v530
      %v810 = vsel %vm796, %v793, %v532
      %v811 = vsel %vm796, %v794, %v534
      %v812 = vsel %vm796, %v795, %v536
      %vm813 = vcmask 162816
      %v814 = vsel %vm813, %v797, %v554
      %v815 = vsel %vm813, %v798, %v556
      %v816 = vsel %vm813, %v799, %v558
      %v817 = vsel %vm813, %v800, %v560
      %v818 = vsel %vm813, %v801, %v562
      %v819 = vsel %vm813, %v802, %v564
      %v820 = vsel %vm813, %v803, %v566
      %v821 = vsel %vm813, %v804, %v568
      %v822 = vsel %vm813, %v805, %v570
      %v823 = vsel %vm813, %v806, %v572
      %v824 = vsel %vm813, %v807, %v574
      %v825 = vsel %vm813, %v808, %v576
      %v826 = vsel %vm813, %v809, %v578
      %v827 = vsel %vm813, %v810, %v580
      %v828 = vsel %vm813, %v811, %v582
      %v829 = vsel %vm813, %v812, %v584
      %vm830 = vcmask 195584
      %v831 = vsel %vm830, %v814, %v602
      %v832 = vsel %vm830, %v815, %v604
      %v833 = vsel %vm830, %v816, %v606
      %v834 = vsel %vm830, %v817, %v608
      %v835 = vsel %vm830, %v818, %v610
      %v836 = vsel %vm830, %v819, %v612
      %v837 = vsel %vm830, %v820, %v614
      %v838 = vsel %vm830, %v821, %v616
      %v839 = vsel %vm830, %v822, %v618
      %v840 = vsel %vm830, %v823, %v620
      %v841 = vsel %vm830, %v824, %v622
      %v842 = vsel %vm830, %v825, %v624
      %v843 = vsel %vm830, %v826, %v626
      %v844 = vsel %vm830, %v827, %v628
      %v845 = vsel %vm830, %v828, %v630
      %v846 = vsel %vm830, %v829, %v632
      %vm847 = vcmask 228352
      %v848 = vsel %vm847, %v831, %v650
      %v849 = vsel %vm847, %v832, %v652
      %v850 = vsel %vm847, %v833, %v654
      %v851 = vsel %vm847, %v834, %v656
      %v852 = vsel %vm847, %v835, %v658
      %v853 = vsel %vm847, %v836, %v660
      %v854 = vsel %vm847, %v837, %v662
      %v855 = vsel %vm847, %v838, %v664
      %v856 = vsel %vm847, %v839, %v666
      %v857 = vsel %vm847, %v840, %v668
      %v858 = vsel %vm847, %v841, %v670
      %v859 = vsel %vm847, %v842, %v672
      %v860 = vsel %vm847, %v843, %v674
      %v861 = vsel %vm847, %v844, %v676
      %v862 = vsel %vm847, %v845, %v678
      %v863 = vsel %vm847, %v846, %v680
      %vm864 = vcmask 261120
      %v865 = vsel %vm864, %v848, %v698
      %v866 = vsel %vm864, %v849, %v700
      %v867 = vsel %vm864, %v850, %v702
      %v868 = vsel %vm864, %v851, %v704
      %v869 = vsel %vm864, %v852, %v706
      %v870 = vsel %vm864, %v853, %v708
      %v871 = vsel %vm864, %v854, %v710
      %v872 = vsel %vm864, %v855, %v712
      %v873 = vsel %vm864, %v856, %v714
      %v874 = vsel %vm864, %v857, %v716
      %v875 = vsel %vm864, %v858, %v718
      %v876 = vsel %vm864, %v859, %v720
      %v877 = vsel %vm864, %v860, %v722
      %v878 = vsel %vm864, %v861, %v724
      %v879 = vsel %vm864, %v862, %v726
      %v880 = vsel %vm864, %v863, %v728
      %v881 = vld [vmem:[%s1] sm:$0xff]
      %v882 = vld [vmem:[%s1 + $0x8] sm:$0xff]
      %v883 = vld [vmem:[%s1 + $0x10] sm:$0xff]
      %v884 = vld [vmem:[%s1 + $0x18] sm:$0xff]
      %v885 = vld [vmem:[%s1 + $0x20] sm:$0xf]
      %v886 = vld [vmem:[%s2] sm:$0x1]
      %v888 = vlaneseq
      %v889 = vshrl.u32 %v888, 7
      %v890 = vsub.s32 0, %v889
      %v891 = vrot.slane %v886, %v890
      %vm893 = vcmask 293888
      %v895 = vsel %vm893, %v865, 0
      %v898 = vsel %vm893, %v866, 0
      %v901 = vsel %vm893, %v867, 0
      %v904 = vsel %vm893, %v868, 0
      %v907 = vsel %vm893, %v869, 0
      %v910 = vsel %vm893, %v870, 0
      %v913 = vsel %vm893, %v871, 0
      %v916 = vsel %vm893, %v872, 0
      %v919 = vsel %vm893, %v873, 0
      %v922 = vsel %vm893, %v874, 0
      %v925 = vsel %vm893, %v875, 0
      %v928 = vsel %vm893, %v876, 0
      %v931 = vsel %vm893, %v877, 0
      %v934 = vsel %vm893, %v878, 0
      %v937 = vsel %vm893, %v879, 0
      %v940 = vsel %vm893, %v880, 0
      %vm942 = vcmask 1043456
      %v944 = vsel %vm942, %v885, 0
      %946 = vmatprep.subr.mxu0 0.0
      %947 = vmatpush1.msra.mxu0 %v881
      %948 = vmatprep.subr.mxu0 0.0
      %949 = vmatpush1.msra.mxu0 %v882
      %950 = vmatprep.subr.mxu0 0.0
      %951 = vmatpush1.msra.mxu0 %v883
      %952 = vmatprep.subr.mxu0 0.0
      %953 = vmatpush1.msra.mxu0 %v884
      %954 = vmatprep.subr.mxu0 0.0
      %955 = vmatpush1.msra.mxu0 %v944
      %956 = vmatprep.subr.mxu0 0.0
      %957 = vmatpush1.msra.mxu0 0.0
      %958 = vmatprep.subr.mxu0 0.0
      %959 = vmatpush1.msra.mxu0 0.0
      %960 = vmatprep.subr.mxu0 0.0
      %961 = vmatpush1.msra.mxu0 0.0
      %962 = vmatprep.subr.mxu0 0.0
      %963 = vmatpush1.msra.mxu0 0.0
      %964 = vmatprep.subr.mxu0 0.0
      %965 = vmatpush1.msra.mxu0 0.0
      %966 = vmatprep.subr.mxu0 0.0
      %967 = vmatpush1.msra.mxu0 0.0
      %968 = vmatprep.subr.mxu0 0.0
      %969 = vmatpush1.msra.mxu0 0.0
      %970 = vmatprep.subr.mxu0 0.0
      %971 = vmatpush1.msra.mxu0 0.0
      %972 = vmatprep.subr.mxu0 0.0
      %973 = vmatpush1.msra.mxu0 0.0
      %974 = vmatprep.subr.mxu0 0.0
      %975 = vmatpush1.msra.mxu0 0.0
      %976 = vmatprep.subr.mxu0 0.0
      %977 = vmatpush1.msra.mxu0 0.0
      %978 = vmatprep.subr.mxu0 0.0
      %979 = vmatpush1.msra.mxu0 0.0
      %980 = vmatprep.subr.mxu0 0.0
      %981 = vmatpush1.msra.mxu0 0.0
      %982 = vmatprep.subr.mxu0 0.0
      %983 = vmatpush1.msra.mxu0 0.0
      %984 = vmatprep.subr.mxu0 0.0
      %985 = vmatpush1.msra.mxu0 0.0
      %986 = vmatprep.subr.mxu0 0.0
      %987 = vmatpush1.msra.mxu0 0.0
      %988 = vmatprep.subr.mxu0 0.0
      %989 = vmatpush1.msra.mxu0 0.0
      %990 = vmatprep.subr.mxu0 0.0
      %991 = vmatpush1.msra.mxu0 0.0
      %992 = vmatprep.subr.mxu0 0.0
      %993 = vmatpush1.msra.mxu0 0.0
      %994 = vmatprep.subr.mxu0 0.0
      %995 = vmatpush1.msra.mxu0 0.0
      %996 = vmatprep.subr.mxu0 0.0
      %997 = vmatpush1.msra.mxu0 0.0
      %998 = vmatprep.subr.mxu0 0.0
      %999 = vmatpush1.msra.mxu0 0.0
      %1000 = vmatprep.subr.mxu0 0.0
      %1001 = vmatpush1.msra.mxu0 0.0
      %1002 = vmatprep.subr.mxu0 0.0
      %1003 = vmatpush1.msra.mxu0 0.0
      %1004 = vmatprep.subr.mxu0 0.0
      %1005 = vmatpush1.msra.mxu0 0.0
      %1006 = vmatprep.subr.mxu0 0.0
      %1007 = vmatpush1.msra.mxu0 0.0
      %1008 = vmatprep.subr.mxu0 0.0
      %1009 = vmatpush1.msra.mxu0 0.0
      %1010 = vmatprep.mubr.f32.mxu0 0.0
      %1011 = vmatmul.mubr.f32.gmra.mrb[0].mxu0 %v895
      %v1012 = vpop.f32.mrb[0].mxu0
      %v1013 = vadd.f32 %v891, %v1012
      %v1014 = vpop.f32.mrb[0].mxu0
      %1015 = vmatprep.mubr.f32.mxu0 0.0
      %1016 = vmatmul.mubr.f32.gmra.mrb[0].mxu0 %v898
      %v1017 = vpop.f32.mrb[0].mxu0
      %v1018 = vadd.f32 %v891, %v1017
      %v1019 = vpop.f32.mrb[0].mxu0
      %1020 = vmatprep.mubr.f32.mxu0 0.0
      %1021 = vmatmul.mubr.f32.gmra.mrb[0].mxu0 %v901
      %v1022 = vpop.f32.mrb[0].mxu0
      %v1023 = vadd.f32 %v891, %v1022
      %v1024 = vpop.f32.mrb[0].mxu0
      %1025 = vmatprep.mubr.f32.mxu0 0.0
      %1026 = vmatmul.mubr.f32.gmra.mrb[0].mxu0 %v904
      %v1027 = vpop.f32.mrb[0].mxu0
      %v1028 = vadd.f32 %v891, %v1027
      %v1029 = vpop.f32.mrb[0].mxu0
      %1030 = vmatprep.mubr.f32.mxu0 0.0
      %1031 = vmatmul.mubr.f32.gmra.mrb[0].mxu0 %v907
      %v1032 = vpop.f32.mrb[0].mxu0
      %v1033 = vadd.f32 %v891, %v1032
      %v1034 = vpop.f32.mrb[0].mxu0
      %1035 = vmatprep.mubr.f32.mxu0 0.0
      %1036 = vmatmul.mubr.f32.gmra.mrb[0].mxu0 %v910
      %v1037 = vpop.f32.mrb[0].mxu0
      %v1038 = vadd.f32 %v891, %v1037
      %v1039 = vpop.f32.mrb[0].mxu0
      %1040 = vmatprep.mubr.f32.mxu0 0.0
      %1041 = vmatmul.mubr.f32.gmra.mrb[0].mxu0 %v913
      %v1042 = vpop.f32.mrb[0].mxu0
      %v1043 = vadd.f32 %v891, %v1042
      %v1044 = vpop.f32.mrb[0].mxu0
      %1045 = vmatprep.mubr.f32.mxu0 0.0
      %1046 = vmatmul.mubr.f32.gmra.mrb[0].mxu0 %v916
      %v1047 = vpop.f32.mrb[0].mxu0
      %v1048 = vadd.f32 %v891, %v1047
      %v1049 = vpop.f32.mrb[0].mxu0
      %1050 = vmatprep.mubr.f32.mxu0 0.0
      %1051 = vmatmul.mubr.f32.gmra.mrb[0].mxu0 %v919
      %v1052 = vpop.f32.mrb[0].mxu0
      %v1053 = vadd.f32 %v891, %v1052
      %v1054 = vpop.f32.mrb[0].mxu0
      %1055 = vmatprep.mubr.f32.mxu0 0.0
      %1056 = vmatmul.mubr.f32.gmra.mrb[0].mxu0 %v922
      %v1057 = vpop.f32.mrb[0].mxu0
      %v1058 = vadd.f32 %v891, %v1057
      %v1059 = vpop.f32.mrb[0].mxu0
      %1060 = vmatprep.mubr.f32.mxu0 0.0
      %1061 = vmatmul.mubr.f32.gmra.mrb[0].mxu0 %v925
      %v1062 = vpop.f32.mrb[0].mxu0
      %v1063 = vadd.f32 %v891, %v1062
      %v1064 = vpop.f32.mrb[0].mxu0
      %1065 = vmatprep.mubr.f32.mxu0 0.0
      %1066 = vmatmul.mubr.f32.gmra.mrb[0].mxu0 %v928
      %v1067 = vpop.f32.mrb[0].mxu0
      %v1068 = vadd.f32 %v891, %v1067
      %v1069 = vpop.f32.mrb[0].mxu0
      %1070 = vmatprep.mubr.f32.mxu0 0.0
      %1071 = vmatmul.mubr.f32.gmra.mrb[0].mxu0 %v931
      %v1072 = vpop.f32.mrb[0].mxu0
      %v1073 = vadd.f32 %v891, %v1072
      %v1074 = vpop.f32.mrb[0].mxu0
      %1075 = vmatprep.mubr.f32.mxu0 0.0
      %1076 = vmatmul.mubr.f32.gmra.mrb[0].mxu0 %v934
      %v1077 = vpop.f32.mrb[0].mxu0
      %v1078 = vadd.f32 %v891, %v1077
      %v1079 = vpop.f32.mrb[0].mxu0
      %1080 = vmatprep.mubr.f32.mxu0 0.0
      %1081 = vmatmul.mubr.f32.gmra.mrb[0].mxu0 %v937
      %v1082 = vpop.f32.mrb[0].mxu0
      %v1083 = vadd.f32 %v891, %v1082
      %v1084 = vpop.f32.mrb[0].mxu0
      %1085 = vmatprep.mubr.f32.mxu0 0.0
      %1086 = vmatmul.mubr.f32.gmra.mrb[0].mxu0 %v940
      %v1087 = vpop.f32.mrb[0].mxu0
      %v1088 = vadd.f32 %v891, %v1087
      %v1089 = vpop.f32.mrb[0].mxu0
      %1090 = vdwg.mxu0
      %v1107 = vcombine.high %v1013, %v1013
      %v1109 = vunpack.c.l.s4 1966171168
      %v1110 = vunpack.c.0.s8 %v1109
      %v1111 = vlaneseq
      %v1112 = vshrl.u32 %v1111, 7
      %v1113 = vsub.s32 %v1110, %v1112
      %v1114 = vrot.slane %v1013, %v1113
      %v1116 = vunpack.c.l.s4 1966171168
      %v1117 = vunpack.c.0.s8 %v1116
      %v1118 = vlaneseq
      %v1119 = vshrl.u32 %v1118, 7
      %v1120 = vsub.s32 %v1117, %v1119
      %v1121 = vrot.slane %v1107, %v1120
      %v1122 = vcombine.high %v1114, %v1114
      %v1123 = vcombine.high %v1121, %v1121
      %v1125 = vunpack.c.l.s4 1966171168
      %v1126 = vunpack.c.0.s8 %v1125
      %v1127 = vlaneseq
      %v1128 = vshrl.u32 %v1127, 7
      %v1129 = vsub.s32 %v1126, %v1128
      %v1130 = vrot.slane %v1114, %v1129
      %v1132 = vunpack.c.l.s4 1966171168
      %v1133 = vunpack.c.0.s8 %v1132
      %v1134 = vlaneseq
      %v1135 = vshrl.u32 %v1134, 7
      %v1136 = vsub.s32 %v1133, %v1135
      %v1137 = vrot.slane %v1121, %v1136
      %v1139 = vunpack.c.l.s4 1966171168
      %v1140 = vunpack.c.0.s8 %v1139
      %v1141 = vlaneseq
      %v1142 = vshrl.u32 %v1141, 7
      %v1143 = vsub.s32 %v1140, %v1142
      %v1144 = vrot.slane %v1122, %v1143
      %v1146 = vunpack.c.l.s4 1966171168
      %v1147 = vunpack.c.0.s8 %v1146
      %v1148 = vlaneseq
      %v1149 = vshrl.u32 %v1148, 7
      %v1150 = vsub.s32 %v1147, %v1149
      %v1151 = vrot.slane %v1123, %v1150
      %v1152 = vcombine.high %v1130, %v1130
      %v1153 = vcombine.high %v1137, %v1137
      %v1154 = vcombine.high %v1144, %v1144
      %v1155 = vcombine.high %v1151, %v1151
      %v1156 = vcombine.high %v1018, %v1018
      %v1158 = vunpack.c.l.s4 1966171168
      %v1159 = vunpack.c.0.s8 %v1158
      %v1160 = vlaneseq
      %v1161 = vshrl.u32 %v1160, 7
      %v1162 = vsub.s32 %v1159, %v1161
      %v1163 = vrot.slane %v1018, %v1162
      %v1165 = vunpack.c.l.s4 1966171168
      %v1166 = vunpack.c.0.s8 %v1165
      %v1167 = vlaneseq
      %v1168 = vshrl.u32 %v1167, 7
      %v1169 = vsub.s32 %v1166, %v1168
      %v1170 = vrot.slane %v1156, %v1169
      %v1171 = vcombine.high %v1163, %v1163
      %v1172 = vcombine.high %v1170, %v1170
      %v1174 = vunpack.c.l.s4 1966171168
      %v1175 = vunpack.c.0.s8 %v1174
      %v1176 = vlaneseq
      %v1177 = vshrl.u32 %v1176, 7
      %v1178 = vsub.s32 %v1175, %v1177
      %v1179 = vrot.slane %v1163, %v1178
      %v1181 = vunpack.c.l.s4 1966171168
      %v1182 = vunpack.c.0.s8 %v1181
      %v1183 = vlaneseq
      %v1184 = vshrl.u32 %v1183, 7
      %v1185 = vsub.s32 %v1182, %v1184
      %v1186 = vrot.slane %v1170, %v1185
      %v1188 = vunpack.c.l.s4 1966171168
      %v1189 = vunpack.c.0.s8 %v1188
      %v1190 = vlaneseq
      %v1191 = vshrl.u32 %v1190, 7
      %v1192 = vsub.s32 %v1189, %v1191
      %v1193 = vrot.slane %v1171, %v1192
      %v1195 = vunpack.c.l.s4 1966171168
      %v1196 = vunpack.c.0.s8 %v1195
      %v1197 = vlaneseq
      %v1198 = vshrl.u32 %v1197, 7
      %v1199 = vsub.s32 %v1196, %v1198
      %v1200 = vrot.slane %v1172, %v1199
      %v1201 = vcombine.high %v1179, %v1179
      %v1202 = vcombine.high %v1186, %v1186
      %v1203 = vcombine.high %v1193, %v1193
      %v1204 = vcombine.high %v1200, %v1200
      %v1205 = vcombine.high %v1023, %v1023
      %v1207 = vunpack.c.l.s4 1966171168
      %v1208 = vunpack.c.0.s8 %v1207
      %v1209 = vlaneseq
      %v1210 = vshrl.u32 %v1209, 7
      %v1211 = vsub.s32 %v1208, %v1210
      %v1212 = vrot.slane %v1023, %v1211
      %v1214 = vunpack.c.l.s4 1966171168
      %v1215 = vunpack.c.0.s8 %v1214
      %v1216 = vlaneseq
      %v1217 = vshrl.u32 %v1216, 7
      %v1218 = vsub.s32 %v1215, %v1217
      %v1219 = vrot.slane %v1205, %v1218
      %v1220 = vcombine.high %v1212, %v1212
      %v1221 = vcombine.high %v1219, %v1219
      %v1223 = vunpack.c.l.s4 1966171168
      %v1224 = vunpack.c.0.s8 %v1223
      %v1225 = vlaneseq
      %v1226 = vshrl.u32 %v1225, 7
      %v1227 = vsub.s32 %v1224, %v1226
      %v1228 = vrot.slane %v1212, %v1227
      %v1230 = vunpack.c.l.s4 1966171168
      %v1231 = vunpack.c.0.s8 %v1230
      %v1232 = vlaneseq
      %v1233 = vshrl.u32 %v1232, 7
      %v1234 = vsub.s32 %v1231, %v1233
      %v1235 = vrot.slane %v1219, %v1234
      %v1237 = vunpack.c.l.s4 1966171168
      %v1238 = vunpack.c.0.s8 %v1237
      %v1239 = vlaneseq
      %v1240 = vshrl.u32 %v1239, 7
      %v1241 = vsub.s32 %v1238, %v1240
      %v1242 = vrot.slane %v1220, %v1241
      %v1244 = vunpack.c.l.s4 1966171168
      %v1245 = vunpack.c.0.s8 %v1244
      %v1246 = vlaneseq
      %v1247 = vshrl.u32 %v1246, 7
      %v1248 = vsub.s32 %v1245, %v1247
      %v1249 = vrot.slane %v1221, %v1248
      %v1250 = vcombine.high %v1228, %v1228
      %v1251 = vcombine.high %v1235, %v1235
      %v1252 = vcombine.high %v1242, %v1242
      %v1253 = vcombine.high %v1249, %v1249
      %v1254 = vcombine.high %v1028, %v1028
      %v1256 = vunpack.c.l.s4 1966171168
      %v1257 = vunpack.c.0.s8 %v1256
      %v1258 = vlaneseq
      %v1259 = vshrl.u32 %v1258, 7
      %v1260 = vsub.s32 %v1257, %v1259
      %v1261 = vrot.slane %v1028, %v1260
      %v1263 = vunpack.c.l.s4 1966171168
      %v1264 = vunpack.c.0.s8 %v1263
      %v1265 = vlaneseq
      %v1266 = vshrl.u32 %v1265, 7
      %v1267 = vsub.s32 %v1264, %v1266
      %v1268 = vrot.slane %v1254, %v1267
      %v1269 = vcombine.high %v1261, %v1261
      %v1270 = vcombine.high %v1268, %v1268
      %v1272 = vunpack.c.l.s4 1966171168
      %v1273 = vunpack.c.0.s8 %v1272
      %v1274 = vlaneseq
      %v1275 = vshrl.u32 %v1274, 7
      %v1276 = vsub.s32 %v1273, %v1275
      %v1277 = vrot.slane %v1261, %v1276
      %v1279 = vunpack.c.l.s4 1966171168
      %v1280 = vunpack.c.0.s8 %v1279
      %v1281 = vlaneseq
      %v1282 = vshrl.u32 %v1281, 7
      %v1283 = vsub.s32 %v1280, %v1282
      %v1284 = vrot.slane %v1268, %v1283
      %v1286 = vunpack.c.l.s4 1966171168
      %v1287 = vunpack.c.0.s8 %v1286
      %v1288 = vlaneseq
      %v1289 = vshrl.u32 %v1288, 7
      %v1290 = vsub.s32 %v1287, %v1289
      %v1291 = vrot.slane %v1269, %v1290
      %v1293 = vunpack.c.l.s4 1966171168
      %v1294 = vunpack.c.0.s8 %v1293
      %v1295 = vlaneseq
      %v1296 = vshrl.u32 %v1295, 7
      %v1297 = vsub.s32 %v1294, %v1296
      %v1298 = vrot.slane %v1270, %v1297
      %v1299 = vcombine.high %v1277, %v1277
      %v1300 = vcombine.high %v1284, %v1284
      %v1301 = vcombine.high %v1291, %v1291
      %v1302 = vcombine.high %v1298, %v1298
      %v1303 = vcombine.high %v1033, %v1033
      %v1305 = vunpack.c.l.s4 1966171168
      %v1306 = vunpack.c.0.s8 %v1305
      %v1307 = vlaneseq
      %v1308 = vshrl.u32 %v1307, 7
      %v1309 = vsub.s32 %v1306, %v1308
      %v1310 = vrot.slane %v1033, %v1309
      %v1312 = vunpack.c.l.s4 1966171168
      %v1313 = vunpack.c.0.s8 %v1312
      %v1314 = vlaneseq
      %v1315 = vshrl.u32 %v1314, 7
      %v1316 = vsub.s32 %v1313, %v1315
      %v1317 = vrot.slane %v1303, %v1316
      %v1318 = vcombine.high %v1310, %v1310
      %v1319 = vcombine.high %v1317, %v1317
      %v1321 = vunpack.c.l.s4 1966171168
      %v1322 = vunpack.c.0.s8 %v1321
      %v1323 = vlaneseq
      %v1324 = vshrl.u32 %v1323, 7
      %v1325 = vsub.s32 %v1322, %v1324
      %v1326 = vrot.slane %v1310, %v1325
      %v1328 = vunpack.c.l.s4 1966171168
      %v1329 = vunpack.c.0.s8 %v1328
      %v1330 = vlaneseq
      %v1331 = vshrl.u32 %v1330, 7
      %v1332 = vsub.s32 %v1329, %v1331
      %v1333 = vrot.slane %v1317, %v1332
      %v1335 = vunpack.c.l.s4 1966171168
      %v1336 = vunpack.c.0.s8 %v1335
      %v1337 = vlaneseq
      %v1338 = vshrl.u32 %v1337, 7
      %v1339 = vsub.s32 %v1336, %v1338
      %v1340 = vrot.slane %v1318, %v1339
      %v1342 = vunpack.c.l.s4 1966171168
      %v1343 = vunpack.c.0.s8 %v1342
      %v1344 = vlaneseq
      %v1345 = vshrl.u32 %v1344, 7
      %v1346 = vsub.s32 %v1343, %v1345
      %v1347 = vrot.slane %v1319, %v1346
      %v1348 = vcombine.high %v1326, %v1326
      %v1349 = vcombine.high %v1333, %v1333
      %v1350 = vcombine.high %v1340, %v1340
      %v1351 = vcombine.high %v1347, %v1347
      %v1352 = vcombine.high %v1038, %v1038
      %v1354 = vunpack.c.l.s4 1966171168
      %v1355 = vunpack.c.0.s8 %v1354
      %v1356 = vlaneseq
      %v1357 = vshrl.u32 %v1356, 7
      %v1358 = vsub.s32 %v1355, %v1357
      %v1359 = vrot.slane %v1038, %v1358
      %v1361 = vunpack.c.l.s4 1966171168
      %v1362 = vunpack.c.0.s8 %v1361
      %v1363 = vlaneseq
      %v1364 = vshrl.u32 %v1363, 7
      %v1365 = vsub.s32 %v1362, %v1364
      %v1366 = vrot.slane %v1352, %v1365
      %v1367 = vcombine.high %v1359, %v1359
      %v1368 = vcombine.high %v1366, %v1366
      %v1370 = vunpack.c.l.s4 1966171168
      %v1371 = vunpack.c.0.s8 %v1370
      %v1372 = vlaneseq
      %v1373 = vshrl.u32 %v1372, 7
      %v1374 = vsub.s32 %v1371, %v1373
      %v1375 = vrot.slane %v1359, %v1374
      %v1377 = vunpack.c.l.s4 1966171168
      %v1378 = vunpack.c.0.s8 %v1377
      %v1379 = vlaneseq
      %v1380 = vshrl.u32 %v1379, 7
      %v1381 = vsub.s32 %v1378, %v1380
      %v1382 = vrot.slane %v1366, %v1381
      %v1384 = vunpack.c.l.s4 1966171168
      %v1385 = vunpack.c.0.s8 %v1384
      %v1386 = vlaneseq
      %v1387 = vshrl.u32 %v1386, 7
      %v1388 = vsub.s32 %v1385, %v1387
      %v1389 = vrot.slane %v1367, %v1388
      %v1391 = vunpack.c.l.s4 1966171168
      %v1392 = vunpack.c.0.s8 %v1391
      %v1393 = vlaneseq
      %v1394 = vshrl.u32 %v1393, 7
      %v1395 = vsub.s32 %v1392, %v1394
      %v1396 = vrot.slane %v1368, %v1395
      %v1397 = vcombine.high %v1375, %v1375
      %v1398 = vcombine.high %v1382, %v1382
      %v1399 = vcombine.high %v1389, %v1389
      %v1400 = vcombine.high %v1396, %v1396
      %v1401 = vcombine.high %v1043, %v1043
      %v1403 = vunpack.c.l.s4 1966171168
      %v1404 = vunpack.c.0.s8 %v1403
      %v1405 = vlaneseq
      %v1406 = vshrl.u32 %v1405, 7
      %v1407 = vsub.s32 %v1404, %v1406
      %v1408 = vrot.slane %v1043, %v1407
      %v1410 = vunpack.c.l.s4 1966171168
      %v1411 = vunpack.c.0.s8 %v1410
      %v1412 = vlaneseq
      %v1413 = vshrl.u32 %v1412, 7
      %v1414 = vsub.s32 %v1411, %v1413
      %v1415 = vrot.slane %v1401, %v1414
      %v1416 = vcombine.high %v1408, %v1408
      %v1417 = vcombine.high %v1415, %v1415
      %v1419 = vunpack.c.l.s4 1966171168
      %v1420 = vunpack.c.0.s8 %v1419
      %v1421 = vlaneseq
      %v1422 = vshrl.u32 %v1421, 7
      %v1423 = vsub.s32 %v1420, %v1422
      %v1424 = vrot.slane %v1408, %v1423
      %v1426 = vunpack.c.l.s4 1966171168
      %v1427 = vunpack.c.0.s8 %v1426
      %v1428 = vlaneseq
      %v1429 = vshrl.u32 %v1428, 7
      %v1430 = vsub.s32 %v1427, %v1429
      %v1431 = vrot.slane %v1415, %v1430
      %v1433 = vunpack.c.l.s4 1966171168
      %v1434 = vunpack.c.0.s8 %v1433
      %v1435 = vlaneseq
      %v1436 = vshrl.u32 %v1435, 7
      %v1437 = vsub.s32 %v1434, %v1436
      %v1438 = vrot.slane %v1416, %v1437
      %v1440 = vunpack.c.l.s4 1966171168
      %v1441 = vunpack.c.0.s8 %v1440
      %v1442 = vlaneseq
      %v1443 = vshrl.u32 %v1442, 7
      %v1444 = vsub.s32 %v1441, %v1443
      %v1445 = vrot.slane %v1417, %v1444
      %v1446 = vcombine.high %v1424, %v1424
      %v1447 = vcombine.high %v1431, %v1431
      %v1448 = vcombine.high %v1438, %v1438
      %v1449 = vcombine.high %v1445, %v1445
      %v1450 = vcombine.high %v1048, %v1048
      %v1452 = vunpack.c.l.s4 1966171168
      %v1453 = vunpack.c.0.s8 %v1452
      %v1454 = vlaneseq
      %v1455 = vshrl.u32 %v1454, 7
      %v1456 = vsub.s32 %v1453, %v1455
      %v1457 = vrot.slane %v1048, %v1456
      %v1459 = vunpack.c.l.s4 1966171168
      %v1460 = vunpack.c.0.s8 %v1459
      %v1461 = vlaneseq
      %v1462 = vshrl.u32 %v1461, 7
      %v1463 = vsub.s32 %v1460, %v1462
      %v1464 = vrot.slane %v1450, %v1463
      %v1465 = vcombine.high %v1457, %v1457
      %v1466 = vcombine.high %v1464, %v1464
      %v1468 = vunpack.c.l.s4 1966171168
      %v1469 = vunpack.c.0.s8 %v1468
      %v1470 = vlaneseq
      %v1471 = vshrl.u32 %v1470, 7
      %v1472 = vsub.s32 %v1469, %v1471
      %v1473 = vrot.slane %v1457, %v1472
      %v1475 = vunpack.c.l.s4 1966171168
      %v1476 = vunpack.c.0.s8 %v1475
      %v1477 = vlaneseq
      %v1478 = vshrl.u32 %v1477, 7
      %v1479 = vsub.s32 %v1476, %v1478
      %v1480 = vrot.slane %v1464, %v1479
      %v1482 = vunpack.c.l.s4 1966171168
      %v1483 = vunpack.c.0.s8 %v1482
      %v1484 = vlaneseq
      %v1485 = vshrl.u32 %v1484, 7
      %v1486 = vsub.s32 %v1483, %v1485
      %v1487 = vrot.slane %v1465, %v1486
      %v1489 = vunpack.c.l.s4 1966171168
      %v1490 = vunpack.c.0.s8 %v1489
      %v1491 = vlaneseq
      %v1492 = vshrl.u32 %v1491, 7
      %v1493 = vsub.s32 %v1490, %v1492
      %v1494 = vrot.slane %v1466, %v1493
      %v1495 = vcombine.high %v1473, %v1473
      %v1496 = vcombine.high %v1480, %v1480
      %v1497 = vcombine.high %v1487, %v1487
      %v1498 = vcombine.high %v1494, %v1494
      %v1499 = vcombine.high %v1053, %v1053
      %v1501 = vunpack.c.l.s4 1966171168
      %v1502 = vunpack.c.0.s8 %v1501
      %v1503 = vlaneseq
      %v1504 = vshrl.u32 %v1503, 7
      %v1505 = vsub.s32 %v1502, %v1504
      %v1506 = vrot.slane %v1053, %v1505
      %v1508 = vunpack.c.l.s4 1966171168
      %v1509 = vunpack.c.0.s8 %v1508
      %v1510 = vlaneseq
      %v1511 = vshrl.u32 %v1510, 7
      %v1512 = vsub.s32 %v1509, %v1511
      %v1513 = vrot.slane %v1499, %v1512
      %v1514 = vcombine.high %v1506, %v1506
      %v1515 = vcombine.high %v1513, %v1513
      %v1517 = vunpack.c.l.s4 1966171168
      %v1518 = vunpack.c.0.s8 %v1517
      %v1519 = vlaneseq
      %v1520 = vshrl.u32 %v1519, 7
      %v1521 = vsub.s32 %v1518, %v1520
      %v1522 = vrot.slane %v1506, %v1521
      %v1524 = vunpack.c.l.s4 1966171168
      %v1525 = vunpack.c.0.s8 %v1524
      %v1526 = vlaneseq
      %v1527 = vshrl.u32 %v1526, 7
      %v1528 = vsub.s32 %v1525, %v1527
      %v1529 = vrot.slane %v1513, %v1528
      %v1531 = vunpack.c.l.s4 1966171168
      %v1532 = vunpack.c.0.s8 %v1531
      %v1533 = vlaneseq
      %v1534 = vshrl.u32 %v1533, 7
      %v1535 = vsub.s32 %v1532, %v1534
      %v1536 = vrot.slane %v1514, %v1535
      %v1538 = vunpack.c.l.s4 1966171168
      %v1539 = vunpack.c.0.s8 %v1538
      %v1540 = vlaneseq
      %v1541 = vshrl.u32 %v1540, 7
      %v1542 = vsub.s32 %v1539, %v1541
      %v1543 = vrot.slane %v1515, %v1542
      %v1544 = vcombine.high %v1522, %v1522
      %v1545 = vcombine.high %v1529, %v1529
      %v1546 = vcombine.high %v1536, %v1536
      %v1547 = vcombine.high %v1543, %v1543
      %v1548 = vcombine.high %v1058, %v1058
      %v1550 = vunpack.c.l.s4 1966171168
      %v1551 = vunpack.c.0.s8 %v1550
      %v1552 = vlaneseq
      %v1553 = vshrl.u32 %v1552, 7
      %v1554 = vsub.s32 %v1551, %v1553
      %v1555 = vrot.slane %v1058, %v1554
      %v1557 = vunpack.c.l.s4 1966171168
      %v1558 = vunpack.c.0.s8 %v1557
      %v1559 = vlaneseq
      %v1560 = vshrl.u32 %v1559, 7
      %v1561 = vsub.s32 %v1558, %v1560
      %v1562 = vrot.slane %v1548, %v1561
      %v1563 = vcombine.high %v1555, %v1555
      %v1564 = vcombine.high %v1562, %v1562
      %v1566 = vunpack.c.l.s4 1966171168
      %v1567 = vunpack.c.0.s8 %v1566
      %v1568 = vlaneseq
      %v1569 = vshrl.u32 %v1568, 7
      %v1570 = vsub.s32 %v1567, %v1569
      %v1571 = vrot.slane %v1555, %v1570
      %v1573 = vunpack.c.l.s4 1966171168
      %v1574 = vunpack.c.0.s8 %v1573
      %v1575 = vlaneseq
      %v1576 = vshrl.u32 %v1575, 7
      %v1577 = vsub.s32 %v1574, %v1576
      %v1578 = vrot.slane %v1562, %v1577
      %v1580 = vunpack.c.l.s4 1966171168
      %v1581 = vunpack.c.0.s8 %v1580
      %v1582 = vlaneseq
      %v1583 = vshrl.u32 %v1582, 7
      %v1584 = vsub.s32 %v1581, %v1583
      %v1585 = vrot.slane %v1563, %v1584
      %v1587 = vunpack.c.l.s4 1966171168
      %v1588 = vunpack.c.0.s8 %v1587
      %v1589 = vlaneseq
      %v1590 = vshrl.u32 %v1589, 7
      %v1591 = vsub.s32 %v1588, %v1590
      %v1592 = vrot.slane %v1564, %v1591
      %v1593 = vcombine.high %v1571, %v1571
      %v1594 = vcombine.high %v1578, %v1578
      %v1595 = vcombine.high %v1585, %v1585
      %v1596 = vcombine.high %v1592, %v1592
      %v1597 = vcombine.high %v1063, %v1063
      %v1599 = vunpack.c.l.s4 1966171168
      %v1600 = vunpack.c.0.s8 %v1599
      %v1601 = vlaneseq
      %v1602 = vshrl.u32 %v1601, 7
      %v1603 = vsub.s32 %v1600, %v1602
      %v1604 = vrot.slane %v1063, %v1603
      %v1606 = vunpack.c.l.s4 1966171168
      %v1607 = vunpack.c.0.s8 %v1606
      %v1608 = vlaneseq
      %v1609 = vshrl.u32 %v1608, 7
      %v1610 = vsub.s32 %v1607, %v1609
      %v1611 = vrot.slane %v1597, %v1610
      %v1612 = vcombine.high %v1604, %v1604
      %v1613 = vcombine.high %v1611, %v1611
      %v1615 = vunpack.c.l.s4 1966171168
      %v1616 = vunpack.c.0.s8 %v1615
      %v1617 = vlaneseq
      %v1618 = vshrl.u32 %v1617, 7
      %v1619 = vsub.s32 %v1616, %v1618
      %v1620 = vrot.slane %v1604, %v1619
      %v1622 = vunpack.c.l.s4 1966171168
      %v1623 = vunpack.c.0.s8 %v1622
      %v1624 = vlaneseq
      %v1625 = vshrl.u32 %v1624, 7
      %v1626 = vsub.s32 %v1623, %v1625
      %v1627 = vrot.slane %v1611, %v1626
      %v1629 = vunpack.c.l.s4 1966171168
      %v1630 = vunpack.c.0.s8 %v1629
      %v1631 = vlaneseq
      %v1632 = vshrl.u32 %v1631, 7
      %v1633 = vsub.s32 %v1630, %v1632
      %v1634 = vrot.slane %v1612, %v1633
      %v1636 = vunpack.c.l.s4 1966171168
      %v1637 = vunpack.c.0.s8 %v1636
      %v1638 = vlaneseq
      %v1639 = vshrl.u32 %v1638, 7
      %v1640 = vsub.s32 %v1637, %v1639
      %v1641 = vrot.slane %v1613, %v1640
      %v1642 = vcombine.high %v1620, %v1620
      %v1643 = vcombine.high %v1627, %v1627
      %v1644 = vcombine.high %v1634, %v1634
      %v1645 = vcombine.high %v1641, %v1641
      %v1646 = vcombine.high %v1068, %v1068
      %v1648 = vunpack.c.l.s4 1966171168
      %v1649 = vunpack.c.0.s8 %v1648
      %v1650 = vlaneseq
      %v1651 = vshrl.u32 %v1650, 7
      %v1652 = vsub.s32 %v1649, %v1651
      %v1653 = vrot.slane %v1068, %v1652
      %v1655 = vunpack.c.l.s4 1966171168
      %v1656 = vunpack.c.0.s8 %v1655
      %v1657 = vlaneseq
      %v1658 = vshrl.u32 %v1657, 7
      %v1659 = vsub.s32 %v1656, %v1658
      %v1660 = vrot.slane %v1646, %v1659
      %v1661 = vcombine.high %v1653, %v1653
      %v1662 = vcombine.high %v1660, %v1660
      %v1664 = vunpack.c.l.s4 1966171168
      %v1665 = vunpack.c.0.s8 %v1664
      %v1666 = vlaneseq
      %v1667 = vshrl.u32 %v1666, 7
      %v1668 = vsub.s32 %v1665, %v1667
      %v1669 = vrot.slane %v1653, %v1668
      %v1671 = vunpack.c.l.s4 1966171168
      %v1672 = vunpack.c.0.s8 %v1671
      %v1673 = vlaneseq
      %v1674 = vshrl.u32 %v1673, 7
      %v1675 = vsub.s32 %v1672, %v1674
      %v1676 = vrot.slane %v1660, %v1675
      %v1678 = vunpack.c.l.s4 1966171168
      %v1679 = vunpack.c.0.s8 %v1678
      %v1680 = vlaneseq
      %v1681 = vshrl.u32 %v1680, 7
      %v1682 = vsub.s32 %v1679, %v1681
      %v1683 = vrot.slane %v1661, %v1682
      %v1685 = vunpack.c.l.s4 1966171168
      %v1686 = vunpack.c.0.s8 %v1685
      %v1687 = vlaneseq
      %v1688 = vshrl.u32 %v1687, 7
      %v1689 = vsub.s32 %v1686, %v1688
      %v1690 = vrot.slane %v1662, %v1689
      %v1691 = vcombine.high %v1669, %v1669
      %v1692 = vcombine.high %v1676, %v1676
      %v1693 = vcombine.high %v1683, %v1683
      %v1694 = vcombine.high %v1690, %v1690
      %v1695 = vcombine.high %v1073, %v1073
      %v1697 = vunpack.c.l.s4 1966171168
      %v1698 = vunpack.c.0.s8 %v1697
      %v1699 = vlaneseq
      %v1700 = vshrl.u32 %v1699, 7
      %v1701 = vsub.s32 %v1698, %v1700
      %v1702 = vrot.slane %v1073, %v1701
      %v1704 = vunpack.c.l.s4 1966171168
      %v1705 = vunpack.c.0.s8 %v1704
      %v1706 = vlaneseq
      %v1707 = vshrl.u32 %v1706, 7
      %v1708 = vsub.s32 %v1705, %v1707
      %v1709 = vrot.slane %v1695, %v1708
      %v1710 = vcombine.high %v1702, %v1702
      %v1711 = vcombine.high %v1709, %v1709
      %v1713 = vunpack.c.l.s4 1966171168
      %v1714 = vunpack.c.0.s8 %v1713
      %v1715 = vlaneseq
      %v1716 = vshrl.u32 %v1715, 7
      %v1717 = vsub.s32 %v1714, %v1716
      %v1718 = vrot.slane %v1702, %v1717
      %v1720 = vunpack.c.l.s4 1966171168
      %v1721 = vunpack.c.0.s8 %v1720
      %v1722 = vlaneseq
      %v1723 = vshrl.u32 %v1722, 7
      %v1724 = vsub.s32 %v1721, %v1723
      %v1725 = vrot.slane %v1709, %v1724
      %v1727 = vunpack.c.l.s4 1966171168
      %v1728 = vunpack.c.0.s8 %v1727
      %v1729 = vlaneseq
      %v1730 = vshrl.u32 %v1729, 7
      %v1731 = vsub.s32 %v1728, %v1730
      %v1732 = vrot.slane %v1710, %v1731
      %v1734 = vunpack.c.l.s4 1966171168
      %v1735 = vunpack.c.0.s8 %v1734
      %v1736 = vlaneseq
      %v1737 = vshrl.u32 %v1736, 7
      %v1738 = vsub.s32 %v1735, %v1737
      %v1739 = vrot.slane %v1711, %v1738
      %v1740 = vcombine.high %v1718, %v1718
      %v1741 = vcombine.high %v1725, %v1725
      %v1742 = vcombine.high %v1732, %v1732
      %v1743 = vcombine.high %v1739, %v1739
      %v1744 = vcombine.high %v1078, %v1078
      %v1746 = vunpack.c.l.s4 1966171168
      %v1747 = vunpack.c.0.s8 %v1746
      %v1748 = vlaneseq
      %v1749 = vshrl.u32 %v1748, 7
      %v1750 = vsub.s32 %v1747, %v1749
      %v1751 = vrot.slane %v1078, %v1750
      %v1753 = vunpack.c.l.s4 1966171168
      %v1754 = vunpack.c.0.s8 %v1753
      %v1755 = vlaneseq
      %v1756 = vshrl.u32 %v1755, 7
      %v1757 = vsub.s32 %v1754, %v1756
      %v1758 = vrot.slane %v1744, %v1757
      %v1759 = vcombine.high %v1751, %v1751
      %v1760 = vcombine.high %v1758, %v1758
      %v1762 = vunpack.c.l.s4 1966171168
      %v1763 = vunpack.c.0.s8 %v1762
      %v1764 = vlaneseq
      %v1765 = vshrl.u32 %v1764, 7
      %v1766 = vsub.s32 %v1763, %v1765
      %v1767 = vrot.slane %v1751, %v1766
      %v1769 = vunpack.c.l.s4 1966171168
      %v1770 = vunpack.c.0.s8 %v1769
      %v1771 = vlaneseq
      %v1772 = vshrl.u32 %v1771, 7
      %v1773 = vsub.s32 %v1770, %v1772
      %v1774 = vrot.slane %v1758, %v1773
      %v1776 = vunpack.c.l.s4 1966171168
      %v1777 = vunpack.c.0.s8 %v1776
      %v1778 = vlaneseq
      %v1779 = vshrl.u32 %v1778, 7
      %v1780 = vsub.s32 %v1777, %v1779
      %v1781 = vrot.slane %v1759, %v1780
      %v1783 = vunpack.c.l.s4 1966171168
      %v1784 = vunpack.c.0.s8 %v1783
      %v1785 = vlaneseq
      %v1786 = vshrl.u32 %v1785, 7
      %v1787 = vsub.s32 %v1784, %v1786
      %v1788 = vrot.slane %v1760, %v1787
      %v1789 = vcombine.high %v1767, %v1767
      %v1790 = vcombine.high %v1774, %v1774
      %v1791 = vcombine.high %v1781, %v1781
      %v1792 = vcombine.high %v1788, %v1788
      %v1793 = vcombine.high %v1083, %v1083
      %v1795 = vunpack.c.l.s4 1966171168
      %v1796 = vunpack.c.0.s8 %v1795
      %v1797 = vlaneseq
      %v1798 = vshrl.u32 %v1797, 7
      %v1799 = vsub.s32 %v1796, %v1798
      %v1800 = vrot.slane %v1083, %v1799
      %v1802 = vunpack.c.l.s4 1966171168
      %v1803 = vunpack.c.0.s8 %v1802
      %v1804 = vlaneseq
      %v1805 = vshrl.u32 %v1804, 7
      %v1806 = vsub.s32 %v1803, %v1805
      %v1807 = vrot.slane %v1793, %v1806
      %v1808 = vcombine.high %v1800, %v1800
      %v1809 = vcombine.high %v1807, %v1807
      %v1811 = vunpack.c.l.s4 1966171168
      %v1812 = vunpack.c.0.s8 %v1811
      %v1813 = vlaneseq
      %v1814 = vshrl.u32 %v1813, 7
      %v1815 = vsub.s32 %v1812, %v1814
      %v1816 = vrot.slane %v1800, %v1815
      %v1818 = vunpack.c.l.s4 1966171168
      %v1819 = vunpack.c.0.s8 %v1818
      %v1820 = vlaneseq
      %v1821 = vshrl.u32 %v1820, 7
      %v1822 = vsub.s32 %v1819, %v1821
      %v1823 = vrot.slane %v1807, %v1822
      %v1825 = vunpack.c.l.s4 1966171168
      %v1826 = vunpack.c.0.s8 %v1825
      %v1827 = vlaneseq
      %v1828 = vshrl.u32 %v1827, 7
      %v1829 = vsub.s32 %v1826, %v1828
      %v1830 = vrot.slane %v1808, %v1829
      %v1832 = vunpack.c.l.s4 1966171168
      %v1833 = vunpack.c.0.s8 %v1832
      %v1834 = vlaneseq
      %v1835 = vshrl.u32 %v1834, 7
      %v1836 = vsub.s32 %v1833, %v1835
      %v1837 = vrot.slane %v1809, %v1836
      %v1838 = vcombine.high %v1816, %v1816
      %v1839 = vcombine.high %v1823, %v1823
      %v1840 = vcombine.high %v1830, %v1830
      %v1841 = vcombine.high %v1837, %v1837
      %v1842 = vcombine.high %v1088, %v1088
      %v1844 = vunpack.c.l.s4 1966171168
      %v1845 = vunpack.c.0.s8 %v1844
      %v1846 = vlaneseq
      %v1847 = vshrl.u32 %v1846, 7
      %v1848 = vsub.s32 %v1845, %v1847
      %v1849 = vrot.slane %v1088, %v1848
      %v1851 = vunpack.c.l.s4 1966171168
      %v1852 = vunpack.c.0.s8 %v1851
      %v1853 = vlaneseq
      %v1854 = vshrl.u32 %v1853, 7
      %v1855 = vsub.s32 %v1852, %v1854
      %v1856 = vrot.slane %v1842, %v1855
      %v1857 = vcombine.high %v1849, %v1849
      %v1858 = vcombine.high %v1856, %v1856
      %v1860 = vunpack.c.l.s4 1966171168
      %v1861 = vunpack.c.0.s8 %v1860
      %v1862 = vlaneseq
      %v1863 = vshrl.u32 %v1862, 7
      %v1864 = vsub.s32 %v1861, %v1863
      %v1865 = vrot.slane %v1849, %v1864
      %v1867 = vunpack.c.l.s4 1966171168
      %v1868 = vunpack.c.0.s8 %v1867
      %v1869 = vlaneseq
      %v1870 = vshrl.u32 %v1869, 7
      %v1871 = vsub.s32 %v1868, %v1870
      %v1872 = vrot.slane %v1856, %v1871
      %v1874 = vunpack.c.l.s4 1966171168
      %v1875 = vunpack.c.0.s8 %v1874
      %v1876 = vlaneseq
      %v1877 = vshrl.u32 %v1876, 7
      %v1878 = vsub.s32 %v1875, %v1877
      %v1879 = vrot.slane %v1857, %v1878
      %v1881 = vunpack.c.l.s4 1966171168
      %v1882 = vunpack.c.0.s8 %v1881
      %v1883 = vlaneseq
      %v1884 = vshrl.u32 %v1883, 7
      %v1885 = vsub.s32 %v1882, %v1884
      %v1886 = vrot.slane %v1858, %v1885
      %v1887 = vcombine.high %v1865, %v1865
      %v1888 = vcombine.high %v1872, %v1872
      %v1889 = vcombine.high %v1879, %v1879
      %v1890 = vcombine.high %v1886, %v1886
      %v2019 = vlaneseq
      %v2020 = vshrl.u32 %v2019, 7
      %v2021 = vsub.s32 0, %v2020
      %v2022 = vrot.slane %v1130, %v2021
      %v2023 = vlaneseq
      %v2024 = vshrl.u32 %v2023, 7
      %v2025 = vsub.s32 0, %v2024
      %v2026 = vrot.slane %v1144, %v2025
      %v2027 = vlaneseq
      %v2028 = vshrl.u32 %v2027, 7
      %v2029 = vsub.s32 0, %v2028
      %v2030 = vrot.slane %v1152, %v2029
      %v2031 = vlaneseq
      %v2032 = vshrl.u32 %v2031, 7
      %v2033 = vsub.s32 0, %v2032
      %v2034 = vrot.slane %v1154, %v2033
      %v2035 = vlaneseq
      %v2036 = vshrl.u32 %v2035, 7
      %v2037 = vsub.s32 0, %v2036
      %v2038 = vrot.slane %v1137, %v2037
      %v2039 = vlaneseq
      %v2040 = vshrl.u32 %v2039, 7
      %v2041 = vsub.s32 0, %v2040
      %v2042 = vrot.slane %v1151, %v2041
      %v2043 = vlaneseq
      %v2044 = vshrl.u32 %v2043, 7
      %v2045 = vsub.s32 0, %v2044
      %v2046 = vrot.slane %v1153, %v2045
      %v2047 = vlaneseq
      %v2048 = vshrl.u32 %v2047, 7
      %v2049 = vsub.s32 0, %v2048
      %v2050 = vrot.slane %v1155, %v2049
      %v2051 = vlaneseq
      %v2052 = vshrl.u32 %v2051, 7
      %v2053 = vsub.s32 0, %v2052
      %v2054 = vrot.slane %v1179, %v2053
      %v2055 = vlaneseq
      %v2056 = vshrl.u32 %v2055, 7
      %v2057 = vsub.s32 0, %v2056
      %v2058 = vrot.slane %v1193, %v2057
      %v2059 = vlaneseq
      %v2060 = vshrl.u32 %v2059, 7
      %v2061 = vsub.s32 0, %v2060
      %v2062 = vrot.slane %v1201, %v2061
      %v2063 = vlaneseq
      %v2064 = vshrl.u32 %v2063, 7
      %v2065 = vsub.s32 0, %v2064
      %v2066 = vrot.slane %v1203, %v2065
      %v2067 = vlaneseq
      %v2068 = vshrl.u32 %v2067, 7
      %v2069 = vsub.s32 0, %v2068
      %v2070 = vrot.slane %v1186, %v2069
      %v2071 = vlaneseq
      %v2072 = vshrl.u32 %v2071, 7
      %v2073 = vsub.s32 0, %v2072
      %v2074 = vrot.slane %v1200, %v2073
      %v2075 = vlaneseq
      %v2076 = vshrl.u32 %v2075, 7
      %v2077 = vsub.s32 0, %v2076
      %v2078 = vrot.slane %v1202, %v2077
      %v2079 = vlaneseq
      %v2080 = vshrl.u32 %v2079, 7
      %v2081 = vsub.s32 0, %v2080
      %v2082 = vrot.slane %v1204, %v2081
      %v2083 = vlaneseq
      %v2084 = vshrl.u32 %v2083, 7
      %v2085 = vsub.s32 0, %v2084
      %v2086 = vrot.slane %v1228, %v2085
      %v2087 = vlaneseq
      %v2088 = vshrl.u32 %v2087, 7
      %v2089 = vsub.s32 0, %v2088
      %v2090 = vrot.slane %v1242, %v2089
      %v2091 = vlaneseq
      %v2092 = vshrl.u32 %v2091, 7
      %v2093 = vsub.s32 0, %v2092
      %v2094 = vrot.slane %v1250, %v2093
      %v2095 = vlaneseq
      %v2096 = vshrl.u32 %v2095, 7
      %v2097 = vsub.s32 0, %v2096
      %v2098 = vrot.slane %v1252, %v2097
      %v2099 = vlaneseq
      %v2100 = vshrl.u32 %v2099, 7
      %v2101 = vsub.s32 0, %v2100
      %v2102 = vrot.slane %v1235, %v2101
      %v2103 = vlaneseq
      %v2104 = vshrl.u32 %v2103, 7
      %v2105 = vsub.s32 0, %v2104
      %v2106 = vrot.slane %v1249, %v2105
      %v2107 = vlaneseq
      %v2108 = vshrl.u32 %v2107, 7
      %v2109 = vsub.s32 0, %v2108
      %v2110 = vrot.slane %v1251, %v2109
      %v2111 = vlaneseq
      %v2112 = vshrl.u32 %v2111, 7
      %v2113 = vsub.s32 0, %v2112
      %v2114 = vrot.slane %v1253, %v2113
      %v2115 = vlaneseq
      %v2116 = vshrl.u32 %v2115, 7
      %v2117 = vsub.s32 0, %v2116
      %v2118 = vrot.slane %v1277, %v2117
      %v2119 = vlaneseq
      %v2120 = vshrl.u32 %v2119, 7
      %v2121 = vsub.s32 0, %v2120
      %v2122 = vrot.slane %v1291, %v2121
      %v2123 = vlaneseq
      %v2124 = vshrl.u32 %v2123, 7
      %v2125 = vsub.s32 0, %v2124
      %v2126 = vrot.slane %v1299, %v2125
      %v2127 = vlaneseq
      %v2128 = vshrl.u32 %v2127, 7
      %v2129 = vsub.s32 0, %v2128
      %v2130 = vrot.slane %v1301, %v2129
      %v2131 = vlaneseq
      %v2132 = vshrl.u32 %v2131, 7
      %v2133 = vsub.s32 0, %v2132
      %v2134 = vrot.slane %v1284, %v2133
      %v2135 = vlaneseq
      %v2136 = vshrl.u32 %v2135, 7
      %v2137 = vsub.s32 0, %v2136
      %v2138 = vrot.slane %v1298, %v2137
      %v2139 = vlaneseq
      %v2140 = vshrl.u32 %v2139, 7
      %v2141 = vsub.s32 0, %v2140
      %v2142 = vrot.slane %v1300, %v2141
      %v2143 = vlaneseq
      %v2144 = vshrl.u32 %v2143, 7
      %v2145 = vsub.s32 0, %v2144
      %v2146 = vrot.slane %v1302, %v2145
      %v2147 = vlaneseq
      %v2148 = vshrl.u32 %v2147, 7
      %v2149 = vsub.s32 0, %v2148
      %v2150 = vrot.slane %v1326, %v2149
      %v2151 = vlaneseq
      %v2152 = vshrl.u32 %v2151, 7
      %v2153 = vsub.s32 0, %v2152
      %v2154 = vrot.slane %v1340, %v2153
      %v2155 = vlaneseq
      %v2156 = vshrl.u32 %v2155, 7
      %v2157 = vsub.s32 0, %v2156
      %v2158 = vrot.slane %v1348, %v2157
      %v2159 = vlaneseq
      %v2160 = vshrl.u32 %v2159, 7
      %v2161 = vsub.s32 0, %v2160
      %v2162 = vrot.slane %v1350, %v2161
      %v2163 = vlaneseq
      %v2164 = vshrl.u32 %v2163, 7
      %v2165 = vsub.s32 0, %v2164
      %v2166 = vrot.slane %v1333, %v2165
      %v2167 = vlaneseq
      %v2168 = vshrl.u32 %v2167, 7
      %v2169 = vsub.s32 0, %v2168
      %v2170 = vrot.slane %v1347, %v2169
      %v2171 = vlaneseq
      %v2172 = vshrl.u32 %v2171, 7
      %v2173 = vsub.s32 0, %v2172
      %v2174 = vrot.slane %v1349, %v2173
      %v2175 = vlaneseq
      %v2176 = vshrl.u32 %v2175, 7
      %v2177 = vsub.s32 0, %v2176
      %v2178 = vrot.slane %v1351, %v2177
      %v2179 = vlaneseq
      %v2180 = vshrl.u32 %v2179, 7
      %v2181 = vsub.s32 0, %v2180
      %v2182 = vrot.slane %v1375, %v2181
      %v2183 = vlaneseq
      %v2184 = vshrl.u32 %v2183, 7
      %v2185 = vsub.s32 0, %v2184
      %v2186 = vrot.slane %v1389, %v2185
      %v2187 = vlaneseq
      %v2188 = vshrl.u32 %v2187, 7
      %v2189 = vsub.s32 0, %v2188
      %v2190 = vrot.slane %v1397, %v2189
      %v2191 = vlaneseq
      %v2192 = vshrl.u32 %v2191, 7
      %v2193 = vsub.s32 0, %v2192
      %v2194 = vrot.slane %v1399, %v2193
      %v2195 = vlaneseq
      %v2196 = vshrl.u32 %v2195, 7
      %v2197 = vsub.s32 0, %v2196
      %v2198 = vrot.slane %v1382, %v2197
      %v2199 = vlaneseq
      %v2200 = vshrl.u32 %v2199, 7
      %v2201 = vsub.s32 0, %v2200
      %v2202 = vrot.slane %v1396, %v2201
      %v2203 = vlaneseq
      %v2204 = vshrl.u32 %v2203, 7
      %v2205 = vsub.s32 0, %v2204
      %v2206 = vrot.slane %v1398, %v2205
      %v2207 = vlaneseq
      %v2208 = vshrl.u32 %v2207, 7
      %v2209 = vsub.s32 0, %v2208
      %v2210 = vrot.slane %v1400, %v2209
      %v2211 = vlaneseq
      %v2212 = vshrl.u32 %v2211, 7
      %v2213 = vsub.s32 0, %v2212
      %v2214 = vrot.slane %v1424, %v2213
      %v2215 = vlaneseq
      %v2216 = vshrl.u32 %v2215, 7
      %v2217 = vsub.s32 0, %v2216
      %v2218 = vrot.slane %v1438, %v2217
      %v2219 = vlaneseq
      %v2220 = vshrl.u32 %v2219, 7
      %v2221 = vsub.s32 0, %v2220
      %v2222 = vrot.slane %v1446, %v2221
      %v2223 = vlaneseq
      %v2224 = vshrl.u32 %v2223, 7
      %v2225 = vsub.s32 0, %v2224
      %v2226 = vrot.slane %v1448, %v2225
      %v2227 = vlaneseq
      %v2228 = vshrl.u32 %v2227, 7
      %v2229 = vsub.s32 0, %v2228
      %v2230 = vrot.slane %v1431, %v2229
      %v2231 = vlaneseq
      %v2232 = vshrl.u32 %v2231, 7
      %v2233 = vsub.s32 0, %v2232
      %v2234 = vrot.slane %v1445, %v2233
      %v2235 = vlaneseq
      %v2236 = vshrl.u32 %v2235, 7
      %v2237 = vsub.s32 0, %v2236
      %v2238 = vrot.slane %v1447, %v2237
      %v2239 = vlaneseq
      %v2240 = vshrl.u32 %v2239, 7
      %v2241 = vsub.s32 0, %v2240
      %v2242 = vrot.slane %v1449, %v2241
      %v2243 = vlaneseq
      %v2244 = vshrl.u32 %v2243, 7
      %v2245 = vsub.s32 0, %v2244
      %v2246 = vrot.slane %v1473, %v2245
      %v2247 = vlaneseq
      %v2248 = vshrl.u32 %v2247, 7
      %v2249 = vsub.s32 0, %v2248
      %v2250 = vrot.slane %v1487, %v2249
      %v2251 = vlaneseq
      %v2252 = vshrl.u32 %v2251, 7
      %v2253 = vsub.s32 0, %v2252
      %v2254 = vrot.slane %v1495, %v2253
      %v2255 = vlaneseq
      %v2256 = vshrl.u32 %v2255, 7
      %v2257 = vsub.s32 0, %v2256
      %v2258 = vrot.slane %v1497, %v2257
      %v2259 = vlaneseq
      %v2260 = vshrl.u32 %v2259, 7
      %v2261 = vsub.s32 0, %v2260
      %v2262 = vrot.slane %v1480, %v2261
      %v2263 = vlaneseq
      %v2264 = vshrl.u32 %v2263, 7
      %v2265 = vsub.s32 0, %v2264
      %v2266 = vrot.slane %v1494, %v2265
      %v2267 = vlaneseq
      %v2268 = vshrl.u32 %v2267, 7
      %v2269 = vsub.s32 0, %v2268
      %v2270 = vrot.slane %v1496, %v2269
      %v2271 = vlaneseq
      %v2272 = vshrl.u32 %v2271, 7
      %v2273 = vsub.s32 0, %v2272
      %v2274 = vrot.slane %v1498, %v2273
      %v2275 = vlaneseq
      %v2276 = vshrl.u32 %v2275, 7
      %v2277 = vsub.s32 0, %v2276
      %v2278 = vrot.slane %v1522, %v2277
      %v2279 = vlaneseq
      %v2280 = vshrl.u32 %v2279, 7
      %v2281 = vsub.s32 0, %v2280
      %v2282 = vrot.slane %v1536, %v2281
      %v2283 = vlaneseq
      %v2284 = vshrl.u32 %v2283, 7
      %v2285 = vsub.s32 0, %v2284
      %v2286 = vrot.slane %v1544, %v2285
      %v2287 = vlaneseq
      %v2288 = vshrl.u32 %v2287, 7
      %v2289 = vsub.s32 0, %v2288
      %v2290 = vrot.slane %v1546, %v2289
      %v2291 = vlaneseq
      %v2292 = vshrl.u32 %v2291, 7
      %v2293 = vsub.s32 0, %v2292
      %v2294 = vrot.slane %v1529, %v2293
      %v2295 = vlaneseq
      %v2296 = vshrl.u32 %v2295, 7
      %v2297 = vsub.s32 0, %v2296
      %v2298 = vrot.slane %v1543, %v2297
      %v2299 = vlaneseq
      %v2300 = vshrl.u32 %v2299, 7
      %v2301 = vsub.s32 0, %v2300
      %v2302 = vrot.slane %v1545, %v2301
      %v2303 = vlaneseq
      %v2304 = vshrl.u32 %v2303, 7
      %v2305 = vsub.s32 0, %v2304
      %v2306 = vrot.slane %v1547, %v2305
      %v2307 = vlaneseq
      %v2308 = vshrl.u32 %v2307, 7
      %v2309 = vsub.s32 0, %v2308
      %v2310 = vrot.slane %v1571, %v2309
      %v2311 = vlaneseq
      %v2312 = vshrl.u32 %v2311, 7
      %v2313 = vsub.s32 0, %v2312
      %v2314 = vrot.slane %v1585, %v2313
      %v2315 = vlaneseq
      %v2316 = vshrl.u32 %v2315, 7
      %v2317 = vsub.s32 0, %v2316
      %v2318 = vrot.slane %v1593, %v2317
      %v2319 = vlaneseq
      %v2320 = vshrl.u32 %v2319, 7
      %v2321 = vsub.s32 0, %v2320
      %v2322 = vrot.slane %v1595, %v2321
      %v2323 = vlaneseq
      %v2324 = vshrl.u32 %v2323, 7
      %v2325 = vsub.s32 0, %v2324
      %v2326 = vrot.slane %v1578, %v2325
      %v2327 = vlaneseq
      %v2328 = vshrl.u32 %v2327, 7
      %v2329 = vsub.s32 0, %v2328
      %v2330 = vrot.slane %v1592, %v2329
      %v2331 = vlaneseq
      %v2332 = vshrl.u32 %v2331, 7
      %v2333 = vsub.s32 0, %v2332
      %v2334 = vrot.slane %v1594, %v2333
      %v2335 = vlaneseq
      %v2336 = vshrl.u32 %v2335, 7
      %v2337 = vsub.s32 0, %v2336
      %v2338 = vrot.slane %v1596, %v2337
      %v2339 = vlaneseq
      %v2340 = vshrl.u32 %v2339, 7
      %v2341 = vsub.s32 0, %v2340
      %v2342 = vrot.slane %v1620, %v2341
      %v2343 = vlaneseq
      %v2344 = vshrl.u32 %v2343, 7
      %v2345 = vsub.s32 0, %v2344
      %v2346 = vrot.slane %v1634, %v2345
      %v2347 = vlaneseq
      %v2348 = vshrl.u32 %v2347, 7
      %v2349 = vsub.s32 0, %v2348
      %v2350 = vrot.slane %v1642, %v2349
      %v2351 = vlaneseq
      %v2352 = vshrl.u32 %v2351, 7
      %v2353 = vsub.s32 0, %v2352
      %v2354 = vrot.slane %v1644, %v2353
      %v2355 = vlaneseq
      %v2356 = vshrl.u32 %v2355, 7
      %v2357 = vsub.s32 0, %v2356
      %v2358 = vrot.slane %v1627, %v2357
      %v2359 = vlaneseq
      %v2360 = vshrl.u32 %v2359, 7
      %v2361 = vsub.s32 0, %v2360
      %v2362 = vrot.slane %v1641, %v2361
      %v2363 = vlaneseq
      %v2364 = vshrl.u32 %v2363, 7
      %v2365 = vsub.s32 0, %v2364
      %v2366 = vrot.slane %v1643, %v2365
      %v2367 = vlaneseq
      %v2368 = vshrl.u32 %v2367, 7
      %v2369 = vsub.s32 0, %v2368
      %v2370 = vrot.slane %v1645, %v2369
      %v2371 = vlaneseq
      %v2372 = vshrl.u32 %v2371, 7
      %v2373 = vsub.s32 0, %v2372
      %v2374 = vrot.slane %v1669, %v2373
      %v2375 = vlaneseq
      %v2376 = vshrl.u32 %v2375, 7
      %v2377 = vsub.s32 0, %v2376
      %v2378 = vrot.slane %v1683, %v2377
      %v2379 = vlaneseq
      %v2380 = vshrl.u32 %v2379, 7
      %v2381 = vsub.s32 0, %v2380
      %v2382 = vrot.slane %v1691, %v2381
      %v2383 = vlaneseq
      %v2384 = vshrl.u32 %v2383, 7
      %v2385 = vsub.s32 0, %v2384
      %v2386 = vrot.slane %v1693, %v2385
      %v2387 = vlaneseq
      %v2388 = vshrl.u32 %v2387, 7
      %v2389 = vsub.s32 0, %v2388
      %v2390 = vrot.slane %v1676, %v2389
      %v2391 = vlaneseq
      %v2392 = vshrl.u32 %v2391, 7
      %v2393 = vsub.s32 0, %v2392
      %v2394 = vrot.slane %v1690, %v2393
      %v2395 = vlaneseq
      %v2396 = vshrl.u32 %v2395, 7
      %v2397 = vsub.s32 0, %v2396
      %v2398 = vrot.slane %v1692, %v2397
      %v2399 = vlaneseq
      %v2400 = vshrl.u32 %v2399, 7
      %v2401 = vsub.s32 0, %v2400
      %v2402 = vrot.slane %v1694, %v2401
      %v2403 = vlaneseq
      %v2404 = vshrl.u32 %v2403, 7
      %v2405 = vsub.s32 0, %v2404
      %v2406 = vrot.slane %v1718, %v2405
      %v2407 = vlaneseq
      %v2408 = vshrl.u32 %v2407, 7
      %v2409 = vsub.s32 0, %v2408
      %v2410 = vrot.slane %v1732, %v2409
      %v2411 = vlaneseq
      %v2412 = vshrl.u32 %v2411, 7
      %v2413 = vsub.s32 0, %v2412
      %v2414 = vrot.slane %v1740, %v2413
      %v2415 = vlaneseq
      %v2416 = vshrl.u32 %v2415, 7
      %v2417 = vsub.s32 0, %v2416
      %v2418 = vrot.slane %v1742, %v2417
      %v2419 = vlaneseq
      %v2420 = vshrl.u32 %v2419, 7
      %v2421 = vsub.s32 0, %v2420
      %v2422 = vrot.slane %v1725, %v2421
      %v2423 = vlaneseq
      %v2424 = vshrl.u32 %v2423, 7
      %v2425 = vsub.s32 0, %v2424
      %v2426 = vrot.slane %v1739, %v2425
      %v2427 = vlaneseq
      %v2428 = vshrl.u32 %v2427, 7
      %v2429 = vsub.s32 0, %v2428
      %v2430 = vrot.slane %v1741, %v2429
      %v2431 = vlaneseq
      %v2432 = vshrl.u32 %v2431, 7
      %v2433 = vsub.s32 0, %v2432
      %v2434 = vrot.slane %v1743, %v2433
      %v2435 = vlaneseq
      %v2436 = vshrl.u32 %v2435, 7
      %v2437 = vsub.s32 0, %v2436
      %v2438 = vrot.slane %v1767, %v2437
      %v2439 = vlaneseq
      %v2440 = vshrl.u32 %v2439, 7
      %v2441 = vsub.s32 0, %v2440
      %v2442 = vrot.slane %v1781, %v2441
      %v2443 = vlaneseq
      %v2444 = vshrl.u32 %v2443, 7
      %v2445 = vsub.s32 0, %v2444
      %v2446 = vrot.slane %v1789, %v2445
      %v2447 = vlaneseq
      %v2448 = vshrl.u32 %v2447, 7
      %v2449 = vsub.s32 0, %v2448
      %v2450 = vrot.slane %v1791, %v2449
      %v2451 = vlaneseq
      %v2452 = vshrl.u32 %v2451, 7
      %v2453 = vsub.s32 0, %v2452
      %v2454 = vrot.slane %v1774, %v2453
      %v2455 = vlaneseq
      %v2456 = vshrl.u32 %v2455, 7
      %v2457 = vsub.s32 0, %v2456
      %v2458 = vrot.slane %v1788, %v2457
      %v2459 = vlaneseq
      %v2460 = vshrl.u32 %v2459, 7
      %v2461 = vsub.s32 0, %v2460
      %v2462 = vrot.slane %v1790, %v2461
      %v2463 = vlaneseq
      %v2464 = vshrl.u32 %v2463, 7
      %v2465 = vsub.s32 0, %v2464
      %v2466 = vrot.slane %v1792, %v2465
      %v2467 = vlaneseq
      %v2468 = vshrl.u32 %v2467, 7
      %v2469 = vsub.s32 0, %v2468
      %v2470 = vrot.slane %v1816, %v2469
      %v2471 = vlaneseq
      %v2472 = vshrl.u32 %v2471, 7
      %v2473 = vsub.s32 0, %v2472
      %v2474 = vrot.slane %v1830, %v2473
      %v2475 = vlaneseq
      %v2476 = vshrl.u32 %v2475, 7
      %v2477 = vsub.s32 0, %v2476
      %v2478 = vrot.slane %v1838, %v2477
      %v2479 = vlaneseq
      %v2480 = vshrl.u32 %v2479, 7
      %v2481 = vsub.s32 0, %v2480
      %v2482 = vrot.slane %v1840, %v2481
      %v2483 = vlaneseq
      %v2484 = vshrl.u32 %v2483, 7
      %v2485 = vsub.s32 0, %v2484
      %v2486 = vrot.slane %v1823, %v2485
      %v2487 = vlaneseq
      %v2488 = vshrl.u32 %v2487, 7
      %v2489 = vsub.s32 0, %v2488
      %v2490 = vrot.slane %v1837, %v2489
      %v2491 = vlaneseq
      %v2492 = vshrl.u32 %v2491, 7
      %v2493 = vsub.s32 0, %v2492
      %v2494 = vrot.slane %v1839, %v2493
      %v2495 = vlaneseq
      %v2496 = vshrl.u32 %v2495, 7
      %v2497 = vsub.s32 0, %v2496
      %v2498 = vrot.slane %v1841, %v2497
      %v2499 = vlaneseq
      %v2500 = vshrl.u32 %v2499, 7
      %v2501 = vsub.s32 0, %v2500
      %v2502 = vrot.slane %v1865, %v2501
      %v2503 = vlaneseq
      %v2504 = vshrl.u32 %v2503, 7
      %v2505 = vsub.s32 0, %v2504
      %v2506 = vrot.slane %v1879, %v2505
      %v2507 = vlaneseq
      %v2508 = vshrl.u32 %v2507, 7
      %v2509 = vsub.s32 0, %v2508
      %v2510 = vrot.slane %v1887, %v2509
      %v2511 = vlaneseq
      %v2512 = vshrl.u32 %v2511, 7
      %v2513 = vsub.s32 0, %v2512
      %v2514 = vrot.slane %v1889, %v2513
      %v2515 = vlaneseq
      %v2516 = vshrl.u32 %v2515, 7
      %v2517 = vsub.s32 0, %v2516
      %v2518 = vrot.slane %v1872, %v2517
      %v2519 = vlaneseq
      %v2520 = vshrl.u32 %v2519, 7
      %v2521 = vsub.s32 0, %v2520
      %v2522 = vrot.slane %v1886, %v2521
      %v2523 = vlaneseq
      %v2524 = vshrl.u32 %v2523, 7
      %v2525 = vsub.s32 0, %v2524
      %v2526 = vrot.slane %v1888, %v2525
      %v2527 = vlaneseq
      %v2528 = vshrl.u32 %v2527, 7
      %v2529 = vsub.s32 0, %v2528
      %v2530 = vrot.slane %v1890, %v2529
      %2531 = vrot.lane.b32.xlu0 %v2022, 124
      %v2532 = vpop.permute.xlu0 %2531
      %2533 = vrot.lane.b32.xlu0 %v2026, 124
      %v2534 = vpop.permute.xlu0 %2533
      %2535 = vrot.lane.b32.xlu0 %v2030, 124
      %v2536 = vpop.permute.xlu0 %2535
      %2537 = vrot.lane.b32.xlu0 %v2034, 124
      %v2538 = vpop.permute.xlu0 %2537
      %2539 = vrot.lane.b32.xlu0 %v2038, 124
      %v2540 = vpop.permute.xlu0 %2539
      %2541 = vrot.lane.b32.xlu0 %v2042, 124
      %v2542 = vpop.permute.xlu0 %2541
      %2543 = vrot.lane.b32.xlu0 %v2046, 124
      %v2544 = vpop.permute.xlu0 %2543
      %2545 = vrot.lane.b32.xlu0 %v2050, 124
      %v2546 = vpop.permute.xlu0 %2545
      %2547 = vrot.lane.b32.xlu0 %v2054, 124
      %v2548 = vpop.permute.xlu0 %2547
      %2549 = vrot.lane.b32.xlu0 %v2058, 124
      %v2550 = vpop.permute.xlu0 %2549
      %2551 = vrot.lane.b32.xlu0 %v2062, 124
      %v2552 = vpop.permute.xlu0 %2551
      %2553 = vrot.lane.b32.xlu0 %v2066, 124
      %v2554 = vpop.permute.xlu0 %2553
      %2555 = vrot.lane.b32.xlu0 %v2070, 124
      %v2556 = vpop.permute.xlu0 %2555
      %2557 = vrot.lane.b32.xlu0 %v2074, 124
      %v2558 = vpop.permute.xlu0 %2557
      %2559 = vrot.lane.b32.xlu0 %v2078, 124
      %v2560 = vpop.permute.xlu0 %2559
      %2561 = vrot.lane.b32.xlu0 %v2082, 124
      %v2562 = vpop.permute.xlu0 %2561
      %2563 = vrot.lane.b32.xlu0 %v2086, 124
      %v2564 = vpop.permute.xlu0 %2563
      %2565 = vrot.lane.b32.xlu0 %v2090, 124
      %v2566 = vpop.permute.xlu0 %2565
      %2567 = vrot.lane.b32.xlu0 %v2094, 124
      %v2568 = vpop.permute.xlu0 %2567
      %2569 = vrot.lane.b32.xlu0 %v2098, 124
      %v2570 = vpop.permute.xlu0 %2569
      %2571 = vrot.lane.b32.xlu0 %v2102, 124
      %v2572 = vpop.permute.xlu0 %2571
      %2573 = vrot.lane.b32.xlu0 %v2106, 124
      %v2574 = vpop.permute.xlu0 %2573
      %2575 = vrot.lane.b32.xlu0 %v2110, 124
      %v2576 = vpop.permute.xlu0 %2575
      %2577 = vrot.lane.b32.xlu0 %v2114, 124
      %v2578 = vpop.permute.xlu0 %2577
      %2579 = vrot.lane.b32.xlu0 %v2118, 124
      %v2580 = vpop.permute.xlu0 %2579
      %2581 = vrot.lane.b32.xlu0 %v2122, 124
      %v2582 = vpop.permute.xlu0 %2581
      %2583 = vrot.lane.b32.xlu0 %v2126, 124
      %v2584 = vpop.permute.xlu0 %2583
      %2585 = vrot.lane.b32.xlu0 %v2130, 124
      %v2586 = vpop.permute.xlu0 %2585
      %2587 = vrot.lane.b32.xlu0 %v2134, 124
      %v2588 = vpop.permute.xlu0 %2587
      %2589 = vrot.lane.b32.xlu0 %v2138, 124
      %v2590 = vpop.permute.xlu0 %2589
      %2591 = vrot.lane.b32.xlu0 %v2142, 124
      %v2592 = vpop.permute.xlu0 %2591
      %2593 = vrot.lane.b32.xlu0 %v2146, 124
      %v2594 = vpop.permute.xlu0 %2593
      %2595 = vrot.lane.b32.xlu0 %v2150, 124
      %v2596 = vpop.permute.xlu0 %2595
      %2597 = vrot.lane.b32.xlu0 %v2154, 124
      %v2598 = vpop.permute.xlu0 %2597
      %2599 = vrot.lane.b32.xlu0 %v2158, 124
      %v2600 = vpop.permute.xlu0 %2599
      %2601 = vrot.lane.b32.xlu0 %v2162, 124
      %v2602 = vpop.permute.xlu0 %2601
      %2603 = vrot.lane.b32.xlu0 %v2166, 124
      %v2604 = vpop.permute.xlu0 %2603
      %2605 = vrot.lane.b32.xlu0 %v2170, 124
      %v2606 = vpop.permute.xlu0 %2605
      %2607 = vrot.lane.b32.xlu0 %v2174, 124
      %v2608 = vpop.permute.xlu0 %2607
      %2609 = vrot.lane.b32.xlu0 %v2178, 124
      %v2610 = vpop.permute.xlu0 %2609
      %2611 = vrot.lane.b32.xlu0 %v2182, 124
      %v2612 = vpop.permute.xlu0 %2611
      %2613 = vrot.lane.b32.xlu0 %v2186, 124
      %v2614 = vpop.permute.xlu0 %2613
      %2615 = vrot.lane.b32.xlu0 %v2190, 124
      %v2616 = vpop.permute.xlu0 %2615
      %2617 = vrot.lane.b32.xlu0 %v2194, 124
      %v2618 = vpop.permute.xlu0 %2617
      %2619 = vrot.lane.b32.xlu0 %v2198, 124
      %v2620 = vpop.permute.xlu0 %2619
      %2621 = vrot.lane.b32.xlu0 %v2202, 124
      %v2622 = vpop.permute.xlu0 %2621
      %2623 = vrot.lane.b32.xlu0 %v2206, 124
      %v2624 = vpop.permute.xlu0 %2623
      %2625 = vrot.lane.b32.xlu0 %v2210, 124
      %v2626 = vpop.permute.xlu0 %2625
      %2627 = vrot.lane.b32.xlu0 %v2214, 124
      %v2628 = vpop.permute.xlu0 %2627
      %2629 = vrot.lane.b32.xlu0 %v2218, 124
      %v2630 = vpop.permute.xlu0 %2629
      %2631 = vrot.lane.b32.xlu0 %v2222, 124
      %v2632 = vpop.permute.xlu0 %2631
      %2633 = vrot.lane.b32.xlu0 %v2226, 124
      %v2634 = vpop.permute.xlu0 %2633
      %2635 = vrot.lane.b32.xlu0 %v2230, 124
      %v2636 = vpop.permute.xlu0 %2635
      %2637 = vrot.lane.b32.xlu0 %v2234, 124
      %v2638 = vpop.permute.xlu0 %2637
      %2639 = vrot.lane.b32.xlu0 %v2238, 124
      %v2640 = vpop.permute.xlu0 %2639
      %2641 = vrot.lane.b32.xlu0 %v2242, 124
      %v2642 = vpop.permute.xlu0 %2641
      %2643 = vrot.lane.b32.xlu0 %v2246, 124
      %v2644 = vpop.permute.xlu0 %2643
      %2645 = vrot.lane.b32.xlu0 %v2250, 124
      %v2646 = vpop.permute.xlu0 %2645
      %2647 = vrot.lane.b32.xlu0 %v2254, 124
      %v2648 = vpop.permute.xlu0 %2647
      %2649 = vrot.lane.b32.xlu0 %v2258, 124
      %v2650 = vpop.permute.xlu0 %2649
      %2651 = vrot.lane.b32.xlu0 %v2262, 124
      %v2652 = vpop.permute.xlu0 %2651
      %2653 = vrot.lane.b32.xlu0 %v2266, 124
      %v2654 = vpop.permute.xlu0 %2653
      %2655 = vrot.lane.b32.xlu0 %v2270, 124
      %v2656 = vpop.permute.xlu0 %2655
      %2657 = vrot.lane.b32.xlu0 %v2274, 124
      %v2658 = vpop.permute.xlu0 %2657
      %2659 = vrot.lane.b32.xlu0 %v2278, 124
      %v2660 = vpop.permute.xlu0 %2659
      %2661 = vrot.lane.b32.xlu0 %v2282, 124
      %v2662 = vpop.permute.xlu0 %2661
      %2663 = vrot.lane.b32.xlu0 %v2286, 124
      %v2664 = vpop.permute.xlu0 %2663
      %2665 = vrot.lane.b32.xlu0 %v2290, 124
      %v2666 = vpop.permute.xlu0 %2665
      %2667 = vrot.lane.b32.xlu0 %v2294, 124
      %v2668 = vpop.permute.xlu0 %2667
      %2669 = vrot.lane.b32.xlu0 %v2298, 124
      %v2670 = vpop.permute.xlu0 %2669
      %2671 = vrot.lane.b32.xlu0 %v2302, 124
      %v2672 = vpop.permute.xlu0 %2671
      %2673 = vrot.lane.b32.xlu0 %v2306, 124
      %v2674 = vpop.permute.xlu0 %2673
      %2675 = vrot.lane.b32.xlu0 %v2310, 124
      %v2676 = vpop.permute.xlu0 %2675
      %2677 = vrot.lane.b32.xlu0 %v2314, 124
      %v2678 = vpop.permute.xlu0 %2677
      %2679 = vrot.lane.b32.xlu0 %v2318, 124
      %v2680 = vpop.permute.xlu0 %2679
      %2681 = vrot.lane.b32.xlu0 %v2322, 124
      %v2682 = vpop.permute.xlu0 %2681
      %2683 = vrot.lane.b32.xlu0 %v2326, 124
      %v2684 = vpop.permute.xlu0 %2683
      %2685 = vrot.lane.b32.xlu0 %v2330, 124
      %v2686 = vpop.permute.xlu0 %2685
      %2687 = vrot.lane.b32.xlu0 %v2334, 124
      %v2688 = vpop.permute.xlu0 %2687
      %2689 = vrot.lane.b32.xlu0 %v2338, 124
      %v2690 = vpop.permute.xlu0 %2689
      %2691 = vrot.lane.b32.xlu0 %v2342, 124
      %v2692 = vpop.permute.xlu0 %2691
      %2693 = vrot.lane.b32.xlu0 %v2346, 124
      %v2694 = vpop.permute.xlu0 %2693
      %2695 = vrot.lane.b32.xlu0 %v2350, 124
      %v2696 = vpop.permute.xlu0 %2695
      %2697 = vrot.lane.b32.xlu0 %v2354, 124
      %v2698 = vpop.permute.xlu0 %2697
      %2699 = vrot.lane.b32.xlu0 %v2358, 124
      %v2700 = vpop.permute.xlu0 %2699
      %2701 = vrot.lane.b32.xlu0 %v2362, 124
      %v2702 = vpop.permute.xlu0 %2701
      %2703 = vrot.lane.b32.xlu0 %v2366, 124
      %v2704 = vpop.permute.xlu0 %2703
      %2705 = vrot.lane.b32.xlu0 %v2370, 124
      %v2706 = vpop.permute.xlu0 %2705
      %2707 = vrot.lane.b32.xlu0 %v2374, 124
      %v2708 = vpop.permute.xlu0 %2707
      %2709 = vrot.lane.b32.xlu0 %v2378, 124
      %v2710 = vpop.permute.xlu0 %2709
      %2711 = vrot.lane.b32.xlu0 %v2382, 124
      %v2712 = vpop.permute.xlu0 %2711
      %2713 = vrot.lane.b32.xlu0 %v2386, 124
      %v2714 = vpop.permute.xlu0 %2713
      %2715 = vrot.lane.b32.xlu0 %v2390, 124
      %v2716 = vpop.permute.xlu0 %2715
      %2717 = vrot.lane.b32.xlu0 %v2394, 124
      %v2718 = vpop.permute.xlu0 %2717
      %2719 = vrot.lane.b32.xlu0 %v2398, 124
      %v2720 = vpop.permute.xlu0 %2719
      %2721 = vrot.lane.b32.xlu0 %v2402, 124
      %v2722 = vpop.permute.xlu0 %2721
      %2723 = vrot.lane.b32.xlu0 %v2406, 124
      %v2724 = vpop.permute.xlu0 %2723
      %2725 = vrot.lane.b32.xlu0 %v2410, 124
      %v2726 = vpop.permute.xlu0 %2725
      %2727 = vrot.lane.b32.xlu0 %v2414, 124
      %v2728 = vpop.permute.xlu0 %2727
      %2729 = vrot.lane.b32.xlu0 %v2418, 124
      %v2730 = vpop.permute.xlu0 %2729
      %2731 = vrot.lane.b32.xlu0 %v2422, 124
      %v2732 = vpop.permute.xlu0 %2731
      %2733 = vrot.lane.b32.xlu0 %v2426, 124
      %v2734 = vpop.permute.xlu0 %2733
      %2735 = vrot.lane.b32.xlu0 %v2430, 124
      %v2736 = vpop.permute.xlu0 %2735
      %2737 = vrot.lane.b32.xlu0 %v2434, 124
      %v2738 = vpop.permute.xlu0 %2737
      %2739 = vrot.lane.b32.xlu0 %v2438, 124
      %v2740 = vpop.permute.xlu0 %2739
      %2741 = vrot.lane.b32.xlu0 %v2442, 124
      %v2742 = vpop.permute.xlu0 %2741
      %2743 = vrot.lane.b32.xlu0 %v2446, 124
      %v2744 = vpop.permute.xlu0 %2743
      %2745 = vrot.lane.b32.xlu0 %v2450, 124
      %v2746 = vpop.permute.xlu0 %2745
      %2747 = vrot.lane.b32.xlu0 %v2454, 124
      %v2748 = vpop.permute.xlu0 %2747
      %2749 = vrot.lane.b32.xlu0 %v2458, 124
      %v2750 = vpop.permute.xlu0 %2749
      %2751 = vrot.lane.b32.xlu0 %v2462, 124
      %v2752 = vpop.permute.xlu0 %2751
      %2753 = vrot.lane.b32.xlu0 %v2466, 124
      %v2754 = vpop.permute.xlu0 %2753
      %2755 = vrot.lane.b32.xlu0 %v2470, 124
      %v2756 = vpop.permute.xlu0 %2755
      %2757 = vrot.lane.b32.xlu0 %v2474, 124
      %v2758 = vpop.permute.xlu0 %2757
      %2759 = vrot.lane.b32.xlu0 %v2478, 124
      %v2760 = vpop.permute.xlu0 %2759
      %2761 = vrot.lane.b32.xlu0 %v2482, 124
      %v2762 = vpop.permute.xlu0 %2761
      %2763 = vrot.lane.b32.xlu0 %v2486, 124
      %v2764 = vpop.permute.xlu0 %2763
      %2765 = vrot.lane.b32.xlu0 %v2490, 124
      %v2766 = vpop.permute.xlu0 %2765
      %2767 = vrot.lane.b32.xlu0 %v2494, 124
      %v2768 = vpop.permute.xlu0 %2767
      %2769 = vrot.lane.b32.xlu0 %v2498, 124
      %v2770 = vpop.permute.xlu0 %2769
      %2771 = vrot.lane.b32.xlu0 %v2502, 124
      %v2772 = vpop.permute.xlu0 %2771
      %2773 = vrot.lane.b32.xlu0 %v2506, 124
      %v2774 = vpop.permute.xlu0 %2773
      %2775 = vrot.lane.b32.xlu0 %v2510, 124
      %v2776 = vpop.permute.xlu0 %2775
      %2777 = vrot.lane.b32.xlu0 %v2514, 124
      %v2778 = vpop.permute.xlu0 %2777
      %2779 = vrot.lane.b32.xlu0 %v2518, 124
      %v2780 = vpop.permute.xlu0 %2779
      %2781 = vrot.lane.b32.xlu0 %v2522, 124
      %v2782 = vpop.permute.xlu0 %2781
      %2783 = vrot.lane.b32.xlu0 %v2526, 124
      %v2784 = vpop.permute.xlu0 %2783
      %2785 = vrot.lane.b32.xlu0 %v2530, 124
      %v2786 = vpop.permute.xlu0 %2785
      %vm2915 = vcmask 1040384
      %v2916 = vsel %vm2915, %v1130, %v2532
      %v2917 = vsel %vm2915, %v1144, %v2534
      %v2918 = vsel %vm2915, %v1152, %v2536
      %v2919 = vsel %vm2915, %v1154, %v2538
      %v2920 = vsel %vm2915, %v1137, %v2540
      %v2921 = vsel %vm2915, %v1151, %v2542
      %v2922 = vsel %vm2915, %v1153, %v2544
      %v2923 = vsel %vm2915, %v1155, %v2546
      %v2924 = vsel %vm2915, %v1179, %v2548
      %v2925 = vsel %vm2915, %v1193, %v2550
      %v2926 = vsel %vm2915, %v1201, %v2552
      %v2927 = vsel %vm2915, %v1203, %v2554
      %v2928 = vsel %vm2915, %v1186, %v2556
      %v2929 = vsel %vm2915, %v1200, %v2558
      %v2930 = vsel %vm2915, %v1202, %v2560
      %v2931 = vsel %vm2915, %v1204, %v2562
      %v2932 = vsel %vm2915, %v1228, %v2564
      %v2933 = vsel %vm2915, %v1242, %v2566
      %v2934 = vsel %vm2915, %v1250, %v2568
      %v2935 = vsel %vm2915, %v1252, %v2570
      %v2936 = vsel %vm2915, %v1235, %v2572
      %v2937 = vsel %vm2915, %v1249, %v2574
      %v2938 = vsel %vm2915, %v1251, %v2576
      %v2939 = vsel %vm2915, %v1253, %v2578
      %v2940 = vsel %vm2915, %v1277, %v2580
      %v2941 = vsel %vm2915, %v1291, %v2582
      %v2942 = vsel %vm2915, %v1299, %v2584
      %v2943 = vsel %vm2915, %v1301, %v2586
      %v2944 = vsel %vm2915, %v1284, %v2588
      %v2945 = vsel %vm2915, %v1298, %v2590
      %v2946 = vsel %vm2915, %v1300, %v2592
      %v2947 = vsel %vm2915, %v1302, %v2594
      %v2948 = vsel %vm2915, %v1326, %v2596
      %v2949 = vsel %vm2915, %v1340, %v2598
      %v2950 = vsel %vm2915, %v1348, %v2600
      %v2951 = vsel %vm2915, %v1350, %v2602
      %v2952 = vsel %vm2915, %v1333, %v2604
      %v2953 = vsel %vm2915, %v1347, %v2606
      %v2954 = vsel %vm2915, %v1349, %v2608
      %v2955 = vsel %vm2915, %v1351, %v2610
      %v2956 = vsel %vm2915, %v1375, %v2612
      %v2957 = vsel %vm2915, %v1389, %v2614
      %v2958 = vsel %vm2915, %v1397, %v2616
      %v2959 = vsel %vm2915, %v1399, %v2618
      %v2960 = vsel %vm2915, %v1382, %v2620
      %v2961 = vsel %vm2915, %v1396, %v2622
      %v2962 = vsel %vm2915, %v1398, %v2624
      %v2963 = vsel %vm2915, %v1400, %v2626
      %v2964 = vsel %vm2915, %v1424, %v2628
      %v2965 = vsel %vm2915, %v1438, %v2630
      %v2966 = vsel %vm2915, %v1446, %v2632
      %v2967 = vsel %vm2915, %v1448, %v2634
      %v2968 = vsel %vm2915, %v1431, %v2636
      %v2969 = vsel %vm2915, %v1445, %v2638
      %v2970 = vsel %vm2915, %v1447, %v2640
      %v2971 = vsel %vm2915, %v1449, %v2642
      %v2972 = vsel %vm2915, %v1473, %v2644
      %v2973 = vsel %vm2915, %v1487, %v2646
      %v2974 = vsel %vm2915, %v1495, %v2648
      %v2975 = vsel %vm2915, %v1497, %v2650
      %v2976 = vsel %vm2915, %v1480, %v2652
      %v2977 = vsel %vm2915, %v1494, %v2654
      %v2978 = vsel %vm2915, %v1496, %v2656
      %v2979 = vsel %vm2915, %v1498, %v2658
      %v2980 = vsel %vm2915, %v1522, %v2660
      %v2981 = vsel %vm2915, %v1536, %v2662
      %v2982 = vsel %vm2915, %v1544, %v2664
      %v2983 = vsel %vm2915, %v1546, %v2666
      %v2984 = vsel %vm2915, %v1529, %v2668
      %v2985 = vsel %vm2915, %v1543, %v2670
      %v2986 = vsel %vm2915, %v1545, %v2672
      %v2987 = vsel %vm2915, %v1547, %v2674
      %v2988 = vsel %vm2915, %v1571, %v2676
      %v2989 = vsel %vm2915, %v1585, %v2678
      %v2990 = vsel %vm2915, %v1593, %v2680
      %v2991 = vsel %vm2915, %v1595, %v2682
      %v2992 = vsel %vm2915, %v1578, %v2684
      %v2993 = vsel %vm2915, %v1592, %v2686
      %v2994 = vsel %vm2915, %v1594, %v2688
      %v2995 = vsel %vm2915, %v1596, %v2690
      %v2996 = vsel %vm2915, %v1620, %v2692
      %v2997 = vsel %vm2915, %v1634, %v2694
      %v2998 = vsel %vm2915, %v1642, %v2696
      %v2999 = vsel %vm2915, %v1644, %v2698
      %v3000 = vsel %vm2915, %v1627, %v2700
      %v3001 = vsel %vm2915, %v1641, %v2702
      %v3002 = vsel %vm2915, %v1643, %v2704
      %v3003 = vsel %vm2915, %v1645, %v2706
      %v3004 = vsel %vm2915, %v1669, %v2708
      %v3005 = vsel %vm2915, %v1683, %v2710
      %v3006 = vsel %vm2915, %v1691, %v2712
      %v3007 = vsel %vm2915, %v1693, %v2714
      %v3008 = vsel %vm2915, %v1676, %v2716
      %v3009 = vsel %vm2915, %v1690, %v2718
      %v3010 = vsel %vm2915, %v1692, %v2720
      %v3011 = vsel %vm2915, %v1694, %v2722
      %v3012 = vsel %vm2915, %v1718, %v2724
      %v3013 = vsel %vm2915, %v1732, %v2726
      %v3014 = vsel %vm2915, %v1740, %v2728
      %v3015 = vsel %vm2915, %v1742, %v2730
      %v3016 = vsel %vm2915, %v1725, %v2732
      %v3017 = vsel %vm2915, %v1739, %v2734
      %v3018 = vsel %vm2915, %v1741, %v2736
      %v3019 = vsel %vm2915, %v1743, %v2738
      %v3020 = vsel %vm2915, %v1767, %v2740
      %v3021 = vsel %vm2915, %v1781, %v2742
      %v3022 = vsel %vm2915, %v1789, %v2744
      %v3023 = vsel %vm2915, %v1791, %v2746
      %v3024 = vsel %vm2915, %v1774, %v2748
      %v3025 = vsel %vm2915, %v1788, %v2750
      %v3026 = vsel %vm2915, %v1790, %v2752
      %v3027 = vsel %vm2915, %v1792, %v2754
      %v3028 = vsel %vm2915, %v1816, %v2756
      %v3029 = vsel %vm2915, %v1830, %v2758
      %v3030 = vsel %vm2915, %v1838, %v2760
      %v3031 = vsel %vm2915, %v1840, %v2762
      %v3032 = vsel %vm2915, %v1823, %v2764
      %v3033 = vsel %vm2915, %v1837, %v2766
      %v3034 = vsel %vm2915, %v1839, %v2768
      %v3035 = vsel %vm2915, %v1841, %v2770
      %v3036 = vsel %vm2915, %v1865, %v2772
      %v3037 = vsel %vm2915, %v1879, %v2774
      %v3038 = vsel %vm2915, %v1887, %v2776
      %v3039 = vsel %vm2915, %v1889, %v2778
      %v3040 = vsel %vm2915, %v1872, %v2780
      %v3041 = vsel %vm2915, %v1886, %v2782
      %v3042 = vsel %vm2915, %v1888, %v2784
      %v3043 = vsel %vm2915, %v1890, %v2786
      %3172 = vrot.lane.b32.xlu0 %v2916, 120
      %v3173 = vpop.permute.xlu0 %3172
      %3174 = vrot.lane.b32.xlu0 %v2917, 120
      %v3175 = vpop.permute.xlu0 %3174
      %3176 = vrot.lane.b32.xlu0 %v2918, 120
      %v3177 = vpop.permute.xlu0 %3176
      %3178 = vrot.lane.b32.xlu0 %v2919, 120
      %v3179 = vpop.permute.xlu0 %3178
      %3180 = vrot.lane.b32.xlu0 %v2920, 120
      %v3181 = vpop.permute.xlu0 %3180
      %3182 = vrot.lane.b32.xlu0 %v2921, 120
      %v3183 = vpop.permute.xlu0 %3182
      %3184 = vrot.lane.b32.xlu0 %v2922, 120
      %v3185 = vpop.permute.xlu0 %3184
      %3186 = vrot.lane.b32.xlu0 %v2923, 120
      %v3187 = vpop.permute.xlu0 %3186
      %3188 = vrot.lane.b32.xlu0 %v2924, 120
      %v3189 = vpop.permute.xlu0 %3188
      %3190 = vrot.lane.b32.xlu0 %v2925, 120
      %v3191 = vpop.permute.xlu0 %3190
      %3192 = vrot.lane.b32.xlu0 %v2926, 120
      %v3193 = vpop.permute.xlu0 %3192
      %3194 = vrot.lane.b32.xlu0 %v2927, 120
      %v3195 = vpop.permute.xlu0 %3194
      %3196 = vrot.lane.b32.xlu0 %v2928, 120
      %v3197 = vpop.permute.xlu0 %3196
      %3198 = vrot.lane.b32.xlu0 %v2929, 120
      %v3199 = vpop.permute.xlu0 %3198
      %3200 = vrot.lane.b32.xlu0 %v2930, 120
      %v3201 = vpop.permute.xlu0 %3200
      %3202 = vrot.lane.b32.xlu0 %v2931, 120
      %v3203 = vpop.permute.xlu0 %3202
      %3204 = vrot.lane.b32.xlu0 %v2932, 120
      %v3205 = vpop.permute.xlu0 %3204
      %3206 = vrot.lane.b32.xlu0 %v2933, 120
      %v3207 = vpop.permute.xlu0 %3206
      %3208 = vrot.lane.b32.xlu0 %v2934, 120
      %v3209 = vpop.permute.xlu0 %3208
      %3210 = vrot.lane.b32.xlu0 %v2935, 120
      %v3211 = vpop.permute.xlu0 %3210
      %3212 = vrot.lane.b32.xlu0 %v2936, 120
      %v3213 = vpop.permute.xlu0 %3212
      %3214 = vrot.lane.b32.xlu0 %v2937, 120
      %v3215 = vpop.permute.xlu0 %3214
      %3216 = vrot.lane.b32.xlu0 %v2938, 120
      %v3217 = vpop.permute.xlu0 %3216
      %3218 = vrot.lane.b32.xlu0 %v2939, 120
      %v3219 = vpop.permute.xlu0 %3218
      %3220 = vrot.lane.b32.xlu0 %v2940, 120
      %v3221 = vpop.permute.xlu0 %3220
      %3222 = vrot.lane.b32.xlu0 %v2941, 120
      %v3223 = vpop.permute.xlu0 %3222
      %3224 = vrot.lane.b32.xlu0 %v2942, 120
      %v3225 = vpop.permute.xlu0 %3224
      %3226 = vrot.lane.b32.xlu0 %v2943, 120
      %v3227 = vpop.permute.xlu0 %3226
      %3228 = vrot.lane.b32.xlu0 %v2944, 120
      %v3229 = vpop.permute.xlu0 %3228
      %3230 = vrot.lane.b32.xlu0 %v2945, 120
      %v3231 = vpop.permute.xlu0 %3230
      %3232 = vrot.lane.b32.xlu0 %v2946, 120
      %v3233 = vpop.permute.xlu0 %3232
      %3234 = vrot.lane.b32.xlu0 %v2947, 120
      %v3235 = vpop.permute.xlu0 %3234
      %3236 = vrot.lane.b32.xlu0 %v2948, 120
      %v3237 = vpop.permute.xlu0 %3236
      %3238 = vrot.lane.b32.xlu0 %v2949, 120
      %v3239 = vpop.permute.xlu0 %3238
      %3240 = vrot.lane.b32.xlu0 %v2950, 120
      %v3241 = vpop.permute.xlu0 %3240
      %3242 = vrot.lane.b32.xlu0 %v2951, 120
      %v3243 = vpop.permute.xlu0 %3242
      %3244 = vrot.lane.b32.xlu0 %v2952, 120
      %v3245 = vpop.permute.xlu0 %3244
      %3246 = vrot.lane.b32.xlu0 %v2953, 120
      %v3247 = vpop.permute.xlu0 %3246
      %3248 = vrot.lane.b32.xlu0 %v2954, 120
      %v3249 = vpop.permute.xlu0 %3248
      %3250 = vrot.lane.b32.xlu0 %v2955, 120
      %v3251 = vpop.permute.xlu0 %3250
      %3252 = vrot.lane.b32.xlu0 %v2956, 120
      %v3253 = vpop.permute.xlu0 %3252
      %3254 = vrot.lane.b32.xlu0 %v2957, 120
      %v3255 = vpop.permute.xlu0 %3254
      %3256 = vrot.lane.b32.xlu0 %v2958, 120
      %v3257 = vpop.permute.xlu0 %3256
      %3258 = vrot.lane.b32.xlu0 %v2959, 120
      %v3259 = vpop.permute.xlu0 %3258
      %3260 = vrot.lane.b32.xlu0 %v2960, 120
      %v3261 = vpop.permute.xlu0 %3260
      %3262 = vrot.lane.b32.xlu0 %v2961, 120
      %v3263 = vpop.permute.xlu0 %3262
      %3264 = vrot.lane.b32.xlu0 %v2962, 120
      %v3265 = vpop.permute.xlu0 %3264
      %3266 = vrot.lane.b32.xlu0 %v2963, 120
      %v3267 = vpop.permute.xlu0 %3266
      %3268 = vrot.lane.b32.xlu0 %v2964, 120
      %v3269 = vpop.permute.xlu0 %3268
      %3270 = vrot.lane.b32.xlu0 %v2965, 120
      %v3271 = vpop.permute.xlu0 %3270
      %3272 = vrot.lane.b32.xlu0 %v2966, 120
      %v3273 = vpop.permute.xlu0 %3272
      %3274 = vrot.lane.b32.xlu0 %v2967, 120
      %v3275 = vpop.permute.xlu0 %3274
      %3276 = vrot.lane.b32.xlu0 %v2968, 120
      %v3277 = vpop.permute.xlu0 %3276
      %3278 = vrot.lane.b32.xlu0 %v2969, 120
      %v3279 = vpop.permute.xlu0 %3278
      %3280 = vrot.lane.b32.xlu0 %v2970, 120
      %v3281 = vpop.permute.xlu0 %3280
      %3282 = vrot.lane.b32.xlu0 %v2971, 120
      %v3283 = vpop.permute.xlu0 %3282
      %3284 = vrot.lane.b32.xlu0 %v2972, 120
      %v3285 = vpop.permute.xlu0 %3284
      %3286 = vrot.lane.b32.xlu0 %v2973, 120
      %v3287 = vpop.permute.xlu0 %3286
      %3288 = vrot.lane.b32.xlu0 %v2974, 120
      %v3289 = vpop.permute.xlu0 %3288
      %3290 = vrot.lane.b32.xlu0 %v2975, 120
      %v3291 = vpop.permute.xlu0 %3290
      %3292 = vrot.lane.b32.xlu0 %v2976, 120
      %v3293 = vpop.permute.xlu0 %3292
      %3294 = vrot.lane.b32.xlu0 %v2977, 120
      %v3295 = vpop.permute.xlu0 %3294
      %3296 = vrot.lane.b32.xlu0 %v2978, 120
      %v3297 = vpop.permute.xlu0 %3296
      %3298 = vrot.lane.b32.xlu0 %v2979, 120
      %v3299 = vpop.permute.xlu0 %3298
      %3300 = vrot.lane.b32.xlu0 %v2980, 120
      %v3301 = vpop.permute.xlu0 %3300
      %3302 = vrot.lane.b32.xlu0 %v2981, 120
      %v3303 = vpop.permute.xlu0 %3302
      %3304 = vrot.lane.b32.xlu0 %v2982, 120
      %v3305 = vpop.permute.xlu0 %3304
      %3306 = vrot.lane.b32.xlu0 %v2983, 120
      %v3307 = vpop.permute.xlu0 %3306
      %3308 = vrot.lane.b32.xlu0 %v2984, 120
      %v3309 = vpop.permute.xlu0 %3308
      %3310 = vrot.lane.b32.xlu0 %v2985, 120
      %v3311 = vpop.permute.xlu0 %3310
      %3312 = vrot.lane.b32.xlu0 %v2986, 120
      %v3313 = vpop.permute.xlu0 %3312
      %3314 = vrot.lane.b32.xlu0 %v2987, 120
      %v3315 = vpop.permute.xlu0 %3314
      %3316 = vrot.lane.b32.xlu0 %v2988, 120
      %v3317 = vpop.permute.xlu0 %3316
      %3318 = vrot.lane.b32.xlu0 %v2989, 120
      %v3319 = vpop.permute.xlu0 %3318
      %3320 = vrot.lane.b32.xlu0 %v2990, 120
      %v3321 = vpop.permute.xlu0 %3320
      %3322 = vrot.lane.b32.xlu0 %v2991, 120
      %v3323 = vpop.permute.xlu0 %3322
      %3324 = vrot.lane.b32.xlu0 %v2992, 120
      %v3325 = vpop.permute.xlu0 %3324
      %3326 = vrot.lane.b32.xlu0 %v2993, 120
      %v3327 = vpop.permute.xlu0 %3326
      %3328 = vrot.lane.b32.xlu0 %v2994, 120
      %v3329 = vpop.permute.xlu0 %3328
      %3330 = vrot.lane.b32.xlu0 %v2995, 120
      %v3331 = vpop.permute.xlu0 %3330
      %3332 = vrot.lane.b32.xlu0 %v2996, 120
      %v3333 = vpop.permute.xlu0 %3332
      %3334 = vrot.lane.b32.xlu0 %v2997, 120
      %v3335 = vpop.permute.xlu0 %3334
      %3336 = vrot.lane.b32.xlu0 %v2998, 120
      %v3337 = vpop.permute.xlu0 %3336
      %3338 = vrot.lane.b32.xlu0 %v2999, 120
      %v3339 = vpop.permute.xlu0 %3338
      %3340 = vrot.lane.b32.xlu0 %v3000, 120
      %v3341 = vpop.permute.xlu0 %3340
      %3342 = vrot.lane.b32.xlu0 %v3001, 120
      %v3343 = vpop.permute.xlu0 %3342
      %3344 = vrot.lane.b32.xlu0 %v3002, 120
      %v3345 = vpop.permute.xlu0 %3344
      %3346 = vrot.lane.b32.xlu0 %v3003, 120
      %v3347 = vpop.permute.xlu0 %3346
      %3348 = vrot.lane.b32.xlu0 %v3004, 120
      %v3349 = vpop.permute.xlu0 %3348
      %3350 = vrot.lane.b32.xlu0 %v3005, 120
      %v3351 = vpop.permute.xlu0 %3350
      %3352 = vrot.lane.b32.xlu0 %v3006, 120
      %v3353 = vpop.permute.xlu0 %3352
      %3354 = vrot.lane.b32.xlu0 %v3007, 120
      %v3355 = vpop.permute.xlu0 %3354
      %3356 = vrot.lane.b32.xlu0 %v3008, 120
      %v3357 = vpop.permute.xlu0 %3356
      %3358 = vrot.lane.b32.xlu0 %v3009, 120
      %v3359 = vpop.permute.xlu0 %3358
      %3360 = vrot.lane.b32.xlu0 %v3010, 120
      %v3361 = vpop.permute.xlu0 %3360
      %3362 = vrot.lane.b32.xlu0 %v3011, 120
      %v3363 = vpop.permute.xlu0 %3362
      %3364 = vrot.lane.b32.xlu0 %v3012, 120
      %v3365 = vpop.permute.xlu0 %3364
      %3366 = vrot.lane.b32.xlu0 %v3013, 120
      %v3367 = vpop.permute.xlu0 %3366
      %3368 = vrot.lane.b32.xlu0 %v3014, 120
      %v3369 = vpop.permute.xlu0 %3368
      %3370 = vrot.lane.b32.xlu0 %v3015, 120
      %v3371 = vpop.permute.xlu0 %3370
      %3372 = vrot.lane.b32.xlu0 %v3016, 120
      %v3373 = vpop.permute.xlu0 %3372
      %3374 = vrot.lane.b32.xlu0 %v3017, 120
      %v3375 = vpop.permute.xlu0 %3374
      %3376 = vrot.lane.b32.xlu0 %v3018, 120
      %v3377 = vpop.permute.xlu0 %3376
      %3378 = vrot.lane.b32.xlu0 %v3019, 120
      %v3379 = vpop.permute.xlu0 %3378
      %3380 = vrot.lane.b32.xlu0 %v3020, 120
      %v3381 = vpop.permute.xlu0 %3380
      %3382 = vrot.lane.b32.xlu0 %v3021, 120
      %v3383 = vpop.permute.xlu0 %3382
      %3384 = vrot.lane.b32.xlu0 %v3022, 120
      %v3385 = vpop.permute.xlu0 %3384
      %3386 = vrot.lane.b32.xlu0 %v3023, 120
      %v3387 = vpop.permute.xlu0 %3386
      %3388 = vrot.lane.b32.xlu0 %v3024, 120
      %v3389 = vpop.permute.xlu0 %3388
      %3390 = vrot.lane.b32.xlu0 %v3025, 120
      %v3391 = vpop.permute.xlu0 %3390
      %3392 = vrot.lane.b32.xlu0 %v3026, 120
      %v3393 = vpop.permute.xlu0 %3392
      %3394 = vrot.lane.b32.xlu0 %v3027, 120
      %v3395 = vpop.permute.xlu0 %3394
      %3396 = vrot.lane.b32.xlu0 %v3028, 120
      %v3397 = vpop.permute.xlu0 %3396
      %3398 = vrot.lane.b32.xlu0 %v3029, 120
      %v3399 = vpop.permute.xlu0 %3398
      %3400 = vrot.lane.b32.xlu0 %v3030, 120
      %v3401 = vpop.permute.xlu0 %3400
      %3402 = vrot.lane.b32.xlu0 %v3031, 120
      %v3403 = vpop.permute.xlu0 %3402
      %3404 = vrot.lane.b32.xlu0 %v3032, 120
      %v3405 = vpop.permute.xlu0 %3404
      %3406 = vrot.lane.b32.xlu0 %v3033, 120
      %v3407 = vpop.permute.xlu0 %3406
      %3408 = vrot.lane.b32.xlu0 %v3034, 120
      %v3409 = vpop.permute.xlu0 %3408
      %3410 = vrot.lane.b32.xlu0 %v3035, 120
      %v3411 = vpop.permute.xlu0 %3410
      %3412 = vrot.lane.b32.xlu0 %v3036, 120
      %v3413 = vpop.permute.xlu0 %3412
      %3414 = vrot.lane.b32.xlu0 %v3037, 120
      %v3415 = vpop.permute.xlu0 %3414
      %3416 = vrot.lane.b32.xlu0 %v3038, 120
      %v3417 = vpop.permute.xlu0 %3416
      %3418 = vrot.lane.b32.xlu0 %v3039, 120
      %v3419 = vpop.permute.xlu0 %3418
      %3420 = vrot.lane.b32.xlu0 %v3040, 120
      %v3421 = vpop.permute.xlu0 %3420
      %3422 = vrot.lane.b32.xlu0 %v3041, 120
      %v3423 = vpop.permute.xlu0 %3422
      %3424 = vrot.lane.b32.xlu0 %v3042, 120
      %v3425 = vpop.permute.xlu0 %3424
      %3426 = vrot.lane.b32.xlu0 %v3043, 120
      %v3427 = vpop.permute.xlu0 %3426
      %v3428 = vcombine.low %v2916, %v2917
      %v3429 = vcombine.low %v2918, %v2919
      %v3431 = vunpack.c.l.s4 1983009808
      %v3432 = vunpack.c.0.s8 %v3431
      %v3433 = vlaneseq
      %v3434 = vshrl.u32 %v3433, 7
      %v3435 = vsub.s32 %v3432, %v3434
      %v3436 = vrot.slane %v3428, %v3435
      %v3438 = vunpack.c.l.s4 1983009808
      %v3439 = vunpack.c.0.s8 %v3438
      %v3440 = vlaneseq
      %v3441 = vshrl.u32 %v3440, 7
      %v3442 = vsub.s32 %v3439, %v3441
      %v3443 = vrot.slane %v3429, %v3442
      %v3444 = vcombine.low %v3436, %v3443
      %v3445 = vcombine.low %v2920, %v2921
      %v3446 = vcombine.low %v2922, %v2923
      %v3448 = vunpack.c.l.s4 1983009808
      %v3449 = vunpack.c.0.s8 %v3448
      %v3450 = vlaneseq
      %v3451 = vshrl.u32 %v3450, 7
      %v3452 = vsub.s32 %v3449, %v3451
      %v3453 = vrot.slane %v3445, %v3452
      %v3455 = vunpack.c.l.s4 1983009808
      %v3456 = vunpack.c.0.s8 %v3455
      %v3457 = vlaneseq
      %v3458 = vshrl.u32 %v3457, 7
      %v3459 = vsub.s32 %v3456, %v3458
      %v3460 = vrot.slane %v3446, %v3459
      %v3461 = vcombine.low %v3453, %v3460
      %v3462 = vcombine.low %v2924, %v2925
      %v3463 = vcombine.low %v2926, %v2927
      %v3465 = vunpack.c.l.s4 1983009808
      %v3466 = vunpack.c.0.s8 %v3465
      %v3467 = vlaneseq
      %v3468 = vshrl.u32 %v3467, 7
      %v3469 = vsub.s32 %v3466, %v3468
      %v3470 = vrot.slane %v3462, %v3469
      %v3472 = vunpack.c.l.s4 1983009808
      %v3473 = vunpack.c.0.s8 %v3472
      %v3474 = vlaneseq
      %v3475 = vshrl.u32 %v3474, 7
      %v3476 = vsub.s32 %v3473, %v3475
      %v3477 = vrot.slane %v3463, %v3476
      %v3478 = vcombine.low %v3470, %v3477
      %v3479 = vcombine.low %v2928, %v2929
      %v3480 = vcombine.low %v2930, %v2931
      %v3482 = vunpack.c.l.s4 1983009808
      %v3483 = vunpack.c.0.s8 %v3482
      %v3484 = vlaneseq
      %v3485 = vshrl.u32 %v3484, 7
      %v3486 = vsub.s32 %v3483, %v3485
      %v3487 = vrot.slane %v3479, %v3486
      %v3489 = vunpack.c.l.s4 1983009808
      %v3490 = vunpack.c.0.s8 %v3489
      %v3491 = vlaneseq
      %v3492 = vshrl.u32 %v3491, 7
      %v3493 = vsub.s32 %v3490, %v3492
      %v3494 = vrot.slane %v3480, %v3493
      %v3495 = vcombine.low %v3487, %v3494
      %v3496 = vcombine.low %v3173, %v3175
      %v3497 = vcombine.low %v3177, %v3179
      %v3499 = vunpack.c.l.s4 1983009808
      %v3500 = vunpack.c.0.s8 %v3499
      %v3501 = vlaneseq
      %v3502 = vshrl.u32 %v3501, 7
      %v3503 = vsub.s32 %v3500, %v3502
      %v3504 = vrot.slane %v3496, %v3503
      %v3506 = vunpack.c.l.s4 1983009808
      %v3507 = vunpack.c.0.s8 %v3506
      %v3508 = vlaneseq
      %v3509 = vshrl.u32 %v3508, 7
      %v3510 = vsub.s32 %v3507, %v3509
      %v3511 = vrot.slane %v3497, %v3510
      %v3512 = vcombine.low %v3504, %v3511
      %v3513 = vcombine.low %v3181, %v3183
      %v3514 = vcombine.low %v3185, %v3187
      %v3516 = vunpack.c.l.s4 1983009808
      %v3517 = vunpack.c.0.s8 %v3516
      %v3518 = vlaneseq
      %v3519 = vshrl.u32 %v3518, 7
      %v3520 = vsub.s32 %v3517, %v3519
      %v3521 = vrot.slane %v3513, %v3520
      %v3523 = vunpack.c.l.s4 1983009808
      %v3524 = vunpack.c.0.s8 %v3523
      %v3525 = vlaneseq
      %v3526 = vshrl.u32 %v3525, 7
      %v3527 = vsub.s32 %v3524, %v3526
      %v3528 = vrot.slane %v3514, %v3527
      %v3529 = vcombine.low %v3521, %v3528
      %v3530 = vcombine.low %v3189, %v3191
      %v3531 = vcombine.low %v3193, %v3195
      %v3533 = vunpack.c.l.s4 1983009808
      %v3534 = vunpack.c.0.s8 %v3533
      %v3535 = vlaneseq
      %v3536 = vshrl.u32 %v3535, 7
      %v3537 = vsub.s32 %v3534, %v3536
      %v3538 = vrot.slane %v3530, %v3537
      %v3540 = vunpack.c.l.s4 1983009808
      %v3541 = vunpack.c.0.s8 %v3540
      %v3542 = vlaneseq
      %v3543 = vshrl.u32 %v3542, 7
      %v3544 = vsub.s32 %v3541, %v3543
      %v3545 = vrot.slane %v3531, %v3544
      %v3546 = vcombine.low %v3538, %v3545
      %v3547 = vcombine.low %v3197, %v3199
      %v3548 = vcombine.low %v3201, %v3203
      %v3550 = vunpack.c.l.s4 1983009808
      %v3551 = vunpack.c.0.s8 %v3550
      %v3552 = vlaneseq
      %v3553 = vshrl.u32 %v3552, 7
      %v3554 = vsub.s32 %v3551, %v3553
      %v3555 = vrot.slane %v3547, %v3554
      %v3557 = vunpack.c.l.s4 1983009808
      %v3558 = vunpack.c.0.s8 %v3557
      %v3559 = vlaneseq
      %v3560 = vshrl.u32 %v3559, 7
      %v3561 = vsub.s32 %v3558, %v3560
      %v3562 = vrot.slane %v3548, %v3561
      %v3563 = vcombine.low %v3555, %v3562
      %v3564 = vcombine.low %v2932, %v2933
      %v3565 = vcombine.low %v2934, %v2935
      %v3567 = vunpack.c.l.s4 1983009808
      %v3568 = vunpack.c.0.s8 %v3567
      %v3569 = vlaneseq
      %v3570 = vshrl.u32 %v3569, 7
      %v3571 = vsub.s32 %v3568, %v3570
      %v3572 = vrot.slane %v3564, %v3571
      %v3574 = vunpack.c.l.s4 1983009808
      %v3575 = vunpack.c.0.s8 %v3574
      %v3576 = vlaneseq
      %v3577 = vshrl.u32 %v3576, 7
      %v3578 = vsub.s32 %v3575, %v3577
      %v3579 = vrot.slane %v3565, %v3578
      %v3580 = vcombine.low %v3572, %v3579
      %v3581 = vcombine.low %v2936, %v2937
      %v3582 = vcombine.low %v2938, %v2939
      %v3584 = vunpack.c.l.s4 1983009808
      %v3585 = vunpack.c.0.s8 %v3584
      %v3586 = vlaneseq
      %v3587 = vshrl.u32 %v3586, 7
      %v3588 = vsub.s32 %v3585, %v3587
      %v3589 = vrot.slane %v3581, %v3588
      %v3591 = vunpack.c.l.s4 1983009808
      %v3592 = vunpack.c.0.s8 %v3591
      %v3593 = vlaneseq
      %v3594 = vshrl.u32 %v3593, 7
      %v3595 = vsub.s32 %v3592, %v3594
      %v3596 = vrot.slane %v3582, %v3595
      %v3597 = vcombine.low %v3589, %v3596
      %v3598 = vcombine.low %v2940, %v2941
      %v3599 = vcombine.low %v2942, %v2943
      %v3601 = vunpack.c.l.s4 1983009808
      %v3602 = vunpack.c.0.s8 %v3601
      %v3603 = vlaneseq
      %v3604 = vshrl.u32 %v3603, 7
      %v3605 = vsub.s32 %v3602, %v3604
      %v3606 = vrot.slane %v3598, %v3605
      %v3608 = vunpack.c.l.s4 1983009808
      %v3609 = vunpack.c.0.s8 %v3608
      %v3610 = vlaneseq
      %v3611 = vshrl.u32 %v3610, 7
      %v3612 = vsub.s32 %v3609, %v3611
      %v3613 = vrot.slane %v3599, %v3612
      %v3614 = vcombine.low %v3606, %v3613
      %v3615 = vcombine.low %v2944, %v2945
      %v3616 = vcombine.low %v2946, %v2947
      %v3618 = vunpack.c.l.s4 1983009808
      %v3619 = vunpack.c.0.s8 %v3618
      %v3620 = vlaneseq
      %v3621 = vshrl.u32 %v3620, 7
      %v3622 = vsub.s32 %v3619, %v3621
      %v3623 = vrot.slane %v3615, %v3622
      %v3625 = vunpack.c.l.s4 1983009808
      %v3626 = vunpack.c.0.s8 %v3625
      %v3627 = vlaneseq
      %v3628 = vshrl.u32 %v3627, 7
      %v3629 = vsub.s32 %v3626, %v3628
      %v3630 = vrot.slane %v3616, %v3629
      %v3631 = vcombine.low %v3623, %v3630
      %v3632 = vcombine.low %v3205, %v3207
      %v3633 = vcombine.low %v3209, %v3211
      %v3635 = vunpack.c.l.s4 1983009808
      %v3636 = vunpack.c.0.s8 %v3635
      %v3637 = vlaneseq
      %v3638 = vshrl.u32 %v3637, 7
      %v3639 = vsub.s32 %v3636, %v3638
      %v3640 = vrot.slane %v3632, %v3639
      %v3642 = vunpack.c.l.s4 1983009808
      %v3643 = vunpack.c.0.s8 %v3642
      %v3644 = vlaneseq
      %v3645 = vshrl.u32 %v3644, 7
      %v3646 = vsub.s32 %v3643, %v3645
      %v3647 = vrot.slane %v3633, %v3646
      %v3648 = vcombine.low %v3640, %v3647
      %v3649 = vcombine.low %v3213, %v3215
      %v3650 = vcombine.low %v3217, %v3219
      %v3652 = vunpack.c.l.s4 1983009808
      %v3653 = vunpack.c.0.s8 %v3652
      %v3654 = vlaneseq
      %v3655 = vshrl.u32 %v3654, 7
      %v3656 = vsub.s32 %v3653, %v3655
      %v3657 = vrot.slane %v3649, %v3656
      %v3659 = vunpack.c.l.s4 1983009808
      %v3660 = vunpack.c.0.s8 %v3659
      %v3661 = vlaneseq
      %v3662 = vshrl.u32 %v3661, 7
      %v3663 = vsub.s32 %v3660, %v3662
      %v3664 = vrot.slane %v3650, %v3663
      %v3665 = vcombine.low %v3657, %v3664
      %v3666 = vcombine.low %v3221, %v3223
      %v3667 = vcombine.low %v3225, %v3227
      %v3669 = vunpack.c.l.s4 1983009808
      %v3670 = vunpack.c.0.s8 %v3669
      %v3671 = vlaneseq
      %v3672 = vshrl.u32 %v3671, 7
      %v3673 = vsub.s32 %v3670, %v3672
      %v3674 = vrot.slane %v3666, %v3673
      %v3676 = vunpack.c.l.s4 1983009808
      %v3677 = vunpack.c.0.s8 %v3676
      %v3678 = vlaneseq
      %v3679 = vshrl.u32 %v3678, 7
      %v3680 = vsub.s32 %v3677, %v3679
      %v3681 = vrot.slane %v3667, %v3680
      %v3682 = vcombine.low %v3674, %v3681
      %v3683 = vcombine.low %v3229, %v3231
      %v3684 = vcombine.low %v3233, %v3235
      %v3686 = vunpack.c.l.s4 1983009808
      %v3687 = vunpack.c.0.s8 %v3686
      %v3688 = vlaneseq
      %v3689 = vshrl.u32 %v3688, 7
      %v3690 = vsub.s32 %v3687, %v3689
      %v3691 = vrot.slane %v3683, %v3690
      %v3693 = vunpack.c.l.s4 1983009808
      %v3694 = vunpack.c.0.s8 %v3693
      %v3695 = vlaneseq
      %v3696 = vshrl.u32 %v3695, 7
      %v3697 = vsub.s32 %v3694, %v3696
      %v3698 = vrot.slane %v3684, %v3697
      %v3699 = vcombine.low %v3691, %v3698
      %v3700 = vcombine.low %v2948, %v2949
      %v3701 = vcombine.low %v2950, %v2951
      %v3703 = vunpack.c.l.s4 1983009808
      %v3704 = vunpack.c.0.s8 %v3703
      %v3705 = vlaneseq
      %v3706 = vshrl.u32 %v3705, 7
      %v3707 = vsub.s32 %v3704, %v3706
      %v3708 = vrot.slane %v3700, %v3707
      %v3710 = vunpack.c.l.s4 1983009808
      %v3711 = vunpack.c.0.s8 %v3710
      %v3712 = vlaneseq
      %v3713 = vshrl.u32 %v3712, 7
      %v3714 = vsub.s32 %v3711, %v3713
      %v3715 = vrot.slane %v3701, %v3714
      %v3716 = vcombine.low %v3708, %v3715
      %v3717 = vcombine.low %v2952, %v2953
      %v3718 = vcombine.low %v2954, %v2955
      %v3720 = vunpack.c.l.s4 1983009808
      %v3721 = vunpack.c.0.s8 %v3720
      %v3722 = vlaneseq
      %v3723 = vshrl.u32 %v3722, 7
      %v3724 = vsub.s32 %v3721, %v3723
      %v3725 = vrot.slane %v3717, %v3724
      %v3727 = vunpack.c.l.s4 1983009808
      %v3728 = vunpack.c.0.s8 %v3727
      %v3729 = vlaneseq
      %v3730 = vshrl.u32 %v3729, 7
      %v3731 = vsub.s32 %v3728, %v3730
      %v3732 = vrot.slane %v3718, %v3731
      %v3733 = vcombine.low %v3725, %v3732
      %v3734 = vcombine.low %v2956, %v2957
      %v3735 = vcombine.low %v2958, %v2959
      %v3737 = vunpack.c.l.s4 1983009808
      %v3738 = vunpack.c.0.s8 %v3737
      %v3739 = vlaneseq
      %v3740 = vshrl.u32 %v3739, 7
      %v3741 = vsub.s32 %v3738, %v3740
      %v3742 = vrot.slane %v3734, %v3741
      %v3744 = vunpack.c.l.s4 1983009808
      %v3745 = vunpack.c.0.s8 %v3744
      %v3746 = vlaneseq
      %v3747 = vshrl.u32 %v3746, 7
      %v3748 = vsub.s32 %v3745, %v3747
      %v3749 = vrot.slane %v3735, %v3748
      %v3750 = vcombine.low %v3742, %v3749
      %v3751 = vcombine.low %v2960, %v2961
      %v3752 = vcombine.low %v2962, %v2963
      %v3754 = vunpack.c.l.s4 1983009808
      %v3755 = vunpack.c.0.s8 %v3754
      %v3756 = vlaneseq
      %v3757 = vshrl.u32 %v3756, 7
      %v3758 = vsub.s32 %v3755, %v3757
      %v3759 = vrot.slane %v3751, %v3758
      %v3761 = vunpack.c.l.s4 1983009808
      %v3762 = vunpack.c.0.s8 %v3761
      %v3763 = vlaneseq
      %v3764 = vshrl.u32 %v3763, 7
      %v3765 = vsub.s32 %v3762, %v3764
      %v3766 = vrot.slane %v3752, %v3765
      %v3767 = vcombine.low %v3759, %v3766
      %v3768 = vcombine.low %v3237, %v3239
      %v3769 = vcombine.low %v3241, %v3243
      %v3771 = vunpack.c.l.s4 1983009808
      %v3772 = vunpack.c.0.s8 %v3771
      %v3773 = vlaneseq
      %v3774 = vshrl.u32 %v3773, 7
      %v3775 = vsub.s32 %v3772, %v3774
      %v3776 = vrot.slane %v3768, %v3775
      %v3778 = vunpack.c.l.s4 1983009808
      %v3779 = vunpack.c.0.s8 %v3778
      %v3780 = vlaneseq
      %v3781 = vshrl.u32 %v3780, 7
      %v3782 = vsub.s32 %v3779, %v3781
      %v3783 = vrot.slane %v3769, %v3782
      %v3784 = vcombine.low %v3776, %v3783
      %v3785 = vcombine.low %v3245, %v3247
      %v3786 = vcombine.low %v3249, %v3251
      %v3788 = vunpack.c.l.s4 1983009808
      %v3789 = vunpack.c.0.s8 %v3788
      %v3790 = vlaneseq
      %v3791 = vshrl.u32 %v3790, 7
      %v3792 = vsub.s32 %v3789, %v3791
      %v3793 = vrot.slane %v3785, %v3792
      %v3795 = vunpack.c.l.s4 1983009808
      %v3796 = vunpack.c.0.s8 %v3795
      %v3797 = vlaneseq
      %v3798 = vshrl.u32 %v3797, 7
      %v3799 = vsub.s32 %v3796, %v3798
      %v3800 = vrot.slane %v3786, %v3799
      %v3801 = vcombine.low %v3793, %v3800
      %v3802 = vcombine.low %v3253, %v3255
      %v3803 = vcombine.low %v3257, %v3259
      %v3805 = vunpack.c.l.s4 1983009808
      %v3806 = vunpack.c.0.s8 %v3805
      %v3807 = vlaneseq
      %v3808 = vshrl.u32 %v3807, 7
      %v3809 = vsub.s32 %v3806, %v3808
      %v3810 = vrot.slane %v3802, %v3809
      %v3812 = vunpack.c.l.s4 1983009808
      %v3813 = vunpack.c.0.s8 %v3812
      %v3814 = vlaneseq
      %v3815 = vshrl.u32 %v3814, 7
      %v3816 = vsub.s32 %v3813, %v3815
      %v3817 = vrot.slane %v3803, %v3816
      %v3818 = vcombine.low %v3810, %v3817
      %v3819 = vcombine.low %v3261, %v3263
      %v3820 = vcombine.low %v3265, %v3267
      %v3822 = vunpack.c.l.s4 1983009808
      %v3823 = vunpack.c.0.s8 %v3822
      %v3824 = vlaneseq
      %v3825 = vshrl.u32 %v3824, 7
      %v3826 = vsub.s32 %v3823, %v3825
      %v3827 = vrot.slane %v3819, %v3826
      %v3829 = vunpack.c.l.s4 1983009808
      %v3830 = vunpack.c.0.s8 %v3829
      %v3831 = vlaneseq
      %v3832 = vshrl.u32 %v3831, 7
      %v3833 = vsub.s32 %v3830, %v3832
      %v3834 = vrot.slane %v3820, %v3833
      %v3835 = vcombine.low %v3827, %v3834
      %v3836 = vcombine.low %v2964, %v2965
      %v3837 = vcombine.low %v2966, %v2967
      %v3839 = vunpack.c.l.s4 1983009808
      %v3840 = vunpack.c.0.s8 %v3839
      %v3841 = vlaneseq
      %v3842 = vshrl.u32 %v3841, 7
      %v3843 = vsub.s32 %v3840, %v3842
      %v3844 = vrot.slane %v3836, %v3843
      %v3846 = vunpack.c.l.s4 1983009808
      %v3847 = vunpack.c.0.s8 %v3846
      %v3848 = vlaneseq
      %v3849 = vshrl.u32 %v3848, 7
      %v3850 = vsub.s32 %v3847, %v3849
      %v3851 = vrot.slane %v3837, %v3850
      %v3852 = vcombine.low %v3844, %v3851
      %v3853 = vcombine.low %v2968, %v2969
      %v3854 = vcombine.low %v2970, %v2971
      %v3856 = vunpack.c.l.s4 1983009808
      %v3857 = vunpack.c.0.s8 %v3856
      %v3858 = vlaneseq
      %v3859 = vshrl.u32 %v3858, 7
      %v3860 = vsub.s32 %v3857, %v3859
      %v3861 = vrot.slane %v3853, %v3860
      %v3863 = vunpack.c.l.s4 1983009808
      %v3864 = vunpack.c.0.s8 %v3863
      %v3865 = vlaneseq
      %v3866 = vshrl.u32 %v3865, 7
      %v3867 = vsub.s32 %v3864, %v3866
      %v3868 = vrot.slane %v3854, %v3867
      %v3869 = vcombine.low %v3861, %v3868
      %v3870 = vcombine.low %v2972, %v2973
      %v3871 = vcombine.low %v2974, %v2975
      %v3873 = vunpack.c.l.s4 1983009808
      %v3874 = vunpack.c.0.s8 %v3873
      %v3875 = vlaneseq
      %v3876 = vshrl.u32 %v3875, 7
      %v3877 = vsub.s32 %v3874, %v3876
      %v3878 = vrot.slane %v3870, %v3877
      %v3880 = vunpack.c.l.s4 1983009808
      %v3881 = vunpack.c.0.s8 %v3880
      %v3882 = vlaneseq
      %v3883 = vshrl.u32 %v3882, 7
      %v3884 = vsub.s32 %v3881, %v3883
      %v3885 = vrot.slane %v3871, %v3884
      %v3886 = vcombine.low %v3878, %v3885
      %v3887 = vcombine.low %v2976, %v2977
      %v3888 = vcombine.low %v2978, %v2979
      %v3890 = vunpack.c.l.s4 1983009808
      %v3891 = vunpack.c.0.s8 %v3890
      %v3892 = vlaneseq
      %v3893 = vshrl.u32 %v3892, 7
      %v3894 = vsub.s32 %v3891, %v3893
      %v3895 = vrot.slane %v3887, %v3894
      %v3897 = vunpack.c.l.s4 1983009808
      %v3898 = vunpack.c.0.s8 %v3897
      %v3899 = vlaneseq
      %v3900 = vshrl.u32 %v3899, 7
      %v3901 = vsub.s32 %v3898, %v3900
      %v3902 = vrot.slane %v3888, %v3901
      %v3903 = vcombine.low %v3895, %v3902
      %v3904 = vcombine.low %v3269, %v3271
      %v3905 = vcombine.low %v3273, %v3275
      %v3907 = vunpack.c.l.s4 1983009808
      %v3908 = vunpack.c.0.s8 %v3907
      %v3909 = vlaneseq
      %v3910 = vshrl.u32 %v3909, 7
      %v3911 = vsub.s32 %v3908, %v3910
      %v3912 = vrot.slane %v3904, %v3911
      %v3914 = vunpack.c.l.s4 1983009808
      %v3915 = vunpack.c.0.s8 %v3914
      %v3916 = vlaneseq
      %v3917 = vshrl.u32 %v3916, 7
      %v3918 = vsub.s32 %v3915, %v3917
      %v3919 = vrot.slane %v3905, %v3918
      %v3920 = vcombine.low %v3912, %v3919
      %v3921 = vcombine.low %v3277, %v3279
      %v3922 = vcombine.low %v3281, %v3283
      %v3924 = vunpack.c.l.s4 1983009808
      %v3925 = vunpack.c.0.s8 %v3924
      %v3926 = vlaneseq
      %v3927 = vshrl.u32 %v3926, 7
      %v3928 = vsub.s32 %v3925, %v3927
      %v3929 = vrot.slane %v3921, %v3928
      %v3931 = vunpack.c.l.s4 1983009808
      %v3932 = vunpack.c.0.s8 %v3931
      %v3933 = vlaneseq
      %v3934 = vshrl.u32 %v3933, 7
      %v3935 = vsub.s32 %v3932, %v3934
      %v3936 = vrot.slane %v3922, %v3935
      %v3937 = vcombine.low %v3929, %v3936
      %v3938 = vcombine.low %v3285, %v3287
      %v3939 = vcombine.low %v3289, %v3291
      %v3941 = vunpack.c.l.s4 1983009808
      %v3942 = vunpack.c.0.s8 %v3941
      %v3943 = vlaneseq
      %v3944 = vshrl.u32 %v3943, 7
      %v3945 = vsub.s32 %v3942, %v3944
      %v3946 = vrot.slane %v3938, %v3945
      %v3948 = vunpack.c.l.s4 1983009808
      %v3949 = vunpack.c.0.s8 %v3948
      %v3950 = vlaneseq
      %v3951 = vshrl.u32 %v3950, 7
      %v3952 = vsub.s32 %v3949, %v3951
      %v3953 = vrot.slane %v3939, %v3952
      %v3954 = vcombine.low %v3946, %v3953
      %v3955 = vcombine.low %v3293, %v3295
      %v3956 = vcombine.low %v3297, %v3299
      %v3958 = vunpack.c.l.s4 1983009808
      %v3959 = vunpack.c.0.s8 %v3958
      %v3960 = vlaneseq
      %v3961 = vshrl.u32 %v3960, 7
      %v3962 = vsub.s32 %v3959, %v3961
      %v3963 = vrot.slane %v3955, %v3962
      %v3965 = vunpack.c.l.s4 1983009808
      %v3966 = vunpack.c.0.s8 %v3965
      %v3967 = vlaneseq
      %v3968 = vshrl.u32 %v3967, 7
      %v3969 = vsub.s32 %v3966, %v3968
      %v3970 = vrot.slane %v3956, %v3969
      %v3971 = vcombine.low %v3963, %v3970
      %v3972 = vcombine.low %v2980, %v2981
      %v3973 = vcombine.low %v2982, %v2983
      %v3975 = vunpack.c.l.s4 1983009808
      %v3976 = vunpack.c.0.s8 %v3975
      %v3977 = vlaneseq
      %v3978 = vshrl.u32 %v3977, 7
      %v3979 = vsub.s32 %v3976, %v3978
      %v3980 = vrot.slane %v3972, %v3979
      %v3982 = vunpack.c.l.s4 1983009808
      %v3983 = vunpack.c.0.s8 %v3982
      %v3984 = vlaneseq
      %v3985 = vshrl.u32 %v3984, 7
      %v3986 = vsub.s32 %v3983, %v3985
      %v3987 = vrot.slane %v3973, %v3986
      %v3988 = vcombine.low %v3980, %v3987
      %v3989 = vcombine.low %v2984, %v2985
      %v3990 = vcombine.low %v2986, %v2987
      %v3992 = vunpack.c.l.s4 1983009808
      %v3993 = vunpack.c.0.s8 %v3992
      %v3994 = vlaneseq
      %v3995 = vshrl.u32 %v3994, 7
      %v3996 = vsub.s32 %v3993, %v3995
      %v3997 = vrot.slane %v3989, %v3996
      %v3999 = vunpack.c.l.s4 1983009808
      %v4000 = vunpack.c.0.s8 %v3999
      %v4001 = vlaneseq
      %v4002 = vshrl.u32 %v4001, 7
      %v4003 = vsub.s32 %v4000, %v4002
      %v4004 = vrot.slane %v3990, %v4003
      %v4005 = vcombine.low %v3997, %v4004
      %v4006 = vcombine.low %v2988, %v2989
      %v4007 = vcombine.low %v2990, %v2991
      %v4009 = vunpack.c.l.s4 1983009808
      %v4010 = vunpack.c.0.s8 %v4009
      %v4011 = vlaneseq
      %v4012 = vshrl.u32 %v4011, 7
      %v4013 = vsub.s32 %v4010, %v4012
      %v4014 = vrot.slane %v4006, %v4013
      %v4016 = vunpack.c.l.s4 1983009808
      %v4017 = vunpack.c.0.s8 %v4016
      %v4018 = vlaneseq
      %v4019 = vshrl.u32 %v4018, 7
      %v4020 = vsub.s32 %v4017, %v4019
      %v4021 = vrot.slane %v4007, %v4020
      %v4022 = vcombine.low %v4014, %v4021
      %v4023 = vcombine.low %v2992, %v2993
      %v4024 = vcombine.low %v2994, %v2995
      %v4026 = vunpack.c.l.s4 1983009808
      %v4027 = vunpack.c.0.s8 %v4026
      %v4028 = vlaneseq
      %v4029 = vshrl.u32 %v4028, 7
      %v4030 = vsub.s32 %v4027, %v4029
      %v4031 = vrot.slane %v4023, %v4030
      %v4033 = vunpack.c.l.s4 1983009808
      %v4034 = vunpack.c.0.s8 %v4033
      %v4035 = vlaneseq
      %v4036 = vshrl.u32 %v4035, 7
      %v4037 = vsub.s32 %v4034, %v4036
      %v4038 = vrot.slane %v4024, %v4037
      %v4039 = vcombine.low %v4031, %v4038
      %v4040 = vcombine.low %v3301, %v3303
      %v4041 = vcombine.low %v3305, %v3307
      %v4043 = vunpack.c.l.s4 1983009808
      %v4044 = vunpack.c.0.s8 %v4043
      %v4045 = vlaneseq
      %v4046 = vshrl.u32 %v4045, 7
      %v4047 = vsub.s32 %v4044, %v4046
      %v4048 = vrot.slane %v4040, %v4047
      %v4050 = vunpack.c.l.s4 1983009808
      %v4051 = vunpack.c.0.s8 %v4050
      %v4052 = vlaneseq
      %v4053 = vshrl.u32 %v4052, 7
      %v4054 = vsub.s32 %v4051, %v4053
      %v4055 = vrot.slane %v4041, %v4054
      %v4056 = vcombine.low %v4048, %v4055
      %v4057 = vcombine.low %v3309, %v3311
      %v4058 = vcombine.low %v3313, %v3315
      %v4060 = vunpack.c.l.s4 1983009808
      %v4061 = vunpack.c.0.s8 %v4060
      %v4062 = vlaneseq
      %v4063 = vshrl.u32 %v4062, 7
      %v4064 = vsub.s32 %v4061, %v4063
      %v4065 = vrot.slane %v4057, %v4064
      %v4067 = vunpack.c.l.s4 1983009808
      %v4068 = vunpack.c.0.s8 %v4067
      %v4069 = vlaneseq
      %v4070 = vshrl.u32 %v4069, 7
      %v4071 = vsub.s32 %v4068, %v4070
      %v4072 = vrot.slane %v4058, %v4071
      %v4073 = vcombine.low %v4065, %v4072
      %v4074 = vcombine.low %v3317, %v3319
      %v4075 = vcombine.low %v3321, %v3323
      %v4077 = vunpack.c.l.s4 1983009808
      %v4078 = vunpack.c.0.s8 %v4077
      %v4079 = vlaneseq
      %v4080 = vshrl.u32 %v4079, 7
      %v4081 = vsub.s32 %v4078, %v4080
      %v4082 = vrot.slane %v4074, %v4081
      %v4084 = vunpack.c.l.s4 1983009808
      %v4085 = vunpack.c.0.s8 %v4084
      %v4086 = vlaneseq
      %v4087 = vshrl.u32 %v4086, 7
      %v4088 = vsub.s32 %v4085, %v4087
      %v4089 = vrot.slane %v4075, %v4088
      %v4090 = vcombine.low %v4082, %v4089
      %v4091 = vcombine.low %v3325, %v3327
      %v4092 = vcombine.low %v3329, %v3331
      %v4094 = vunpack.c.l.s4 1983009808
      %v4095 = vunpack.c.0.s8 %v4094
      %v4096 = vlaneseq
      %v4097 = vshrl.u32 %v4096, 7
      %v4098 = vsub.s32 %v4095, %v4097
      %v4099 = vrot.slane %v4091, %v4098
      %v4101 = vunpack.c.l.s4 1983009808
      %v4102 = vunpack.c.0.s8 %v4101
      %v4103 = vlaneseq
      %v4104 = vshrl.u32 %v4103, 7
      %v4105 = vsub.s32 %v4102, %v4104
      %v4106 = vrot.slane %v4092, %v4105
      %v4107 = vcombine.low %v4099, %v4106
      %v4108 = vcombine.low %v2996, %v2997
      %v4109 = vcombine.low %v2998, %v2999
      %v4111 = vunpack.c.l.s4 1983009808
      %v4112 = vunpack.c.0.s8 %v4111
      %v4113 = vlaneseq
      %v4114 = vshrl.u32 %v4113, 7
      %v4115 = vsub.s32 %v4112, %v4114
      %v4116 = vrot.slane %v4108, %v4115
      %v4118 = vunpack.c.l.s4 1983009808
      %v4119 = vunpack.c.0.s8 %v4118
      %v4120 = vlaneseq
      %v4121 = vshrl.u32 %v4120, 7
      %v4122 = vsub.s32 %v4119, %v4121
      %v4123 = vrot.slane %v4109, %v4122
      %v4124 = vcombine.low %v4116, %v4123
      %v4125 = vcombine.low %v3000, %v3001
      %v4126 = vcombine.low %v3002, %v3003
      %v4128 = vunpack.c.l.s4 1983009808
      %v4129 = vunpack.c.0.s8 %v4128
      %v4130 = vlaneseq
      %v4131 = vshrl.u32 %v4130, 7
      %v4132 = vsub.s32 %v4129, %v4131
      %v4133 = vrot.slane %v4125, %v4132
      %v4135 = vunpack.c.l.s4 1983009808
      %v4136 = vunpack.c.0.s8 %v4135
      %v4137 = vlaneseq
      %v4138 = vshrl.u32 %v4137, 7
      %v4139 = vsub.s32 %v4136, %v4138
      %v4140 = vrot.slane %v4126, %v4139
      %v4141 = vcombine.low %v4133, %v4140
      %v4142 = vcombine.low %v3004, %v3005
      %v4143 = vcombine.low %v3006, %v3007
      %v4145 = vunpack.c.l.s4 1983009808
      %v4146 = vunpack.c.0.s8 %v4145
      %v4147 = vlaneseq
      %v4148 = vshrl.u32 %v4147, 7
      %v4149 = vsub.s32 %v4146, %v4148
      %v4150 = vrot.slane %v4142, %v4149
      %v4152 = vunpack.c.l.s4 1983009808
      %v4153 = vunpack.c.0.s8 %v4152
      %v4154 = vlaneseq
      %v4155 = vshrl.u32 %v4154, 7
      %v4156 = vsub.s32 %v4153, %v4155
      %v4157 = vrot.slane %v4143, %v4156
      %v4158 = vcombine.low %v4150, %v4157
      %v4159 = vcombine.low %v3008, %v3009
      %v4160 = vcombine.low %v3010, %v3011
      %v4162 = vunpack.c.l.s4 1983009808
      %v4163 = vunpack.c.0.s8 %v4162
      %v4164 = vlaneseq
      %v4165 = vshrl.u32 %v4164, 7
      %v4166 = vsub.s32 %v4163, %v4165
      %v4167 = vrot.slane %v4159, %v4166
      %v4169 = vunpack.c.l.s4 1983009808
      %v4170 = vunpack.c.0.s8 %v4169
      %v4171 = vlaneseq
      %v4172 = vshrl.u32 %v4171, 7
      %v4173 = vsub.s32 %v4170, %v4172
      %v4174 = vrot.slane %v4160, %v4173
      %v4175 = vcombine.low %v4167, %v4174
      %v4176 = vcombine.low %v3333, %v3335
      %v4177 = vcombine.low %v3337, %v3339
      %v4179 = vunpack.c.l.s4 1983009808
      %v4180 = vunpack.c.0.s8 %v4179
      %v4181 = vlaneseq
      %v4182 = vshrl.u32 %v4181, 7
      %v4183 = vsub.s32 %v4180, %v4182
      %v4184 = vrot.slane %v4176, %v4183
      %v4186 = vunpack.c.l.s4 1983009808
      %v4187 = vunpack.c.0.s8 %v4186
      %v4188 = vlaneseq
      %v4189 = vshrl.u32 %v4188, 7
      %v4190 = vsub.s32 %v4187, %v4189
      %v4191 = vrot.slane %v4177, %v4190
      %v4192 = vcombine.low %v4184, %v4191
      %v4193 = vcombine.low %v3341, %v3343
      %v4194 = vcombine.low %v3345, %v3347
      %v4196 = vunpack.c.l.s4 1983009808
      %v4197 = vunpack.c.0.s8 %v4196
      %v4198 = vlaneseq
      %v4199 = vshrl.u32 %v4198, 7
      %v4200 = vsub.s32 %v4197, %v4199
      %v4201 = vrot.slane %v4193, %v4200
      %v4203 = vunpack.c.l.s4 1983009808
      %v4204 = vunpack.c.0.s8 %v4203
      %v4205 = vlaneseq
      %v4206 = vshrl.u32 %v4205, 7
      %v4207 = vsub.s32 %v4204, %v4206
      %v4208 = vrot.slane %v4194, %v4207
      %v4209 = vcombine.low %v4201, %v4208
      %v4210 = vcombine.low %v3349, %v3351
      %v4211 = vcombine.low %v3353, %v3355
      %v4213 = vunpack.c.l.s4 1983009808
      %v4214 = vunpack.c.0.s8 %v4213
      %v4215 = vlaneseq
      %v4216 = vshrl.u32 %v4215, 7
      %v4217 = vsub.s32 %v4214, %v4216
      %v4218 = vrot.slane %v4210, %v4217
      %v4220 = vunpack.c.l.s4 1983009808
      %v4221 = vunpack.c.0.s8 %v4220
      %v4222 = vlaneseq
      %v4223 = vshrl.u32 %v4222, 7
      %v4224 = vsub.s32 %v4221, %v4223
      %v4225 = vrot.slane %v4211, %v4224
      %v4226 = vcombine.low %v4218, %v4225
      %v4227 = vcombine.low %v3357, %v3359
      %v4228 = vcombine.low %v3361, %v3363
      %v4230 = vunpack.c.l.s4 1983009808
      %v4231 = vunpack.c.0.s8 %v4230
      %v4232 = vlaneseq
      %v4233 = vshrl.u32 %v4232, 7
      %v4234 = vsub.s32 %v4231, %v4233
      %v4235 = vrot.slane %v4227, %v4234
      %v4237 = vunpack.c.l.s4 1983009808
      %v4238 = vunpack.c.0.s8 %v4237
      %v4239 = vlaneseq
      %v4240 = vshrl.u32 %v4239, 7
      %v4241 = vsub.s32 %v4238, %v4240
      %v4242 = vrot.slane %v4228, %v4241
      %v4243 = vcombine.low %v4235, %v4242
      %v4244 = vcombine.low %v3012, %v3013
      %v4245 = vcombine.low %v3014, %v3015
      %v4247 = vunpack.c.l.s4 1983009808
      %v4248 = vunpack.c.0.s8 %v4247
      %v4249 = vlaneseq
      %v4250 = vshrl.u32 %v4249, 7
      %v4251 = vsub.s32 %v4248, %v4250
      %v4252 = vrot.slane %v4244, %v4251
      %v4254 = vunpack.c.l.s4 1983009808
      %v4255 = vunpack.c.0.s8 %v4254
      %v4256 = vlaneseq
      %v4257 = vshrl.u32 %v4256, 7
      %v4258 = vsub.s32 %v4255, %v4257
      %v4259 = vrot.slane %v4245, %v4258
      %v4260 = vcombine.low %v4252, %v4259
      %v4261 = vcombine.low %v3016, %v3017
      %v4262 = vcombine.low %v3018, %v3019
      %v4264 = vunpack.c.l.s4 1983009808
      %v4265 = vunpack.c.0.s8 %v4264
      %v4266 = vlaneseq
      %v4267 = vshrl.u32 %v4266, 7
      %v4268 = vsub.s32 %v4265, %v4267
      %v4269 = vrot.slane %v4261, %v4268
      %v4271 = vunpack.c.l.s4 1983009808
      %v4272 = vunpack.c.0.s8 %v4271
      %v4273 = vlaneseq
      %v4274 = vshrl.u32 %v4273, 7
      %v4275 = vsub.s32 %v4272, %v4274
      %v4276 = vrot.slane %v4262, %v4275
      %v4277 = vcombine.low %v4269, %v4276
      %v4278 = vcombine.low %v3020, %v3021
      %v4279 = vcombine.low %v3022, %v3023
      %v4281 = vunpack.c.l.s4 1983009808
      %v4282 = vunpack.c.0.s8 %v4281
      %v4283 = vlaneseq
      %v4284 = vshrl.u32 %v4283, 7
      %v4285 = vsub.s32 %v4282, %v4284
      %v4286 = vrot.slane %v4278, %v4285
      %v4288 = vunpack.c.l.s4 1983009808
      %v4289 = vunpack.c.0.s8 %v4288
      %v4290 = vlaneseq
      %v4291 = vshrl.u32 %v4290, 7
      %v4292 = vsub.s32 %v4289, %v4291
      %v4293 = vrot.slane %v4279, %v4292
      %v4294 = vcombine.low %v4286, %v4293
      %v4295 = vcombine.low %v3024, %v3025
      %v4296 = vcombine.low %v3026, %v3027
      %v4298 = vunpack.c.l.s4 1983009808
      %v4299 = vunpack.c.0.s8 %v4298
      %v4300 = vlaneseq
      %v4301 = vshrl.u32 %v4300, 7
      %v4302 = vsub.s32 %v4299, %v4301
      %v4303 = vrot.slane %v4295, %v4302
      %v4305 = vunpack.c.l.s4 1983009808
      %v4306 = vunpack.c.0.s8 %v4305
      %v4307 = vlaneseq
      %v4308 = vshrl.u32 %v4307, 7
      %v4309 = vsub.s32 %v4306, %v4308
      %v4310 = vrot.slane %v4296, %v4309
      %v4311 = vcombine.low %v4303, %v4310
      %v4312 = vcombine.low %v3365, %v3367
      %v4313 = vcombine.low %v3369, %v3371
      %v4315 = vunpack.c.l.s4 1983009808
      %v4316 = vunpack.c.0.s8 %v4315
      %v4317 = vlaneseq
      %v4318 = vshrl.u32 %v4317, 7
      %v4319 = vsub.s32 %v4316, %v4318
      %v4320 = vrot.slane %v4312, %v4319
      %v4322 = vunpack.c.l.s4 1983009808
      %v4323 = vunpack.c.0.s8 %v4322
      %v4324 = vlaneseq
      %v4325 = vshrl.u32 %v4324, 7
      %v4326 = vsub.s32 %v4323, %v4325
      %v4327 = vrot.slane %v4313, %v4326
      %v4328 = vcombine.low %v4320, %v4327
      %v4329 = vcombine.low %v3373, %v3375
      %v4330 = vcombine.low %v3377, %v3379
      %v4332 = vunpack.c.l.s4 1983009808
      %v4333 = vunpack.c.0.s8 %v4332
      %v4334 = vlaneseq
      %v4335 = vshrl.u32 %v4334, 7
      %v4336 = vsub.s32 %v4333, %v4335
      %v4337 = vrot.slane %v4329, %v4336
      %v4339 = vunpack.c.l.s4 1983009808
      %v4340 = vunpack.c.0.s8 %v4339
      %v4341 = vlaneseq
      %v4342 = vshrl.u32 %v4341, 7
      %v4343 = vsub.s32 %v4340, %v4342
      %v4344 = vrot.slane %v4330, %v4343
      %v4345 = vcombine.low %v4337, %v4344
      %v4346 = vcombine.low %v3381, %v3383
      %v4347 = vcombine.low %v3385, %v3387
      %v4349 = vunpack.c.l.s4 1983009808
      %v4350 = vunpack.c.0.s8 %v4349
      %v4351 = vlaneseq
      %v4352 = vshrl.u32 %v4351, 7
      %v4353 = vsub.s32 %v4350, %v4352
      %v4354 = vrot.slane %v4346, %v4353
      %v4356 = vunpack.c.l.s4 1983009808
      %v4357 = vunpack.c.0.s8 %v4356
      %v4358 = vlaneseq
      %v4359 = vshrl.u32 %v4358, 7
      %v4360 = vsub.s32 %v4357, %v4359
      %v4361 = vrot.slane %v4347, %v4360
      %v4362 = vcombine.low %v4354, %v4361
      %v4363 = vcombine.low %v3389, %v3391
      %v4364 = vcombine.low %v3393, %v3395
      %v4366 = vunpack.c.l.s4 1983009808
      %v4367 = vunpack.c.0.s8 %v4366
      %v4368 = vlaneseq
      %v4369 = vshrl.u32 %v4368, 7
      %v4370 = vsub.s32 %v4367, %v4369
      %v4371 = vrot.slane %v4363, %v4370
      %v4373 = vunpack.c.l.s4 1983009808
      %v4374 = vunpack.c.0.s8 %v4373
      %v4375 = vlaneseq
      %v4376 = vshrl.u32 %v4375, 7
      %v4377 = vsub.s32 %v4374, %v4376
      %v4378 = vrot.slane %v4364, %v4377
      %v4379 = vcombine.low %v4371, %v4378
      %v4380 = vcombine.low %v3028, %v3029
      %v4381 = vcombine.low %v3030, %v3031
      %v4383 = vunpack.c.l.s4 1983009808
      %v4384 = vunpack.c.0.s8 %v4383
      %v4385 = vlaneseq
      %v4386 = vshrl.u32 %v4385, 7
      %v4387 = vsub.s32 %v4384, %v4386
      %v4388 = vrot.slane %v4380, %v4387
      %v4390 = vunpack.c.l.s4 1983009808
      %v4391 = vunpack.c.0.s8 %v4390
      %v4392 = vlaneseq
      %v4393 = vshrl.u32 %v4392, 7
      %v4394 = vsub.s32 %v4391, %v4393
      %v4395 = vrot.slane %v4381, %v4394
      %v4396 = vcombine.low %v4388, %v4395
      %v4397 = vcombine.low %v3032, %v3033
      %v4398 = vcombine.low %v3034, %v3035
      %v4400 = vunpack.c.l.s4 1983009808
      %v4401 = vunpack.c.0.s8 %v4400
      %v4402 = vlaneseq
      %v4403 = vshrl.u32 %v4402, 7
      %v4404 = vsub.s32 %v4401, %v4403
      %v4405 = vrot.slane %v4397, %v4404
      %v4407 = vunpack.c.l.s4 1983009808
      %v4408 = vunpack.c.0.s8 %v4407
      %v4409 = vlaneseq
      %v4410 = vshrl.u32 %v4409, 7
      %v4411 = vsub.s32 %v4408, %v4410
      %v4412 = vrot.slane %v4398, %v4411
      %v4413 = vcombine.low %v4405, %v4412
      %v4414 = vcombine.low %v3036, %v3037
      %v4415 = vcombine.low %v3038, %v3039
      %v4417 = vunpack.c.l.s4 1983009808
      %v4418 = vunpack.c.0.s8 %v4417
      %v4419 = vlaneseq
      %v4420 = vshrl.u32 %v4419, 7
      %v4421 = vsub.s32 %v4418, %v4420
      %v4422 = vrot.slane %v4414, %v4421
      %v4424 = vunpack.c.l.s4 1983009808
      %v4425 = vunpack.c.0.s8 %v4424
      %v4426 = vlaneseq
      %v4427 = vshrl.u32 %v4426, 7
      %v4428 = vsub.s32 %v4425, %v4427
      %v4429 = vrot.slane %v4415, %v4428
      %v4430 = vcombine.low %v4422, %v4429
      %v4431 = vcombine.low %v3040, %v3041
      %v4432 = vcombine.low %v3042, %v3043
      %v4434 = vunpack.c.l.s4 1983009808
      %v4435 = vunpack.c.0.s8 %v4434
      %v4436 = vlaneseq
      %v4437 = vshrl.u32 %v4436, 7
      %v4438 = vsub.s32 %v4435, %v4437
      %v4439 = vrot.slane %v4431, %v4438
      %v4441 = vunpack.c.l.s4 1983009808
      %v4442 = vunpack.c.0.s8 %v4441
      %v4443 = vlaneseq
      %v4444 = vshrl.u32 %v4443, 7
      %v4445 = vsub.s32 %v4442, %v4444
      %v4446 = vrot.slane %v4432, %v4445
      %v4447 = vcombine.low %v4439, %v4446
      %v4448 = vcombine.low %v3397, %v3399
      %v4449 = vcombine.low %v3401, %v3403
      %v4451 = vunpack.c.l.s4 1983009808
      %v4452 = vunpack.c.0.s8 %v4451
      %v4453 = vlaneseq
      %v4454 = vshrl.u32 %v4453, 7
      %v4455 = vsub.s32 %v4452, %v4454
      %v4456 = vrot.slane %v4448, %v4455
      %v4458 = vunpack.c.l.s4 1983009808
      %v4459 = vunpack.c.0.s8 %v4458
      %v4460 = vlaneseq
      %v4461 = vshrl.u32 %v4460, 7
      %v4462 = vsub.s32 %v4459, %v4461
      %v4463 = vrot.slane %v4449, %v4462
      %v4464 = vcombine.low %v4456, %v4463
      %v4465 = vcombine.low %v3405, %v3407
      %v4466 = vcombine.low %v3409, %v3411
      %v4468 = vunpack.c.l.s4 1983009808
      %v4469 = vunpack.c.0.s8 %v4468
      %v4470 = vlaneseq
      %v4471 = vshrl.u32 %v4470, 7
      %v4472 = vsub.s32 %v4469, %v4471
      %v4473 = vrot.slane %v4465, %v4472
      %v4475 = vunpack.c.l.s4 1983009808
      %v4476 = vunpack.c.0.s8 %v4475
      %v4477 = vlaneseq
      %v4478 = vshrl.u32 %v4477, 7
      %v4479 = vsub.s32 %v4476, %v4478
      %v4480 = vrot.slane %v4466, %v4479
      %v4481 = vcombine.low %v4473, %v4480
      %v4482 = vcombine.low %v3413, %v3415
      %v4483 = vcombine.low %v3417, %v3419
      %v4485 = vunpack.c.l.s4 1983009808
      %v4486 = vunpack.c.0.s8 %v4485
      %v4487 = vlaneseq
      %v4488 = vshrl.u32 %v4487, 7
      %v4489 = vsub.s32 %v4486, %v4488
      %v4490 = vrot.slane %v4482, %v4489
      %v4492 = vunpack.c.l.s4 1983009808
      %v4493 = vunpack.c.0.s8 %v4492
      %v4494 = vlaneseq
      %v4495 = vshrl.u32 %v4494, 7
      %v4496 = vsub.s32 %v4493, %v4495
      %v4497 = vrot.slane %v4483, %v4496
      %v4498 = vcombine.low %v4490, %v4497
      %v4499 = vcombine.low %v3421, %v3423
      %v4500 = vcombine.low %v3425, %v3427
      %v4502 = vunpack.c.l.s4 1983009808
      %v4503 = vunpack.c.0.s8 %v4502
      %v4504 = vlaneseq
      %v4505 = vshrl.u32 %v4504, 7
      %v4506 = vsub.s32 %v4503, %v4505
      %v4507 = vrot.slane %v4499, %v4506
      %v4509 = vunpack.c.l.s4 1983009808
      %v4510 = vunpack.c.0.s8 %v4509
      %v4511 = vlaneseq
      %v4512 = vshrl.u32 %v4511, 7
      %v4513 = vsub.s32 %v4510, %v4512
      %v4514 = vrot.slane %v4500, %v4513
      %v4515 = vcombine.low %v4507, %v4514
      %4580 = vst.msk [vmem:[%s194] sm:$0xff] %vm745, %v3444
      %4581 = vst.msk [vmem:[%s194 + $0x8] sm:$0xff] %vm745, %v3461
      %4582 = vst.msk [vmem:[%s194 + $0x10] sm:$0xff] %vm745, %v3478
      %4583 = vst.msk [vmem:[%s194 + $0x18] sm:$0xff] %vm745, %v3495
      %4584 = vst.msk [vmem:[%s194 + $0x20] sm:$0xff] %vm745, %v3512
      %4585 = vst.msk [vmem:[%s194 + $0x28] sm:$0xff] %vm745, %v3529
      %4586 = vst.msk [vmem:[%s194 + $0x30] sm:$0xff] %vm745, %v3546
      %4587 = vst.msk [vmem:[%s194 + $0x38] sm:$0xff] %vm745, %v3563
      %4588 = vst.msk [vmem:[%s194 + $0x40] sm:$0xff] %vm745, %v3580
      %4589 = vst.msk [vmem:[%s194 + $0x48] sm:$0xff] %vm745, %v3597
      %4590 = vst.msk [vmem:[%s194 + $0x50] sm:$0xff] %vm745, %v3614
      %4591 = vst.msk [vmem:[%s194 + $0x58] sm:$0xff] %vm745, %v3631
      %4592 = vst.msk [vmem:[%s194 + $0x60] sm:$0xff] %vm745, %v3648
      %4593 = vst.msk [vmem:[%s194 + $0x68] sm:$0xff] %vm745, %v3665
      %4594 = vst.msk [vmem:[%s194 + $0x70] sm:$0xff] %vm745, %v3682
      %4595 = vst.msk [vmem:[%s194 + $0x78] sm:$0xff] %vm745, %v3699
      %4596 = vst.msk [vmem:[%s194 + $0x80] sm:$0xff] %vm745, %v3716
      %4597 = vst.msk [vmem:[%s194 + $0x88] sm:$0xff] %vm745, %v3733
      %4598 = vst.msk [vmem:[%s194 + $0x90] sm:$0xff] %vm745, %v3750
      %4599 = vst.msk [vmem:[%s194 + $0x98] sm:$0xff] %vm745, %v3767
      %4600 = vst.msk [vmem:[%s194 + $0xa0] sm:$0xff] %vm745, %v3784
      %4601 = vst.msk [vmem:[%s194 + $0xa8] sm:$0xff] %vm745, %v3801
      %4602 = vst.msk [vmem:[%s194 + $0xb0] sm:$0xff] %vm745, %v3818
      %4603 = vst.msk [vmem:[%s194 + $0xb8] sm:$0xff] %vm745, %v3835
      %4604 = vst.msk [vmem:[%s194 + $0xc0] sm:$0xff] %vm745, %v3852
      %4605 = vst.msk [vmem:[%s194 + $0xc8] sm:$0xff] %vm745, %v3869
      %4606 = vst.msk [vmem:[%s194 + $0xd0] sm:$0xff] %vm745, %v3886
      %4607 = vst.msk [vmem:[%s194 + $0xd8] sm:$0xff] %vm745, %v3903
      %4608 = vst.msk [vmem:[%s194 + $0xe0] sm:$0xff] %vm745, %v3920
      %4609 = vst.msk [vmem:[%s194 + $0xe8] sm:$0xff] %vm745, %v3937
      %4610 = vst.msk [vmem:[%s194 + $0xf0] sm:$0xff] %vm745, %v3954
      %4611 = vst.msk [vmem:[%s194 + $0xf8] sm:$0xff] %vm745, %v3971
      %4612 = vst.msk [vmem:[%s194 + $0x100] sm:$0xff] %vm745, %v3988
      %4613 = vst.msk [vmem:[%s194 + $0x108] sm:$0xff] %vm745, %v4005
      %4614 = vst.msk [vmem:[%s194 + $0x110] sm:$0xff] %vm745, %v4022
      %4615 = vst.msk [vmem:[%s194 + $0x118] sm:$0xff] %vm745, %v4039
      %4616 = vst.msk [vmem:[%s194 + $0x120] sm:$0xff] %vm745, %v4056
      %4617 = vst.msk [vmem:[%s194 + $0x128] sm:$0xff] %vm745, %v4073
      %4618 = vst.msk [vmem:[%s194 + $0x130] sm:$0xff] %vm745, %v4090
      %4619 = vst.msk [vmem:[%s194 + $0x138] sm:$0xff] %vm745, %v4107
      %4620 = vst.msk [vmem:[%s194 + $0x140] sm:$0xff] %vm745, %v4124
      %4621 = vst.msk [vmem:[%s194 + $0x148] sm:$0xff] %vm745, %v4141
      %4622 = vst.msk [vmem:[%s194 + $0x150] sm:$0xff] %vm745, %v4158
      %4623 = vst.msk [vmem:[%s194 + $0x158] sm:$0xff] %vm745, %v4175
      %4624 = vst.msk [vmem:[%s194 + $0x160] sm:$0xff] %vm745, %v4192
      %4625 = vst.msk [vmem:[%s194 + $0x168] sm:$0xff] %vm745, %v4209
      %4626 = vst.msk [vmem:[%s194 + $0x170] sm:$0xff] %vm745, %v4226
      %4627 = vst.msk [vmem:[%s194 + $0x178] sm:$0xff] %vm745, %v4243
      %4628 = vst.msk [vmem:[%s194 + $0x180] sm:$0xff] %vm745, %v4260
      %4629 = vst.msk [vmem:[%s194 + $0x188] sm:$0xff] %vm745, %v4277
      %4630 = vst.msk [vmem:[%s194 + $0x190] sm:$0xff] %vm745, %v4294
      %4631 = vst.msk [vmem:[%s194 + $0x198] sm:$0xff] %vm745, %v4311
      %4632 = vst.msk [vmem:[%s194 + $0x1a0] sm:$0xff] %vm745, %v4328
      %4633 = vst.msk [vmem:[%s194 + $0x1a8] sm:$0xff] %vm745, %v4345
      %4634 = vst.msk [vmem:[%s194 + $0x1b0] sm:$0xff] %vm745, %v4362
      %4635 = vst.msk [vmem:[%s194 + $0x1b8] sm:$0xff] %vm745, %v4379
      %4636 = vst.msk [vmem:[%s194 + $0x1c0] sm:$0xff] %vm745, %v4396
      %4637 = vst.msk [vmem:[%s194 + $0x1c8] sm:$0xff] %vm745, %v4413
      %4638 = vst.msk [vmem:[%s194 + $0x1d0] sm:$0xff] %vm745, %v4430
      %4639 = vst.msk [vmem:[%s194 + $0x1d8] sm:$0xff] %vm745, %v4447
      %4640 = vst.msk [vmem:[%s194 + $0x1e0] sm:$0xff] %vm745, %v4464
      %4641 = vst.msk [vmem:[%s194 + $0x1e8] sm:$0xff] %vm745, %v4481
      %4642 = vst.msk [vmem:[%s194 + $0x1f0] sm:$0xff] %vm745, %v4498
      %4643 = vst.msk [vmem:[%s194 + $0x1f8] sm:$0xff] %vm745, %v4515
      %s4644 = smul.u32 16, %s19
      %p4645 = scmp.lt.s32.totalorder %s18, 1
      %s4646 = scalar_select %p4645, %s18, 1
      %p4647 = scmp.lt.s32.totalorder %s4644, 31
      %s4648 = scalar_select %p4647, %s4644, 31
      %s4649 = smul.addr %s4648, 4
      %s4650 = smul.addr %s4646, 128
      %s4651 = sadd.s32 %s4649, %s4650
      %s4652 = smul.addr %s4651, 8
      %s4653 = scalar_lea.vmem %s3, %s4652
      // Predicated region
      $region33: #{_forward_with_conv.1} parent=31 // pred_check
        %p4654 = pneg %p114
      $region34: #{_forward_with_conv.1} parent=31 // pred_check_branch
        %4656 = sbr.rel (%p4654) target = $region36
      $region35: #{_forward_with_conv.1} parent=31 // pred_region
        %s4657 = smul.u32 16, %s19
      $region36: #{_forward_with_conv.1} parent=31 // pred_fallthru
        _
    $region32: #{_forward_with_conv.1} parent=5 // pred_fallthru
      _
    %p4658 = scmp.le.s32.totalorder 2, %s9
    // Predicated region
    $region37: #{_forward_with_conv.1} parent=5 // pred_check
      %p4659 = pneg %p4658
    $region38: #{_forward_with_conv.1} parent=5 // pred_check_branch
      %4661 = sbr.rel (%p4659) target = $region40
    $region39: #{_forward_with_conv.1} parent=5 // pred_region
      %s4662 = ssub.s32 %s9, 2
      // Predicated region
      $region41: #{_forward_with_conv.1} parent=39 // pred_check
        %p4663 = pneg %p120
      $region42: #{_forward_with_conv.1} parent=39 // pred_check_branch
        %4665 = sbr.rel (%p4663) target = $region44
      $region43: #{_forward_with_conv.1} parent=39 // pred_region
        %s4666 = smul.u32 16, %s21
        %p4667 = scmp.lt.s32.totalorder %s20, 1
        %s4668 = scalar_select %p4667, %s20, 1
        %p4669 = scmp.lt.s32.totalorder %s4666, 31
        %s4670 = scalar_select %p4669, %s4666, 31
        %s4671 = smul.addr %s4670, 4
        %s4672 = smul.addr %s4668, 128
        %s4673 = sadd.s32 %s4671, %s4672
        %s4674 = smul.addr %s4673, 8
        %s4675 = scalar_lea.vmem %s3, %s4674
      $region44: #{_forward_with_conv.1} parent=39 // pred_fallthru
        _
    $region40: #{_forward_with_conv.1} parent=5 // pred_fallthru
      _
  $region6: #{_forward_with_conv.1} parent=0 // loop_footer
    %s13 = sadd.s32 1, %s9
  $region7: #{_forward_with_conv.1} parent=0 // loop_footer_branch
    %8 = sbr.rel target = $region3
  $region8: #{_forward_with_conv.1} parent=0 // loop_exit
    _

</llo_original>
